<compile_context>
chip_gen: v7x
topology: tpu7x:2x2x1
jax: 0.10.0
libtpu: 0.0.40
codegen_flags: <defaults>
</compile_context>

<pallas_src>
import functools

import jax
import jax.numpy as jnp
from jax.experimental import pallas as pl
from jax.experimental.pallas import tpu as pltpu


def _round_up(x, m):
    return (x + m - 1) // m * m


def _tower_dims(H, W):
    H1, W1 = (H - 2) // 4 + 1, (W - 2) // 4 + 1      # conv1[0]: k4, s4, p1
    p1h, p1w = (H1 - 2) // 2, (W1 - 2) // 2          # reward maxpool #1
    hf, wf = (p1h - 2) // 2, (p1w - 2) // 2          # reward maxpool #2
    return H1, W1, hf, wf


# ---------------------------------------------------------------------------
# Fused forward kernel: TB images per program, everything VMEM-resident.
# ---------------------------------------------------------------------------
def _fused_kernel(cols_ref, mask_ref, w1a_ref, wc_ref, wd_ref, b64_ref,
                  sm_ref, wf1_ref, dec_ref, rew_ref, act_ref,
                  *, W1, PP_PAD, TB, NG, hf, wf):
    WP = W1 + 2
    ROWS = TB * PP_PAD
    f32, bf16 = jnp.float32, jnp.bfloat16

    # Zero only the guard rows.  Every value a *used* output depends on is
    # rewritten by a replicated store below before it is read; the small
    # interior fringes that miss a lane-group store only ever feed border
    # positions, which the `interior` mask zeroes.
    act_ref[0:NG, :] = jnp.zeros((NG, 192), bf16)
    act_ref[NG + ROWS:NG + ROWS + NG, :] = jnp.zeros((NG, 192), bf16)

    # Hoisted mask broadcast (JAX does not CSE broadcast_in_dim).
    interior = jnp.broadcast_to(mask_ref[...] > 0.5, (ROWS, 64))

    def store_rep(xb, cs):
        """Store x replicated at lane groups [x[p-cs] | x[p] | x[p+cs]] (bf16)."""
        act_ref[NG + cs:NG + cs + ROWS, 0:64] = xb
        act_ref[NG:NG + ROWS, 64:128] = xb
        act_ref[NG - cs:NG - cs + ROWS, 128:192] = xb

    def conv3x3(slab, rs):
        """3x3 conv as 3 fat-K (K=192) MXU matmuls; kw taps live in the lanes."""
        acc = None
        for kh in range(3):
            tap = act_ref[NG + (kh - 1) * rs:NG + (kh - 1) * rs + ROWS, :]
            wt = wc_ref[(slab * 3 + kh) * 192:(slab * 3 + kh + 1) * 192, :]
            d = jnp.dot(tap, wt, preferred_element_type=f32)
            acc = d if acc is None else acc + d
        return acc

    def bias(i):
        return b64_ref[i:i + 1, :]

    # conv1[0]: Conv2d(n_planes, 64, k=4, s=4, p=1) + ReLU (im2col'd on host).
    a = jnp.dot(cols_ref[...], w1a_ref[...], preferred_element_type=f32)
    x1 = jnp.where(interior, jnp.maximum(a + bias(0), 0.0), 0.0)
    store_rep(x1.astype(bf16), 1)

    # conv1[1]: Conv2d(64, 64, k=3, p=1) + ReLU.
    a = conv3x3(0, WP)
    x2 = jnp.where(interior, jnp.maximum(a + bias(1), 0.0), 0.0)
    x2b = x2.astype(bf16)
    store_rep(x2b, 1)

    # conv2 + residual: ReLU(Conv2d(64, 64, k=3, p=1)) + x2.
    a = conv3x3(1, WP)
    x3 = jnp.where(interior, jnp.maximum(a + bias(2), 0.0), 0.0) + x2
    x3b = x3.astype(bf16)
    store_rep(x3b, 1)

    # deconv: ConvTranspose2d(64, 1, k=4, s=4) == per-position matmul to 16
    # taps; emitted into a 128-lane block (taps in lanes 0:16, zeros elsewhere)
    # so stores are full-width / unmasked and the writeback is lane-dense.
    dec = jnp.dot(x3b, wd_ref[...], preferred_element_type=f32) + sm_ref[3:4, 0:16]
    dec_ref[...] = jnp.concatenate([dec, jnp.zeros((ROWS, 112), f32)], axis=1)

    # reward conv #1: Conv2d(64, 64, k=3, valid) + ReLU (ReLU commutes with max).
    r1 = jnp.maximum(conv3x3(2, WP) + bias(3), 0.0)

    # reward maxpool #1 (2x2/2) on the f32 value; valid pooled values land at
    # even grid coordinates >= 2 (out-of-range shifts read the zero tail only
    # at positions that are never consumed).
    r1p = jnp.concatenate([r1, jnp.zeros((WP + 1, 64), f32)], axis=0)
    pool1 = jnp.maximum(jnp.maximum(r1p[0:ROWS], r1p[1:1 + ROWS]),
                        jnp.maximum(r1p[WP:WP + ROWS], r1p[WP + 1:WP + 1 + ROWS]))
    store_rep(pool1.astype(bf16), 2)        # kw-tap stride is 2 on the pooled grid

    # reward conv #2: Conv2d(64, 64, k=3, valid) on the stride-2 pooled grid.
    r2 = jnp.maximum(conv3x3(3, 2 * WP) + bias(4), 0.0)

    # reward maxpool #2, again on the f32 value (shifts of 2 / 2*WP).
    r2p = jnp.concatenate([r2, jnp.zeros((2 * WP + 2, 64), f32)], axis=0)
    pool2 = jnp.maximum(jnp.maximum(r2p[0:ROWS], r2p[2:2 + ROWS]),
                        jnp.maximum(r2p[2 * WP:2 * WP + ROWS],
                                    r2p[2 * WP + 2:2 * WP + 2 + ROWS]))

    # Gather the hf*wf valid pooled rows per image -> (TB, 64*hf*wf) features
    # (spatial-major / channel-last; fc1 weight columns were permuted on host).
    feats = []
    for t in range(TB):
        rows = []
        for m in range(hf):
            for n in range(wf):
                r = t * PP_PAD + (4 + 4 * m) * WP + (4 + 4 * n)
                rows.append(pool2[r:r + 1, :])
        feats.append(rows[0] if len(rows) == 1 else jnp.concatenate(rows, axis=1))
    feat = feats[0] if TB == 1 else jnp.concatenate(feats, axis=0)

    # reward MLP: Linear(rdim,128)+ReLU, then Linear(128,1) as a lane reduction.
    h = jnp.dot(feat.astype(bf16), wf1_ref[...], preferred_element_type=f32)
    h = jnp.maximum(h + sm_ref[0:1, :], 0.0)                      # (TB, 128)
    rew = jnp.sum(h * sm_ref[1:2, :], axis=1, keepdims=True) + sm_ref[2:3, 0:1]
    rew_tile = jnp.broadcast_to(rew, (TB, 128))
    if TB < 8:
        rew_tile = jnp.concatenate(
            [rew_tile, jnp.zeros((8 - TB, 128), f32)], axis=0)
    rew_ref[...] = rew_tile


def _fused_forward(cols, mask, kp, *, B, H1, W1, TB):
    HP, WP = H1 + 2, W1 + 2
    PP = HP * WP
    PP_PAD = _round_up(PP, 8)
    ROWS = TB * PP_PAD
    NG = _round_up(2 * WP + 2, 8)                 # guard rows above/below
    hf = ((H1 - 2) // 2 - 2) // 2
    wf = ((W1 - 2) // 2 - 2) // 2

    assert B % TB == 0 and 1 <= TB <= 8, "TB must divide B and be <= 8"
    assert hf >= 1 and wf >= 1, "input too small for the reward tower"
    # Guard-row safety (deepest read is +-2*WP rows, deepest store is +-2 rows).
    assert NG >= 2 * WP + 2

    weights = (kp["w1a"], kp["wc"], kp["wd"], kp["b64"], kp["small"], kp["wf1"])
    K1 = cols.shape[1]

    in_specs = [pl.BlockSpec((ROWS, K1), lambda g: (g, 0)),
                pl.BlockSpec((ROWS, 1), lambda g: (0, 0))]
    in_specs += [pl.BlockSpec(tuple(w.shape), lambda g: (0, 0)) for w in weights]

    out_shape = (jax.ShapeDtypeStruct((B * PP_PAD, 128), jnp.float32),   # deconv taps
                 jax.ShapeDtypeStruct(((B // TB) * 8, 128), jnp.float32))  # rewards
    out_specs = (pl.BlockSpec((ROWS, 128), lambda g: (g, 0)),
                 pl.BlockSpec((8, 128), lambda g: (g, 0)))

    return pl.pallas_call(
        functools.partial(_fused_kernel, W1=W1, PP_PAD=PP_PAD, TB=TB, NG=NG,
                          hf=hf, wf=wf),
        out_shape=out_shape,
        grid=(B // TB,),
        in_specs=in_specs,
        out_specs=out_specs,
        scratch_shapes=[pltpu.VMEM((2 * NG + ROWS, 192), jnp.bfloat16)],
        compiler_params=pltpu.CompilerParams(
            dimension_semantics=("parallel",)),
    )(cols, mask, *weights)


# ---------------------------------------------------------------------------
# Tiny host-side glue (one-off ops on <100 KB tensors).
# ---------------------------------------------------------------------------
def _im2col_k4s4p1(x):
    """x: (B,H,W,C) NHWC -> (B,Ho,Wo,16*C) patches, column order (kh, kw, c)."""
    B, H, W, C = x.shape
    xp = jnp.pad(x, ((0, 0), (1, 1), (1, 1), (0, 0)))
    Ho, Wo = (H - 2) // 4 + 1, (W - 2) // 4 + 1
    slabs = []
    for kh in range(4):
        for kw in range(4):
            slabs.append(xp[:, kh:kh + 4 * Ho:4, kw:kw + 4 * Wo:4, :])
    pat = jnp.stack(slabs, axis=3)                       # (B, Ho, Wo, 16, C)
    return pat.reshape(B, Ho, Wo, 16 * C), Ho, Wo


def environment_model_forward(kp, obs, actions, *, n_actions, tb=1):
    B, C, H, W = obs.shape
    # One-hot action planes + channel concat, channel-last.
    obs_nhwc = jnp.transpose(obs, (0, 2, 3, 1))
    one_hot = jax.nn.one_hot(actions, n_actions, dtype=jnp.float32)
    planes = jnp.broadcast_to(one_hot[:, None, None, :], (B, H, W, n_actions))
    x = jnp.concatenate([obs_nhwc, planes], axis=-1)

    # TODO(synk): the action-plane one-hot, k4/s4 im2col and the 4x4 deconv
    # pixel shuffle below stay as tiny one-off host XLA ops (<100 KB tensors).
    cols, H1, W1 = _im2col_k4s4p1(x)
    cols = cols.astype(jnp.bfloat16)                     # cast before padding
    HP, WP = H1 + 2, W1 + 2
    PP = HP * WP
    PP_PAD = _round_up(PP, 8)
    cols = jnp.pad(cols, ((0, 0), (1, 1), (1, 1), (0, 0))).reshape(B, PP, -1)
    if PP_PAD > PP:
        cols = jnp.pad(cols, ((0, 0), (0, PP_PAD - PP), (0, 0)))
    cols = cols.reshape(B * PP_PAD, cols.shape[-1])

    mask = jnp.zeros((HP, WP), jnp.float32).at[1:-1, 1:-1].set(1.0).reshape(PP, 1)
    if PP_PAD > PP:
        mask = jnp.pad(mask, ((0, PP_PAD - PP), (0, 0)))
    mask = jnp.tile(mask, (tb, 1))

    dec_pack, rew_pad = _fused_forward(cols, mask, kp, B=B, H1=H1, W1=W1, TB=tb)

    # deconv pixel shuffle: (b, h, w, i, j) -> (b, 1, 4h+i, 4w+j).
    dec = dec_pack[:, :16].reshape(B, PP_PAD, 16)[:, :PP, :]
    dec = dec.reshape(B, HP, WP, 4, 4)[:, 1:-1, 1:-1]
    pred_img_diff = dec.transpose(0, 1, 3, 2, 4).reshape(B, 1, 4 * H1, 4 * W1)
    pred_reward = rew_pad.reshape(B // tb, 8, 128)[:, :tb, 0].reshape(B)
    return pred_img_diff, pred_reward


# ---------------------------------------------------------------------------
# Parameters: torch layouts -> kernel layouts.
# ---------------------------------------------------------------------------
def init_params(key, in_channels, n_actions, H, W):
    """Random parameters in the PyTorch layouts of the reference module."""
    n_planes = in_channels + n_actions
    _, _, hf, wf = _tower_dims(H, W)
    rdim = 64 * hf * wf
    ks = jax.random.split(key, 16)
    w = lambda k, shape: jax.random.normal(k, shape, jnp.float32) * 0.05
    return {
        "c1a_w": w(ks[0], (64, n_planes, 4, 4)), "c1a_b": w(ks[1], (64,)),
        "c1b_w": w(ks[2], (64, 64, 3, 3)),       "c1b_b": w(ks[3], (64,)),
        "c2_w":  w(ks[4], (64, 64, 3, 3)),       "c2_b":  w(ks[5], (64,)),
        "dec_w": w(ks[6], (64, 1, 4, 4)),        "dec_b": w(ks[7], (1,)),
        "r1_w":  w(ks[8], (64, 64, 3, 3)),       "r1_b":  w(ks[9], (64,)),
        "r2_w":  w(ks[10], (64, 64, 3, 3)),      "r2_b":  w(ks[11], (64,)),
        "fc1_w": w(ks[12], (128, rdim)),         "fc1_b": w(ks[13], (128,)),
        "fc2_w": w(ks[14], (1, 128)),            "fc2_b": w(ks[15], (1,)),
    }


def prepare_params(p, *, H, W):
    """Torch-layout params -> merged kernel slabs (bf16 matmul operands)."""
    _, _, hf, wf = _tower_dims(H, W)
    assert hf >= 1 and wf >= 1, "input too small for the reward tower"
    bf16 = jnp.bfloat16

    def conv_w(w):   # (O, I, kh, kw) -> (kh*kw*I, O), row order (kh, kw, i)
        O, I, kh, kw = w.shape
        return jnp.transpose(w, (2, 3, 1, 0)).reshape(kh * kw * I, O)

    # One (4*576, 64) slab for the four 3x3 convs (conv1b, conv2, rconv1, rconv2).
    wc = jnp.concatenate([conv_w(p["c1b_w"]), conv_w(p["c2_w"]),
                          conv_w(p["r1_w"]), conv_w(p["r2_w"])], axis=0).astype(bf16)

    b64 = jnp.zeros((8, 64), jnp.float32)
    b64 = (b64.at[0].set(p["c1a_b"]).at[1].set(p["c1b_b"]).at[2].set(p["c2_b"])
              .at[3].set(p["r1_b"]).at[4].set(p["r2_b"]))

    small = jnp.zeros((8, 128), jnp.float32)
    small = small.at[0, :].set(p["fc1_b"])
    small = small.at[1, :].set(p["fc2_w"].reshape(128))
    small = small.at[2, 0].set(p["fc2_b"][0])
    small = small.at[3, :].set(p["dec_b"][0])

    # fc1 columns: torch flatten order is (c, m, n); the kernel emits (m, n, c).
    f1 = p["fc1_w"].reshape(128, 64, hf, wf).transpose(0, 2, 3, 1).reshape(128, -1)
    return {
        "w1a": conv_w(p["c1a_w"]).astype(bf16),
        "wc": wc,
        "wd": p["dec_w"].reshape(64, 16).astype(bf16),
        "b64": b64,
        "small": small,
        "wf1": jnp.transpose(f1).astype(bf16),
    }


# ---------------------------------------------------------------------------
if __name__ == "__main__":
    key = jax.random.PRNGKey(0)
    k_obs, k_act, k_par = jax.random.split(key, 3)

    # Smallest spatial size keeping the reward tower valid.
    B, C, H, W = 2, 2, 40, 40
    n_actions = 4
    TB = 1   # images per program; keep >=2 programs so v7x uses both TensorCores

    obs = jax.random.normal(k_obs, (B, C, H, W), jnp.float32)
    actions = jax.random.randint(k_act, (B,), 0, n_actions)
    params = init_params(k_par, C, n_actions, H, W)
    kparams = prepare_params(params, H=H, W=W)

    fwd = jax.jit(functools.partial(environment_model_forward,
                                    n_actions=n_actions, tb=TB))
    pred_img_diff, pred_reward = fwd(kparams, obs, actions)
    jax.block_until_ready((pred_img_diff, pred_reward))

    assert pred_img_diff.shape == (B, 1, H, W), pred_img_diff.shape
    assert pred_reward.shape == (B,), pred_reward.shape
    assert bool(jnp.all(jnp.isfinite(pred_img_diff)))
    assert bool(jnp.all(jnp.isfinite(pred_reward)))
    print("KERNEL_OK")
</pallas_src>

<mosaic_0001>
module attributes {stable_mosaic.version = 11 : i64} {
  func.func @_fused_kernel(%arg0: i32, %arg1: memref<144x96xbf16, #tpu.memory_space<vmem>>, %arg2: memref<144x1xf32, #tpu.memory_space<vmem>>, %arg3: memref<96x64xbf16, #tpu.memory_space<vmem>>, %arg4: memref<2304x64xbf16, #tpu.memory_space<vmem>>, %arg5: memref<64x16xbf16, #tpu.memory_space<vmem>>, %arg6: memref<8x64xf32, #tpu.memory_space<vmem>>, %arg7: memref<8x128xf32, #tpu.memory_space<vmem>>, %arg8: memref<64x128xbf16, #tpu.memory_space<vmem>>, %arg9: memref<144x128xf32, #tpu.memory_space<vmem>>, %arg10: memref<8x128xf32, #tpu.memory_space<vmem>>, %arg11: memref<208x192xbf16, #tpu.memory_space<vmem>>) attributes {dimension_semantics = [#tpu.dimension_semantics<parallel>], iteration_bounds = array<i64: 2>, scalar_prefetch = 0 : i64, scratch_operands = 1 : i64, tpu.core_type = #tpu.core_type<tc>, window_params = [{transform_indices = @transform_0, window_bounds = array<i64: 144, 96>}, {pipeline_mode = #tpu.pipeline_mode<synchronous>, transform_indices = @transform_1, window_bounds = array<i64: 144, 1>}, {pipeline_mode = #tpu.pipeline_mode<synchronous>, transform_indices = @transform_2, window_bounds = array<i64: 96, 64>}, {pipeline_mode = #tpu.pipeline_mode<synchronous>, transform_indices = @transform_3, window_bounds = array<i64: 2304, 64>}, {pipeline_mode = #tpu.pipeline_mode<synchronous>, transform_indices = @transform_4, window_bounds = array<i64: 64, 16>}, {pipeline_mode = #tpu.pipeline_mode<synchronous>, transform_indices = @transform_5, window_bounds = array<i64: 8, 64>}, {pipeline_mode = #tpu.pipeline_mode<synchronous>, transform_indices = @transform_6, window_bounds = array<i64: 8, 128>}, {pipeline_mode = #tpu.pipeline_mode<synchronous>, transform_indices = @transform_7, window_bounds = array<i64: 64, 128>}, {transform_indices = @transform_8, window_bounds = array<i64: 144, 128>}, {transform_indices = @transform_9, window_bounds = array<i64: 8, 128>}]} {
    %cst = arith.constant 0.000000e+00 : bf16
    %0 = vector.broadcast %cst : bf16 to vector<32x192xbf16>
    %c0 = arith.constant 0 : index
    %c0_0 = arith.constant 0 : index
    %1 = vector.load %arg11[%c0, %c0_0] : memref<208x192xbf16, #tpu.memory_space<vmem>>, vector<32x192xbf16>
    tpu.vector_store %arg11[%c0, %c0_0], %0 {strides = array<i32>} : memref<208x192xbf16, #tpu.memory_space<vmem>>, vector<32x192xbf16>,
    %cst_1 = arith.constant 0.000000e+00 : bf16
    %2 = vector.broadcast %cst_1 : bf16 to vector<32x192xbf16>
    %c176 = arith.constant 176 : index
    %c0_2 = arith.constant 0 : index
    %3 = vector.load %arg11[%c176, %c0_2] : memref<208x192xbf16, #tpu.memory_space<vmem>>, vector<32x192xbf16>
    tpu.vector_store %arg11[%c176, %c0_2], %2 {strides = array<i32>} : memref<208x192xbf16, #tpu.memory_space<vmem>>, vector<32x192xbf16>,
    %c0_3 = arith.constant 0 : index
    %c0_4 = arith.constant 0 : index
    %4 = vector.load %arg2[%c0_3, %c0_4] : memref<144x1xf32, #tpu.memory_space<vmem>>, vector<144x1xf32>
    %cst_5 = arith.constant 5.000000e-01 : f32
    %5 = vector.broadcast %cst_5 : f32 to vector<144x1xf32>
    %6 = arith.cmpf ogt, %4, %5 : vector<144x1xf32>
    %7 = vector.shape_cast %6 : vector<144x1xi1> to vector<144x1xi1>
    %8 = vector.broadcast %7 : vector<144x1xi1> to vector<144x64xi1>
    %c0_6 = arith.constant 0 : index
    %c0_7 = arith.constant 0 : index
    %9 = vector.load %arg1[%c0_6, %c0_7] : memref<144x96xbf16, #tpu.memory_space<vmem>>, vector<144x96xbf16>
    %c0_8 = arith.constant 0 : index
    %c0_9 = arith.constant 0 : index
    %10 = vector.load %arg3[%c0_8, %c0_9] : memref<96x64xbf16, #tpu.memory_space<vmem>>, vector<96x64xbf16>
    %cst_10 = arith.constant dense<0.000000e+00> : vector<144x64xf32>
    %11 = tpu.matmul %9, %10, %cst_10 {dimension_numbers = #tpu.dot_dimension_numbers<[1], [0], [0], [1], [0, 0, 1, 1], [], []>} : vector<144x96xbf16>, vector<96x64xbf16>, vector<144x64xf32> -> vector<144x64xf32>
    %c0_11 = arith.constant 0 : index
    %c0_12 = arith.constant 0 : index
    %12 = vector.load %arg6[%c0_11, %c0_12] : memref<8x64xf32, #tpu.memory_space<vmem>>, vector<1x64xf32>
    %13 = vector.broadcast %12 : vector<1x64xf32> to vector<144x64xf32>
    %14 = arith.addf %11, %13 : vector<144x64xf32>
    %cst_13 = arith.constant 0.000000e+00 : f32
    %15 = vector.broadcast %cst_13 : f32 to vector<144x64xf32>
    %16 = arith.maximumf %14, %15 : vector<144x64xf32>
    %cst_14 = arith.constant 0.000000e+00 : f32
    %17 = vector.broadcast %cst_14 : f32 to vector<144x64xf32>
    %18 = arith.select %8, %16, %17 : vector<144x64xi1>, vector<144x64xf32>
    %19 = arith.truncf %18 : vector<144x64xf32> to vector<144x64xbf16>
    %c33 = arith.constant 33 : index
    %c0_15 = arith.constant 0 : index
    %20 = vector.load %arg11[%c33, %c0_15] : memref<208x192xbf16, #tpu.memory_space<vmem>>, vector<144x64xbf16>
    tpu.vector_store %arg11[%c33, %c0_15], %19 {strides = array<i32>} : memref<208x192xbf16, #tpu.memory_space<vmem>>, vector<144x64xbf16>,
    %c32 = arith.constant 32 : index
    %c64 = arith.constant 64 : index
    %21 = vector.load %arg11[%c32, %c64] : memref<208x192xbf16, #tpu.memory_space<vmem>>, vector<144x64xbf16>
    tpu.vector_store %arg11[%c32, %c64], %19 {strides = array<i32>} : memref<208x192xbf16, #tpu.memory_space<vmem>>, vector<144x64xbf16>,
    %c31 = arith.constant 31 : index
    %c128 = arith.constant 128 : index
    %22 = vector.load %arg11[%c31, %c128] : memref<208x192xbf16, #tpu.memory_space<vmem>>, vector<144x64xbf16>
    tpu.vector_store %arg11[%c31, %c128], %19 {strides = array<i32>} : memref<208x192xbf16, #tpu.memory_space<vmem>>, vector<144x64xbf16>,
    %c20 = arith.constant 20 : index
    %c0_16 = arith.constant 0 : index
    %23 = vector.load %arg11[%c20, %c0_16] : memref<208x192xbf16, #tpu.memory_space<vmem>>, vector<144x192xbf16>
    %c0_17 = arith.constant 0 : index
    %c0_18 = arith.constant 0 : index
    %24 = vector.load %arg4[%c0_17, %c0_18] : memref<2304x64xbf16, #tpu.memory_space<vmem>>, vector<192x64xbf16>
    %cst_19 = arith.constant dense<0.000000e+00> : vector<144x64xf32>
    %25 = tpu.matmul %23, %24, %cst_19 {dimension_numbers = #tpu.dot_dimension_numbers<[1], [0], [0], [1], [0, 0, 1, 1], [], []>} : vector<144x192xbf16>, vector<192x64xbf16>, vector<144x64xf32> -> vector<144x64xf32>
    %c32_20 = arith.constant 32 : index
    %c0_21 = arith.constant 0 : index
    %26 = vector.load %arg11[%c32_20, %c0_21] : memref<208x192xbf16, #tpu.memory_space<vmem>>, vector<144x192xbf16>
    %c192 = arith.constant 192 : index
    %c0_22 = arith.constant 0 : index
    %27 = vector.load %arg4[%c192, %c0_22] : memref<2304x64xbf16, #tpu.memory_space<vmem>>, vector<192x64xbf16>
    %cst_23 = arith.constant dense<0.000000e+00> : vector<144x64xf32>
    %28 = tpu.matmul %26, %27, %cst_23 {dimension_numbers = #tpu.dot_dimension_numbers<[1], [0], [0], [1], [0, 0, 1, 1], [], []>} : vector<144x192xbf16>, vector<192x64xbf16>, vector<144x64xf32> -> vector<144x64xf32>
    %29 = arith.addf %25, %28 : vector<144x64xf32>
    %c44 = arith.constant 44 : index
    %c0_24 = arith.constant 0 : index
    %30 = vector.load %arg11[%c44, %c0_24] : memref<208x192xbf16, #tpu.memory_space<vmem>>, vector<144x192xbf16>
    %c384 = arith.constant 384 : index
    %c0_25 = arith.constant 0 : index
    %31 = vector.load %arg4[%c384, %c0_25] : memref<2304x64xbf16, #tpu.memory_space<vmem>>, vector<192x64xbf16>
    %cst_26 = arith.constant dense<0.000000e+00> : vector<144x64xf32>
    %32 = tpu.matmul %30, %31, %cst_26 {dimension_numbers = #tpu.dot_dimension_numbers<[1], [0], [0], [1], [0, 0, 1, 1], [], []>} : vector<144x192xbf16>, vector<192x64xbf16>, vector<144x64xf32> -> vector<144x64xf32>
    %33 = arith.addf %29, %32 : vector<144x64xf32>
    %c1 = arith.constant 1 : index
    %c0_27 = arith.constant 0 : index
    %34 = vector.load %arg6[%c1, %c0_27] : memref<8x64xf32, #tpu.memory_space<vmem>>, vector<1x64xf32>
    %35 = vector.broadcast %34 : vector<1x64xf32> to vector<144x64xf32>
    %36 = arith.addf %33, %35 : vector<144x64xf32>
    %cst_28 = arith.constant 0.000000e+00 : f32
    %37 = vector.broadcast %cst_28 : f32 to vector<144x64xf32>
    %38 = arith.maximumf %36, %37 : vector<144x64xf32>
    %cst_29 = arith.constant 0.000000e+00 : f32
    %39 = vector.broadcast %cst_29 : f32 to vector<144x64xf32>
    %40 = arith.select %8, %38, %39 : vector<144x64xi1>, vector<144x64xf32>
    %41 = arith.truncf %40 : vector<144x64xf32> to vector<144x64xbf16>
    %c33_30 = arith.constant 33 : index
    %c0_31 = arith.constant 0 : index
    %42 = vector.load %arg11[%c33_30, %c0_31] : memref<208x192xbf16, #tpu.memory_space<vmem>>, vector<144x64xbf16>
    tpu.vector_store %arg11[%c33_30, %c0_31], %41 {strides = array<i32>} : memref<208x192xbf16, #tpu.memory_space<vmem>>, vector<144x64xbf16>,
    %c32_32 = arith.constant 32 : index
    %c64_33 = arith.constant 64 : index
    %43 = vector.load %arg11[%c32_32, %c64_33] : memref<208x192xbf16, #tpu.memory_space<vmem>>, vector<144x64xbf16>
    tpu.vector_store %arg11[%c32_32, %c64_33], %41 {strides = array<i32>} : memref<208x192xbf16, #tpu.memory_space<vmem>>, vector<144x64xbf16>,
    %c31_34 = arith.constant 31 : index
    %c128_35 = arith.constant 128 : index
    %44 = vector.load %arg11[%c31_34, %c128_35] : memref<208x192xbf16, #tpu.memory_space<vmem>>, vector<144x64xbf16>
    tpu.vector_store %arg11[%c31_34, %c128_35], %41 {strides = array<i32>} : memref<208x192xbf16, #tpu.memory_space<vmem>>, vector<144x64xbf16>,
    %c20_36 = arith.constant 20 : index
    %c0_37 = arith.constant 0 : index
    %45 = vector.load %arg11[%c20_36, %c0_37] : memref<208x192xbf16, #tpu.memory_space<vmem>>, vector<144x192xbf16>
    %c576 = arith.constant 576 : index
    %c0_38 = arith.constant 0 : index
    %46 = vector.load %arg4[%c576, %c0_38] : memref<2304x64xbf16, #tpu.memory_space<vmem>>, vector<192x64xbf16>
    %cst_39 = arith.constant dense<0.000000e+00> : vector<144x64xf32>
    %47 = tpu.matmul %45, %46, %cst_39 {dimension_numbers = #tpu.dot_dimension_numbers<[1], [0], [0], [1], [0, 0, 1, 1], [], []>} : vector<144x192xbf16>, vector<192x64xbf16>, vector<144x64xf32> -> vector<144x64xf32>
    %c32_40 = arith.constant 32 : index
    %c0_41 = arith.constant 0 : index
    %48 = vector.load %arg11[%c32_40, %c0_41] : memref<208x192xbf16, #tpu.memory_space<vmem>>, vector<144x192xbf16>
    %c768 = arith.constant 768 : index
    %c0_42 = arith.constant 0 : index
    %49 = vector.load %arg4[%c768, %c0_42] : memref<2304x64xbf16, #tpu.memory_space<vmem>>, vector<192x64xbf16>
    %cst_43 = arith.constant dense<0.000000e+00> : vector<144x64xf32>
    %50 = tpu.matmul %48, %49, %cst_43 {dimension_numbers = #tpu.dot_dimension_numbers<[1], [0], [0], [1], [0, 0, 1, 1], [], []>} : vector<144x192xbf16>, vector<192x64xbf16>, vector<144x64xf32> -> vector<144x64xf32>
    %51 = arith.addf %47, %50 : vector<144x64xf32>
    %c44_44 = arith.constant 44 : index
    %c0_45 = arith.constant 0 : index
    %52 = vector.load %arg11[%c44_44, %c0_45] : memref<208x192xbf16, #tpu.memory_space<vmem>>, vector<144x192xbf16>
    %c960 = arith.constant 960 : index
    %c0_46 = arith.constant 0 : index
    %53 = vector.load %arg4[%c960, %c0_46] : memref<2304x64xbf16, #tpu.memory_space<vmem>>, vector<192x64xbf16>
    %cst_47 = arith.constant dense<0.000000e+00> : vector<144x64xf32>
    %54 = tpu.matmul %52, %53, %cst_47 {dimension_numbers = #tpu.dot_dimension_numbers<[1], [0], [0], [1], [0, 0, 1, 1], [], []>} : vector<144x192xbf16>, vector<192x64xbf16>, vector<144x64xf32> -> vector<144x64xf32>
    %55 = arith.addf %51, %54 : vector<144x64xf32>
    %c2 = arith.constant 2 : index
    %c0_48 = arith.constant 0 : index
    %56 = vector.load %arg6[%c2, %c0_48] : memref<8x64xf32, #tpu.memory_space<vmem>>, vector<1x64xf32>
    %57 = vector.broadcast %56 : vector<1x64xf32> to vector<144x64xf32>
    %58 = arith.addf %55, %57 : vector<144x64xf32>
    %cst_49 = arith.constant 0.000000e+00 : f32
    %59 = vector.broadcast %cst_49 : f32 to vector<144x64xf32>
    %60 = arith.maximumf %58, %59 : vector<144x64xf32>
    %cst_50 = arith.constant 0.000000e+00 : f32
    %61 = vector.broadcast %cst_50 : f32 to vector<144x64xf32>
    %62 = arith.select %8, %60, %61 : vector<144x64xi1>, vector<144x64xf32>
    %63 = arith.addf %62, %40 : vector<144x64xf32>
    %64 = arith.truncf %63 : vector<144x64xf32> to vector<144x64xbf16>
    %c33_51 = arith.constant 33 : index
    %c0_52 = arith.constant 0 : index
    %65 = vector.load %arg11[%c33_51, %c0_52] : memref<208x192xbf16, #tpu.memory_space<vmem>>, vector<144x64xbf16>
    tpu.vector_store %arg11[%c33_51, %c0_52], %64 {strides = array<i32>} : memref<208x192xbf16, #tpu.memory_space<vmem>>, vector<144x64xbf16>,
    %c32_53 = arith.constant 32 : index
    %c64_54 = arith.constant 64 : index
    %66 = vector.load %arg11[%c32_53, %c64_54] : memref<208x192xbf16, #tpu.memory_space<vmem>>, vector<144x64xbf16>
    tpu.vector_store %arg11[%c32_53, %c64_54], %64 {strides = array<i32>} : memref<208x192xbf16, #tpu.memory_space<vmem>>, vector<144x64xbf16>,
    %c31_55 = arith.constant 31 : index
    %c128_56 = arith.constant 128 : index
    %67 = vector.load %arg11[%c31_55, %c128_56] : memref<208x192xbf16, #tpu.memory_space<vmem>>, vector<144x64xbf16>
    tpu.vector_store %arg11[%c31_55, %c128_56], %64 {strides = array<i32>} : memref<208x192xbf16, #tpu.memory_space<vmem>>, vector<144x64xbf16>,
    %c0_57 = arith.constant 0 : index
    %c0_58 = arith.constant 0 : index
    %68 = vector.load %arg5[%c0_57, %c0_58] : memref<64x16xbf16, #tpu.memory_space<vmem>>, vector<64x16xbf16>
    %cst_59 = arith.constant dense<0.000000e+00> : vector<144x16xf32>
    %69 = tpu.matmul %64, %68, %cst_59 {dimension_numbers = #tpu.dot_dimension_numbers<[1], [0], [0], [1], [0, 0, 1, 1], [], []>} : vector<144x64xbf16>, vector<64x16xbf16>, vector<144x16xf32> -> vector<144x16xf32>
    %c3 = arith.constant 3 : index
    %c0_60 = arith.constant 0 : index
    %70 = vector.load %arg7[%c3, %c0_60] : memref<8x128xf32, #tpu.memory_space<vmem>>, vector<1x16xf32>
    %71 = vector.broadcast %70 : vector<1x16xf32> to vector<144x16xf32>
    %72 = arith.addf %69, %71 : vector<144x16xf32>
    %cst_61 = arith.constant 0.000000e+00 : f32
    %73 = vector.broadcast %cst_61 : f32 to vector<144x112xf32>
    %74 = tpu.concatenate %72, %73 in 1 : vector<144x16xf32>, vector<144x112xf32> -> vector<144x128xf32>
    %c0_62 = arith.constant 0 : index
    %c0_63 = arith.constant 0 : index
    %75 = vector.load %arg9[%c0_62, %c0_63] : memref<144x128xf32, #tpu.memory_space<vmem>>, vector<144x128xf32>
    tpu.vector_store %arg9[%c0_62, %c0_63], %74 {strides = array<i32>} : memref<144x128xf32, #tpu.memory_space<vmem>>, vector<144x128xf32>,
    %c20_64 = arith.constant 20 : index
    %c0_65 = arith.constant 0 : index
    %76 = vector.load %arg11[%c20_64, %c0_65] : memref<208x192xbf16, #tpu.memory_space<vmem>>, vector<144x192xbf16>
    %c1152 = arith.constant 1152 : index
    %c0_66 = arith.constant 0 : index
    %77 = vector.load %arg4[%c1152, %c0_66] : memref<2304x64xbf16, #tpu.memory_space<vmem>>, vector<192x64xbf16>
    %cst_67 = arith.constant dense<0.000000e+00> : vector<144x64xf32>
    %78 = tpu.matmul %76, %77, %cst_67 {dimension_numbers = #tpu.dot_dimension_numbers<[1], [0], [0], [1], [0, 0, 1, 1], [], []>} : vector<144x192xbf16>, vector<192x64xbf16>, vector<144x64xf32> -> vector<144x64xf32>
    %c32_68 = arith.constant 32 : index
    %c0_69 = arith.constant 0 : index
    %79 = vector.load %arg11[%c32_68, %c0_69] : memref<208x192xbf16, #tpu.memory_space<vmem>>, vector<144x192xbf16>
    %c1344 = arith.constant 1344 : index
    %c0_70 = arith.constant 0 : index
    %80 = vector.load %arg4[%c1344, %c0_70] : memref<2304x64xbf16, #tpu.memory_space<vmem>>, vector<192x64xbf16>
    %cst_71 = arith.constant dense<0.000000e+00> : vector<144x64xf32>
    %81 = tpu.matmul %79, %80, %cst_71 {dimension_numbers = #tpu.dot_dimension_numbers<[1], [0], [0], [1], [0, 0, 1, 1], [], []>} : vector<144x192xbf16>, vector<192x64xbf16>, vector<144x64xf32> -> vector<144x64xf32>
    %82 = arith.addf %78, %81 : vector<144x64xf32>
    %c44_72 = arith.constant 44 : index
    %c0_73 = arith.constant 0 : index
    %83 = vector.load %arg11[%c44_72, %c0_73] : memref<208x192xbf16, #tpu.memory_space<vmem>>, vector<144x192xbf16>
    %c1536 = arith.constant 1536 : index
    %c0_74 = arith.constant 0 : index
    %84 = vector.load %arg4[%c1536, %c0_74] : memref<2304x64xbf16, #tpu.memory_space<vmem>>, vector<192x64xbf16>
    %cst_75 = arith.constant dense<0.000000e+00> : vector<144x64xf32>
    %85 = tpu.matmul %83, %84, %cst_75 {dimension_numbers = #tpu.dot_dimension_numbers<[1], [0], [0], [1], [0, 0, 1, 1], [], []>} : vector<144x192xbf16>, vector<192x64xbf16>, vector<144x64xf32> -> vector<144x64xf32>
    %86 = arith.addf %82, %85 : vector<144x64xf32>
    %c3_76 = arith.constant 3 : index
    %c0_77 = arith.constant 0 : index
    %87 = vector.load %arg6[%c3_76, %c0_77] : memref<8x64xf32, #tpu.memory_space<vmem>>, vector<1x64xf32>
    %88 = vector.broadcast %87 : vector<1x64xf32> to vector<144x64xf32>
    %89 = arith.addf %86, %88 : vector<144x64xf32>
    %cst_78 = arith.constant 0.000000e+00 : f32
    %90 = vector.broadcast %cst_78 : f32 to vector<144x64xf32>
    %91 = arith.maximumf %89, %90 : vector<144x64xf32>
    %cst_79 = arith.constant 0.000000e+00 : f32
    %92 = vector.broadcast %cst_79 : f32 to vector<13x64xf32>
    %93 = tpu.concatenate %91, %92 in 0 : vector<144x64xf32>, vector<13x64xf32> -> vector<157x64xf32>
    %94 = vector.extract_strided_slice %93 {offsets = [0, 0], sizes = [144, 64], strides = [1, 1]} : vector<157x64xf32> to vector<144x64xf32>
    %95 = vector.extract_strided_slice %93 {offsets = [1, 0], sizes = [144, 64], strides = [1, 1]} : vector<157x64xf32> to vector<144x64xf32>
    %96 = arith.maximumf %94, %95 : vector<144x64xf32>
    %97 = vector.extract_strided_slice %93 {offsets = [12, 0], sizes = [144, 64], strides = [1, 1]} : vector<157x64xf32> to vector<144x64xf32>
    %98 = vector.extract_strided_slice %93 {offsets = [13, 0], sizes = [144, 64], strides = [1, 1]} : vector<157x64xf32> to vector<144x64xf32>
    %99 = arith.maximumf %97, %98 : vector<144x64xf32>
    %100 = arith.maximumf %96, %99 : vector<144x64xf32>
    %101 = arith.truncf %100 : vector<144x64xf32> to vector<144x64xbf16>
    %c34 = arith.constant 34 : index
    %c0_80 = arith.constant 0 : index
    %102 = vector.load %arg11[%c34, %c0_80] : memref<208x192xbf16, #tpu.memory_space<vmem>>, vector<144x64xbf16>
    tpu.vector_store %arg11[%c34, %c0_80], %101 {strides = array<i32>} : memref<208x192xbf16, #tpu.memory_space<vmem>>, vector<144x64xbf16>,
    %c32_81 = arith.constant 32 : index
    %c64_82 = arith.constant 64 : index
    %103 = vector.load %arg11[%c32_81, %c64_82] : memref<208x192xbf16, #tpu.memory_space<vmem>>, vector<144x64xbf16>
    tpu.vector_store %arg11[%c32_81, %c64_82], %101 {strides = array<i32>} : memref<208x192xbf16, #tpu.memory_space<vmem>>, vector<144x64xbf16>,
    %c30 = arith.constant 30 : index
    %c128_83 = arith.constant 128 : index
    %104 = vector.load %arg11[%c30, %c128_83] : memref<208x192xbf16, #tpu.memory_space<vmem>>, vector<144x64xbf16>
    tpu.vector_store %arg11[%c30, %c128_83], %101 {strides = array<i32>} : memref<208x192xbf16, #tpu.memory_space<vmem>>, vector<144x64xbf16>,
    %c8 = arith.constant 8 : index
    %c0_84 = arith.constant 0 : index
    %105 = vector.load %arg11[%c8, %c0_84] : memref<208x192xbf16, #tpu.memory_space<vmem>>, vector<144x192xbf16>
    %c1728 = arith.constant 1728 : index
    %c0_85 = arith.constant 0 : index
    %106 = vector.load %arg4[%c1728, %c0_85] : memref<2304x64xbf16, #tpu.memory_space<vmem>>, vector<192x64xbf16>
    %cst_86 = arith.constant dense<0.000000e+00> : vector<144x64xf32>
    %107 = tpu.matmul %105, %106, %cst_86 {dimension_numbers = #tpu.dot_dimension_numbers<[1], [0], [0], [1], [0, 0, 1, 1], [], []>} : vector<144x192xbf16>, vector<192x64xbf16>, vector<144x64xf32> -> vector<144x64xf32>
    %c32_87 = arith.constant 32 : index
    %c0_88 = arith.constant 0 : index
    %108 = vector.load %arg11[%c32_87, %c0_88] : memref<208x192xbf16, #tpu.memory_space<vmem>>, vector<144x192xbf16>
    %c1920 = arith.constant 1920 : index
    %c0_89 = arith.constant 0 : index
    %109 = vector.load %arg4[%c1920, %c0_89] : memref<2304x64xbf16, #tpu.memory_space<vmem>>, vector<192x64xbf16>
    %cst_90 = arith.constant dense<0.000000e+00> : vector<144x64xf32>
    %110 = tpu.matmul %108, %109, %cst_90 {dimension_numbers = #tpu.dot_dimension_numbers<[1], [0], [0], [1], [0, 0, 1, 1], [], []>} : vector<144x192xbf16>, vector<192x64xbf16>, vector<144x64xf32> -> vector<144x64xf32>
    %111 = arith.addf %107, %110 : vector<144x64xf32>
    %c56 = arith.constant 56 : index
    %c0_91 = arith.constant 0 : index
    %112 = vector.load %arg11[%c56, %c0_91] : memref<208x192xbf16, #tpu.memory_space<vmem>>, vector<144x192xbf16>
    %c2112 = arith.constant 2112 : index
    %c0_92 = arith.constant 0 : index
    %113 = vector.load %arg4[%c2112, %c0_92] : memref<2304x64xbf16, #tpu.memory_space<vmem>>, vector<192x64xbf16>
    %cst_93 = arith.constant dense<0.000000e+00> : vector<144x64xf32>
    %114 = tpu.matmul %112, %113, %cst_93 {dimension_numbers = #tpu.dot_dimension_numbers<[1], [0], [0], [1], [0, 0, 1, 1], [], []>} : vector<144x192xbf16>, vector<192x64xbf16>, vector<144x64xf32> -> vector<144x64xf32>
    %115 = arith.addf %111, %114 : vector<144x64xf32>
    %c4 = arith.constant 4 : index
    %c0_94 = arith.constant 0 : index
    %116 = vector.load %arg6[%c4, %c0_94] : memref<8x64xf32, #tpu.memory_space<vmem>>, vector<1x64xf32>
    %117 = vector.broadcast %116 : vector<1x64xf32> to vector<144x64xf32>
    %118 = arith.addf %115, %117 : vector<144x64xf32>
    %cst_95 = arith.constant 0.000000e+00 : f32
    %119 = vector.broadcast %cst_95 : f32 to vector<144x64xf32>
    %120 = arith.maximumf %118, %119 : vector<144x64xf32>
    %cst_96 = arith.constant 0.000000e+00 : f32
    %121 = vector.broadcast %cst_96 : f32 to vector<26x64xf32>
    %122 = tpu.concatenate %120, %121 in 0 : vector<144x64xf32>, vector<26x64xf32> -> vector<170x64xf32>
    %123 = vector.extract_strided_slice %122 {offsets = [0, 0], sizes = [144, 64], strides = [1, 1]} : vector<170x64xf32> to vector<144x64xf32>
    %124 = vector.extract_strided_slice %122 {offsets = [2, 0], sizes = [144, 64], strides = [1, 1]} : vector<170x64xf32> to vector<144x64xf32>
    %125 = arith.maximumf %123, %124 : vector<144x64xf32>
    %126 = vector.extract_strided_slice %122 {offsets = [24, 0], sizes = [144, 64], strides = [1, 1]} : vector<170x64xf32> to vector<144x64xf32>
    %127 = vector.extract_strided_slice %122 {offsets = [26, 0], sizes = [144, 64], strides = [1, 1]} : vector<170x64xf32> to vector<144x64xf32>
    %128 = arith.maximumf %126, %127 : vector<144x64xf32>
    %129 = arith.maximumf %125, %128 : vector<144x64xf32>
    %130 = vector.extract_strided_slice %129 {offsets = [52, 0], sizes = [1, 64], strides = [1, 1]} : vector<144x64xf32> to vector<1x64xf32>
    %131 = arith.truncf %130 : vector<1x64xf32> to vector<1x64xbf16>
    %c0_97 = arith.constant 0 : index
    %c0_98 = arith.constant 0 : index
    %132 = vector.load %arg8[%c0_97, %c0_98] : memref<64x128xbf16, #tpu.memory_space<vmem>>, vector<64x128xbf16>
    %cst_99 = arith.constant dense<0.000000e+00> : vector<1x128xf32>
    %133 = tpu.matmul %131, %132, %cst_99 {dimension_numbers = #tpu.dot_dimension_numbers<[1], [0], [0], [1], [0, 0, 1, 1], [], []>} : vector<1x64xbf16>, vector<64x128xbf16>, vector<1x128xf32> -> vector<1x128xf32>
    %c0_100 = arith.constant 0 : index
    %c0_101 = arith.constant 0 : index
    %134 = vector.load %arg7[%c0_100, %c0_101] : memref<8x128xf32, #tpu.memory_space<vmem>>, vector<1x128xf32>
    %135 = arith.addf %133, %134 : vector<1x128xf32>
    %cst_102 = arith.constant 0.000000e+00 : f32
    %136 = vector.broadcast %cst_102 : f32 to vector<1x128xf32>
    %137 = arith.maximumf %135, %136 : vector<1x128xf32>
    %c1_103 = arith.constant 1 : index
    %c0_104 = arith.constant 0 : index
    %138 = vector.load %arg7[%c1_103, %c0_104] : memref<8x128xf32, #tpu.memory_space<vmem>>, vector<1x128xf32>
    %139 = arith.mulf %137, %138 : vector<1x128xf32>
    %cst_105 = arith.constant dense<0.000000e+00> : vector<1xf32>
    %140 = vector.multi_reduction <add>, %139, %cst_105 [1] : vector<1x128xf32> to vector<1xf32>
    %141 = vector.shape_cast %140 : vector<1xf32> to vector<1x1xf32>
    %c2_106 = arith.constant 2 : index
    %c0_107 = arith.constant 0 : index
    %142 = vector.load %arg7[%c2_106, %c0_107] : memref<8x128xf32, #tpu.memory_space<vmem>>, vector<1x1xf32>
    %143 = arith.addf %141, %142 : vector<1x1xf32>
    %144 = vector.shape_cast %143 : vector<1x1xf32> to vector<1x1xf32>
    %145 = vector.broadcast %144 : vector<1x1xf32> to vector<1x128xf32>
    %cst_108 = arith.constant 0.000000e+00 : f32
    %146 = vector.broadcast %cst_108 : f32 to vector<7x128xf32>
    %147 = tpu.concatenate %145, %146 in 0 : vector<1x128xf32>, vector<7x128xf32> -> vector<8x128xf32>
    %c0_109 = arith.constant 0 : index
    %c0_110 = arith.constant 0 : index
    %148 = vector.load %arg10[%c0_109, %c0_110] : memref<8x128xf32, #tpu.memory_space<vmem>>, vector<8x128xf32>
    tpu.vector_store %arg10[%c0_109, %c0_110], %147 {strides = array<i32>} : memref<8x128xf32, #tpu.memory_space<vmem>>, vector<8x128xf32>,
    return
  }
  func.func @transform_0(%arg0: i32) -> (i32, i32) {
    %c0_i32 = arith.constant 0 : i32
    %c0_i32_0 = arith.constant 0 : i32
    return %arg0, %c0_i32 : i32, i32
  }
  func.func @transform_1(%arg0: i32) -> (i32, i32) {
    %c0_i32 = arith.constant 0 : i32
    %c0_i32_0 = arith.constant 0 : i32
    %c0_i32_1 = arith.constant 0 : i32
    return %c0_i32, %c0_i32_0 : i32, i32
  }
  func.func @transform_2(%arg0: i32) -> (i32, i32) {
    %c0_i32 = arith.constant 0 : i32
    %c0_i32_0 = arith.constant 0 : i32
    %c0_i32_1 = arith.constant 0 : i32
    return %c0_i32, %c0_i32_0 : i32, i32
  }
  func.func @transform_3(%arg0: i32) -> (i32, i32) {
    %c0_i32 = arith.constant 0 : i32
    %c0_i32_0 = arith.constant 0 : i32
    %c0_i32_1 = arith.constant 0 : i32
    return %c0_i32, %c0_i32_0 : i32, i32
  }
  func.func @transform_4(%arg0: i32) -> (i32, i32) {
    %c0_i32 = arith.constant 0 : i32
    %c0_i32_0 = arith.constant 0 : i32
    %c0_i32_1 = arith.constant 0 : i32
    return %c0_i32, %c0_i32_0 : i32, i32
  }
  func.func @transform_5(%arg0: i32) -> (i32, i32) {
    %c0_i32 = arith.constant 0 : i32
    %c0_i32_0 = arith.constant 0 : i32
    %c0_i32_1 = arith.constant 0 : i32
    return %c0_i32, %c0_i32_0 : i32, i32
  }
  func.func @transform_6(%arg0: i32) -> (i32, i32) {
    %c0_i32 = arith.constant 0 : i32
    %c0_i32_0 = arith.constant 0 : i32
    %c0_i32_1 = arith.constant 0 : i32
    return %c0_i32, %c0_i32_0 : i32, i32
  }
  func.func @transform_7(%arg0: i32) -> (i32, i32) {
    %c0_i32 = arith.constant 0 : i32
    %c0_i32_0 = arith.constant 0 : i32
    %c0_i32_1 = arith.constant 0 : i32
    return %c0_i32, %c0_i32_0 : i32, i32
  }
  func.func @transform_8(%arg0: i32) -> (i32, i32) {
    %c0_i32 = arith.constant 0 : i32
    %c0_i32_0 = arith.constant 0 : i32
    return %arg0, %c0_i32 : i32, i32
  }
  func.func @transform_9(%arg0: i32) -> (i32, i32) {
    %c0_i32 = arith.constant 0 : i32
    %c0_i32_0 = arith.constant 0 : i32
    return %arg0, %c0_i32 : i32, i32
  }
}

</mosaic_0001>

<llo_original>
// kernel: environment_model_forward.1
$region0: #{environment_model_forward.1}
  #allocation0 [shape = 'u32[]', space=smem, size = 0x4, offset = 0x4, fixed_abs, tag = 'smem constant byte address 0x4 - core index']
  #allocation1 [shape = 'u32[144,128]{1,0:T(1,128)}', space=vmem, size = 0x12000, scoped, tag = 'internal scratch']
  #allocation2 [shape = 'bf16[208,192]{1,0:T(16,128)(2,1)}', space=vmem, size = 0x1a000, scoped, tag = 'scratch operand']
  %s0 = inlined_call_operand.vmem [shape: bf16[288,96], index: 0, kind: input, shape index: {}]
  %s1 = inlined_call_operand.vmem [shape: f32[144,1], index: 1, kind: input, shape index: {}]
  %s2 = inlined_call_operand.vmem [shape: bf16[96,64], index: 2, kind: input, shape index: {}]
  %s3 = inlined_call_operand.vmem [shape: bf16[2304,64], index: 3, kind: input, shape index: {}]
  %s4 = inlined_call_operand.vmem [shape: bf16[64,16], index: 4, kind: input, shape index: {}]
  %s5 = inlined_call_operand.vmem [shape: f32[8,64], index: 5, kind: input, shape index: {}]
  %s6 = inlined_call_operand.vmem [shape: f32[8,128], index: 6, kind: input, shape index: {}]
  %s7 = inlined_call_operand.vmem [shape: bf16[64,128], index: 7, kind: input, shape index: {}]
  %s8 = inlined_call_operand.vmem [shape: f32[288,128], index: 8, kind: output, shape index: {0}]
  %s9 = inlined_call_operand.vmem [shape: f32[16,128], index: 9, kind: output, shape index: {1}]
  %10 = xla_tuple %s8, %s9
  %s11 = sld [smem:[#allocation0]]
  $region73: #{environment_model_forward.1} parent=0
    _
  %s13 = ssub.s32 1, %s11
  %s14 = scalar_select 0, %s13, %s11
  loop: start=0, step=1, limit=4
  $region2: #{environment_model_forward.1} parent=0 // loop_pre_header
    _
  $region3: #{environment_model_forward.1} parent=0 // loop_header
    %s16 = sphi 0, %s20
    %p17 = scmp.ge.s32.totalorder %s16, 4
    %s26 = sphi 0, %s28
    %s29 = sphi 0, %s26
    %s30 = sphi 0, %s29
    %s46 = sphi 0, %s30
    %s50 = sphi 0, %s50
    %s52 = sphi 0, %s50
    %s53 = sphi 0, %s52
    %s67 = sphi 0, %s53
    %s71 = sphi 0, %s71
    %s73 = sphi 0, %s71
    %s74 = sphi 0, %s73
    %s88 = sphi 0, %s74
    %s92 = sphi 0, %s92
    %s94 = sphi 0, %s92
    %s95 = sphi 0, %s94
    %s109 = sphi 0, %s95
    %s113 = sphi 0, %s113
    %s115 = sphi 0, %s113
    %s116 = sphi 0, %s115
    %s130 = sphi 0, %s116
    %s134 = sphi 0, %s134
    %s136 = sphi 0, %s134
    %s137 = sphi 0, %s136
    %s151 = sphi 0, %s137
    %s155 = sphi 0, %s155
    %s157 = sphi 0, %s155
    %s158 = sphi 0, %s157
    %s172 = sphi 0, %s158
    %s176 = sphi 0, %s176
    %s178 = sphi 0, %s176
    %s179 = sphi 0, %s178
    %s193 = sphi 0, %s179
    %s199 = sphi 0, %s201
    %s202 = sphi 0, %s199
    %s203 = sphi 0, %s202
    %s219 = sphi 0, %s203
    %s225 = sphi 0, %s227
    %s228 = sphi 0, %s225
    %s229 = sphi 0, %s228
    %s245 = sphi 0, %s229
  $region4: #{environment_model_forward.1} parent=0 // loop_header_branch
    %19 = sbr.rel (%p17) target = $region8
  $region5: #{environment_model_forward.1} parent=0 // loop_body
    %s21 = ssub.s32 %s16, 1
    %s22 = ssub.s32 %s16, 2
    %s23 = sadd.s32 %s16, 1
    %s24 = ssub.s32 %s16, %s23
    %p25 = scmp.eq.s32.totalorder %s24, 0
    %s27 = sadd.s32 %s26, 1
    %s28 = scalar_select %p25, %s26, %s27
    %p31 = pneg %p25
    %p32 = scmp.eq.s32.totalorder %s16, 1
    %p33 = por %p31, %p32
    %p34 = scmp.ne.s32.totalorder %s26, %s29
    %p35 = scmp.eq.s32.totalorder %s16, 0
    %p36 = por %p34, %p35
    %p37 = scmp.ne.s32.totalorder %s26, %s29
    %p38 = scmp.eq.s32.totalorder %s21, 1
    %p39 = por %p37, %p38
    %p40 = scmp.ne.s32.totalorder %s29, %s30
    %p41 = scmp.eq.s32.totalorder %s21, 0
    %p42 = por %p40, %p41
    %p43 = scmp.ne.s32.totalorder %s29, %s30
    %p44 = scmp.eq.s32.totalorder %s22, 1
    %p45 = por %p43, %p44
    %p47 = scmp.ne.s32.totalorder %s30, %s46
    %p48 = scmp.eq.s32.totalorder %s22, 0
    %p49 = por %p47, %p48
    %s51 = sadd.s32 %s50, 1
    %p54 = scmp.eq.s32.totalorder %s16, 1
    %p55 = scmp.ne.s32.totalorder %s50, %s52
    %p56 = scmp.eq.s32.totalorder %s16, 0
    %p57 = por %p55, %p56
    %p58 = scmp.ne.s32.totalorder %s50, %s52
    %p59 = scmp.eq.s32.totalorder %s21, 1
    %p60 = por %p58, %p59
    %p61 = scmp.ne.s32.totalorder %s52, %s53
    %p62 = scmp.eq.s32.totalorder %s21, 0
    %p63 = por %p61, %p62
    %p64 = scmp.ne.s32.totalorder %s52, %s53
    %p65 = scmp.eq.s32.totalorder %s22, 1
    %p66 = por %p64, %p65
    %p68 = scmp.ne.s32.totalorder %s53, %s67
    %p69 = scmp.eq.s32.totalorder %s22, 0
    %p70 = por %p68, %p69
    %s72 = sadd.s32 %s71, 1
    %p75 = scmp.eq.s32.totalorder %s16, 1
    %p76 = scmp.ne.s32.totalorder %s71, %s73
    %p77 = scmp.eq.s32.totalorder %s16, 0
    %p78 = por %p76, %p77
    %p79 = scmp.ne.s32.totalorder %s71, %s73
    %p80 = scmp.eq.s32.totalorder %s21, 1
    %p81 = por %p79, %p80
    %p82 = scmp.ne.s32.totalorder %s73, %s74
    %p83 = scmp.eq.s32.totalorder %s21, 0
    %p84 = por %p82, %p83
    %p85 = scmp.ne.s32.totalorder %s73, %s74
    %p86 = scmp.eq.s32.totalorder %s22, 1
    %p87 = por %p85, %p86
    %p89 = scmp.ne.s32.totalorder %s74, %s88
    %p90 = scmp.eq.s32.totalorder %s22, 0
    %p91 = por %p89, %p90
    %s93 = sadd.s32 %s92, 1
    %p96 = scmp.eq.s32.totalorder %s16, 1
    %p97 = scmp.ne.s32.totalorder %s92, %s94
    %p98 = scmp.eq.s32.totalorder %s16, 0
    %p99 = por %p97, %p98
    %p100 = scmp.ne.s32.totalorder %s92, %s94
    %p101 = scmp.eq.s32.totalorder %s21, 1
    %p102 = por %p100, %p101
    %p103 = scmp.ne.s32.totalorder %s94, %s95
    %p104 = scmp.eq.s32.totalorder %s21, 0
    %p105 = por %p103, %p104
    %p106 = scmp.ne.s32.totalorder %s94, %s95
    %p107 = scmp.eq.s32.totalorder %s22, 1
    %p108 = por %p106, %p107
    %p110 = scmp.ne.s32.totalorder %s95, %s109
    %p111 = scmp.eq.s32.totalorder %s22, 0
    %p112 = por %p110, %p111
    %s114 = sadd.s32 %s113, 1
    %p117 = scmp.eq.s32.totalorder %s16, 1
    %p118 = scmp.ne.s32.totalorder %s113, %s115
    %p119 = scmp.eq.s32.totalorder %s16, 0
    %p120 = por %p118, %p119
    %p121 = scmp.ne.s32.totalorder %s113, %s115
    %p122 = scmp.eq.s32.totalorder %s21, 1
    %p123 = por %p121, %p122
    %p124 = scmp.ne.s32.totalorder %s115, %s116
    %p125 = scmp.eq.s32.totalorder %s21, 0
    %p126 = por %p124, %p125
    %p127 = scmp.ne.s32.totalorder %s115, %s116
    %p128 = scmp.eq.s32.totalorder %s22, 1
    %p129 = por %p127, %p128
    %p131 = scmp.ne.s32.totalorder %s116, %s130
    %p132 = scmp.eq.s32.totalorder %s22, 0
    %p133 = por %p131, %p132
    %s135 = sadd.s32 %s134, 1
    %p138 = scmp.eq.s32.totalorder %s16, 1
    %p139 = scmp.ne.s32.totalorder %s134, %s136
    %p140 = scmp.eq.s32.totalorder %s16, 0
    %p141 = por %p139, %p140
    %p142 = scmp.ne.s32.totalorder %s134, %s136
    %p143 = scmp.eq.s32.totalorder %s21, 1
    %p144 = por %p142, %p143
    %p145 = scmp.ne.s32.totalorder %s136, %s137
    %p146 = scmp.eq.s32.totalorder %s21, 0
    %p147 = por %p145, %p146
    %p148 = scmp.ne.s32.totalorder %s136, %s137
    %p149 = scmp.eq.s32.totalorder %s22, 1
    %p150 = por %p148, %p149
    %p152 = scmp.ne.s32.totalorder %s137, %s151
    %p153 = scmp.eq.s32.totalorder %s22, 0
    %p154 = por %p152, %p153
    %s156 = sadd.s32 %s155, 1
    %p159 = scmp.eq.s32.totalorder %s16, 1
    %p160 = scmp.ne.s32.totalorder %s155, %s157
    %p161 = scmp.eq.s32.totalorder %s16, 0
    %p162 = por %p160, %p161
    %p163 = scmp.ne.s32.totalorder %s155, %s157
    %p164 = scmp.eq.s32.totalorder %s21, 1
    %p165 = por %p163, %p164
    %p166 = scmp.ne.s32.totalorder %s157, %s158
    %p167 = scmp.eq.s32.totalorder %s21, 0
    %p168 = por %p166, %p167
    %p169 = scmp.ne.s32.totalorder %s157, %s158
    %p170 = scmp.eq.s32.totalorder %s22, 1
    %p171 = por %p169, %p170
    %p173 = scmp.ne.s32.totalorder %s158, %s172
    %p174 = scmp.eq.s32.totalorder %s22, 0
    %p175 = por %p173, %p174
    %s177 = sadd.s32 %s176, 1
    %p180 = scmp.eq.s32.totalorder %s16, 1
    %p181 = scmp.ne.s32.totalorder %s176, %s178
    %p182 = scmp.eq.s32.totalorder %s16, 0
    %p183 = por %p181, %p182
    %p184 = scmp.ne.s32.totalorder %s176, %s178
    %p185 = scmp.eq.s32.totalorder %s21, 1
    %p186 = por %p184, %p185
    %p187 = scmp.ne.s32.totalorder %s178, %s179
    %p188 = scmp.eq.s32.totalorder %s21, 0
    %p189 = por %p187, %p188
    %p190 = scmp.ne.s32.totalorder %s178, %s179
    %p191 = scmp.eq.s32.totalorder %s22, 1
    %p192 = por %p190, %p191
    %p194 = scmp.ne.s32.totalorder %s179, %s193
    %p195 = scmp.eq.s32.totalorder %s22, 0
    %p196 = por %p194, %p195
    %s197 = ssub.s32 %s16, %s23
    %p198 = scmp.eq.s32.totalorder %s197, 0
    %s200 = sadd.s32 %s199, 1
    %s201 = scalar_select %p198, %s199, %s200
    %p204 = pneg %p198
    %p205 = scmp.eq.s32.totalorder %s16, 1
    %p206 = por %p204, %p205
    %p207 = scmp.ne.s32.totalorder %s199, %s202
    %p208 = scmp.eq.s32.totalorder %s16, 0
    %p209 = por %p207, %p208
    %p210 = scmp.ne.s32.totalorder %s199, %s202
    %p211 = scmp.eq.s32.totalorder %s21, 1
    %p212 = por %p210, %p211
    %p213 = scmp.ne.s32.totalorder %s202, %s203
    %p214 = scmp.eq.s32.totalorder %s21, 0
    %p215 = por %p213, %p214
    %p216 = scmp.ne.s32.totalorder %s202, %s203
    %p217 = scmp.eq.s32.totalorder %s22, 1
    %p218 = por %p216, %p217
    %p220 = scmp.ne.s32.totalorder %s203, %s219
    %p221 = scmp.eq.s32.totalorder %s22, 0
    %p222 = por %p220, %p221
    %s223 = ssub.s32 %s16, %s23
    %p224 = scmp.eq.s32.totalorder %s223, 0
    %s226 = sadd.s32 %s225, 1
    %s227 = scalar_select %p224, %s225, %s226
    %p230 = pneg %p224
    %p231 = scmp.eq.s32.totalorder %s16, 1
    %p232 = por %p230, %p231
    %p233 = scmp.ne.s32.totalorder %s225, %s228
    %p234 = scmp.eq.s32.totalorder %s16, 0
    %p235 = por %p233, %p234
    %p236 = scmp.ne.s32.totalorder %s225, %s228
    %p237 = scmp.eq.s32.totalorder %s21, 1
    %p238 = por %p236, %p237
    %p239 = scmp.ne.s32.totalorder %s228, %s229
    %p240 = scmp.eq.s32.totalorder %s21, 0
    %p241 = por %p239, %p240
    %p242 = scmp.ne.s32.totalorder %s228, %s229
    %p243 = scmp.eq.s32.totalorder %s22, 1
    %p244 = por %p242, %p243
    %p246 = scmp.ne.s32.totalorder %s229, %s245
    %p247 = scmp.eq.s32.totalorder %s22, 0
    %p248 = por %p246, %p247
    %p249 = scmp.le.s32.totalorder 1, %s16
    %p250 = scmp.lt.s32.totalorder %s16, 3
    %p251 = pnand %p249, %p250
    %p252 = pneg %p251
    // Predicated region
    $region9: #{environment_model_forward.1} parent=5 // pred_check
      _
    $region10: #{environment_model_forward.1} parent=5 // pred_check_branch
      %254 = sbr.rel (%p251) target = $region12
    $region11: #{environment_model_forward.1} parent=5 // pred_region
      %s255 = ssub.s32 %s16, 1
      // Predicated region
      $region13: #{environment_model_forward.1} parent=11 // pred_check
        %p256 = pneg %p63
      $region14: #{environment_model_forward.1} parent=11 // pred_check_branch
        %258 = sbr.rel (%p256) target = $region16
      $region15: #{environment_model_forward.1} parent=11 // pred_region
        _
      $region16: #{environment_model_forward.1} parent=11 // pred_fallthru
        _
      // Predicated region
      $region17: #{environment_model_forward.1} parent=11 // pred_check
        %p259 = pneg %p84
      $region18: #{environment_model_forward.1} parent=11 // pred_check_branch
        %261 = sbr.rel (%p259) target = $region20
      $region19: #{environment_model_forward.1} parent=11 // pred_region
        _
      $region20: #{environment_model_forward.1} parent=11 // pred_fallthru
        _
      // Predicated region
      $region21: #{environment_model_forward.1} parent=11 // pred_check
        %p262 = pneg %p105
      $region22: #{environment_model_forward.1} parent=11 // pred_check_branch
        %264 = sbr.rel (%p262) target = $region24
      $region23: #{environment_model_forward.1} parent=11 // pred_region
        _
      $region24: #{environment_model_forward.1} parent=11 // pred_fallthru
        _
      // Predicated region
      $region25: #{environment_model_forward.1} parent=11 // pred_check
        %p265 = pneg %p126
      $region26: #{environment_model_forward.1} parent=11 // pred_check_branch
        %267 = sbr.rel (%p265) target = $region28
      $region27: #{environment_model_forward.1} parent=11 // pred_region
        _
      $region28: #{environment_model_forward.1} parent=11 // pred_fallthru
        _
      // Predicated region
      $region29: #{environment_model_forward.1} parent=11 // pred_check
        %p268 = pneg %p147
      $region30: #{environment_model_forward.1} parent=11 // pred_check_branch
        %270 = sbr.rel (%p268) target = $region32
      $region31: #{environment_model_forward.1} parent=11 // pred_region
        _
      $region32: #{environment_model_forward.1} parent=11 // pred_fallthru
        _
      // Predicated region
      $region33: #{environment_model_forward.1} parent=11 // pred_check
        %p271 = pneg %p168
      $region34: #{environment_model_forward.1} parent=11 // pred_check_branch
        %273 = sbr.rel (%p271) target = $region36
      $region35: #{environment_model_forward.1} parent=11 // pred_region
        _
      $region36: #{environment_model_forward.1} parent=11 // pred_fallthru
        _
      // Predicated region
      $region37: #{environment_model_forward.1} parent=11 // pred_check
        %p274 = pneg %p189
      $region38: #{environment_model_forward.1} parent=11 // pred_check_branch
        %276 = sbr.rel (%p274) target = $region40
      $region39: #{environment_model_forward.1} parent=11 // pred_region
        _
      $region40: #{environment_model_forward.1} parent=11 // pred_fallthru
        _
    $region12: #{environment_model_forward.1} parent=5 // pred_fallthru
      _
    %p277 = scmp.lt.s32.totalorder %s16, 2
    // Predicated region
    $region41: #{environment_model_forward.1} parent=5 // pred_check
      %p278 = pneg %p277
    $region42: #{environment_model_forward.1} parent=5 // pred_check_branch
      %280 = sbr.rel (%p278) target = $region44
    $region43: #{environment_model_forward.1} parent=5 // pred_region
      // Predicated region
      $region45: #{environment_model_forward.1} parent=43 // pred_check
        %p281 = pneg %p36
      $region46: #{environment_model_forward.1} parent=43 // pred_check_branch
        %283 = sbr.rel (%p281) target = $region48
      $region47: #{environment_model_forward.1} parent=43 // pred_region
        %s284 = smul.u32 18, %s16
        %p285 = scmp.lt.s32.totalorder %s284, 35
        %s286 = scalar_select %p285, %s284, 35
        %s287 = smul.addr %s286, 4
        %s288 = scalar_lea.vmem %s0, %s287
        %s289 = smul.u32 18, %s16
      $region48: #{environment_model_forward.1} parent=43 // pred_fallthru
        _
    $region44: #{environment_model_forward.1} parent=5 // pred_fallthru
      _
    %p290 = scmp.le.s32.totalorder 1, %s16
    %p291 = scmp.lt.s32.totalorder %s16, 3
    %p292 = pnand %p290, %p291
    %p293 = pneg %p292
    // Predicated region
    $region49: #{environment_model_forward.1} parent=5 // pred_check
      _
    $region50: #{environment_model_forward.1} parent=5 // pred_check_branch
      %295 = sbr.rel (%p292) target = $region52
    $region51: #{environment_model_forward.1} parent=5 // pred_region
      %s296 = ssub.s32 %s16, 1
      %s297 = smul.u32 18, %s21
      %p298 = scmp.lt.s32.totalorder %s297, 35
      %s299 = scalar_select %p298, %s297, 35
      %s300 = smul.addr %s299, 4
      %s301 = scalar_lea.vmem %s0, %s300
      %p302 = pneg %p42
      %p303 = pneg %p39
      %p304 = pneg %p63
      %p305 = pneg %p60
      %p306 = pneg %p84
      %p307 = pneg %p81
      %p308 = pneg %p105
      %p309 = pneg %p102
      %p310 = pneg %p126
      %p311 = pneg %p123
      %p312 = pneg %p147
      %p313 = pneg %p144
      %p314 = pneg %p168
      %p315 = pneg %p165
      %p316 = pneg %p189
      %p317 = pneg %p186
      %p318 = pneg %p215
      %p319 = pneg %p212
      %s320 = smul.u32 18, %s21
      %p321 = scmp.lt.s32.totalorder %s320, 35
      %s322 = scalar_select %p321, %s320, 35
      %s323 = smul.addr %s322, 8
      %s324 = scalar_lea.vmem %s8, %s323
      %p325 = pneg %p241
      %p326 = pneg %p238
      %p327 = scmp.lt.s32.totalorder %s21, 1
      %s328 = scalar_select %p327, %s21, 1
      %s329 = smul.addr %s328, 8
      %s330 = scalar_lea.vmem %s9, %s329
      %s331 = smul.u32 18, %s21
      %p332 = scmp.lt.s32.totalorder %s331, 35
      %s333 = scalar_select %p332, %s331, 35
      %s334 = smul.addr %s333, 4
      %s335 = scalar_lea.vmem %s0, %s334
      %s336 = smul.u32 18, %s21
      %s337 = smul.u32 18, %s21
      %p338 = scmp.lt.s32.totalorder %s337, 35
      %s339 = scalar_select %p338, %s337, 35
      %s340 = smul.addr %s339, 8
      %s341 = scalar_lea.vmem %s8, %s340
      %s342 = smul.u32 18, %s21
      %p343 = scmp.lt.s32.totalorder %s21, 1
      %s344 = scalar_select %p343, %s21, 1
      %s345 = smul.addr %s344, 8
      %s346 = scalar_lea.vmem %s9, %s345
      %348 = vst [vmem:[#allocation2] sm:$0xff] 0
      %vm349 = vcmask 523264
      %350 = vst.msk [vmem:[#allocation2 + $0x8] sm:$0xff] %vm349, 0
      %351 = vst [vmem:[#allocation2 + $0x10] sm:$0xff] 0
      %352 = vst.msk [vmem:[#allocation2 + $0x18] sm:$0xff] %vm349, 0
      %353 = vst [vmem:[#allocation2 + $0xb0] sm:$0xff] 0
      %354 = vst.msk [vmem:[#allocation2 + $0xb8] sm:$0xff] %vm349, 0
      %355 = vst [vmem:[#allocation2 + $0xc0] sm:$0xff] 0
      %356 = vst.msk [vmem:[#allocation2 + $0xc8] sm:$0xff] %vm349, 0
      %v357 = vld [vmem:[%s1] sm:$0xff]
      %v358 = vld [vmem:[%s1 + $0x8] sm:$0xff]
      %v359 = vld [vmem:[%s1 + $0x10] sm:$0xff]
      %v360 = vld [vmem:[%s1 + $0x18] sm:$0xff]
      %v361 = vld [vmem:[%s1 + $0x20] sm:$0xff]
      %v362 = vld [vmem:[%s1 + $0x28] sm:$0xff]
      %v363 = vld [vmem:[%s1 + $0x30] sm:$0xff]
      %v364 = vld [vmem:[%s1 + $0x38] sm:$0xff]
      %v365 = vld [vmem:[%s1 + $0x40] sm:$0xff]
      %v366 = vld [vmem:[%s1 + $0x48] sm:$0xff]
      %v367 = vld [vmem:[%s1 + $0x50] sm:$0xff]
      %v368 = vld [vmem:[%s1 + $0x58] sm:$0xff]
      %v369 = vld [vmem:[%s1 + $0x60] sm:$0xff]
      %v370 = vld [vmem:[%s1 + $0x68] sm:$0xff]
      %v371 = vld [vmem:[%s1 + $0x70] sm:$0xff]
      %v372 = vld [vmem:[%s1 + $0x78] sm:$0xff]
      %v373 = vld [vmem:[%s1 + $0x80] sm:$0xff]
      %v374 = vld [vmem:[%s1 + $0x88] sm:$0xff]
      %vm375 = vcmp.gt.f32.partialorder %v357, 0.5
      %vm376 = vcmp.gt.f32.partialorder %v358, 0.5
      %vm377 = vcmp.gt.f32.partialorder %v359, 0.5
      %vm378 = vcmp.gt.f32.partialorder %v360, 0.5
      %vm379 = vcmp.gt.f32.partialorder %v361, 0.5
      %vm380 = vcmp.gt.f32.partialorder %v362, 0.5
      %vm381 = vcmp.gt.f32.partialorder %v363, 0.5
      %vm382 = vcmp.gt.f32.partialorder %v364, 0.5
      %vm383 = vcmp.gt.f32.partialorder %v365, 0.5
      %vm384 = vcmp.gt.f32.partialorder %v366, 0.5
      %vm385 = vcmp.gt.f32.partialorder %v367, 0.5
      %vm386 = vcmp.gt.f32.partialorder %v368, 0.5
      %vm387 = vcmp.gt.f32.partialorder %v369, 0.5
      %vm388 = vcmp.gt.f32.partialorder %v370, 0.5
      %vm389 = vcmp.gt.f32.partialorder %v371, 0.5
      %vm390 = vcmp.gt.f32.partialorder %v372, 0.5
      %vm391 = vcmp.gt.f32.partialorder %v373, 0.5
      %vm392 = vcmp.gt.f32.partialorder %v374, 0.5
      %v393 = vsel %vm375, 1, 0
      %v394 = vsel %vm376, 1, 0
      %v395 = vsel %vm377, 1, 0
      %v396 = vsel %vm378, 1, 0
      %v397 = vsel %vm379, 1, 0
      %v398 = vsel %vm380, 1, 0
      %v399 = vsel %vm381, 1, 0
      %v400 = vsel %vm382, 1, 0
      %v401 = vsel %vm383, 1, 0
      %v402 = vsel %vm384, 1, 0
      %v403 = vsel %vm385, 1, 0
      %v404 = vsel %vm386, 1, 0
      %v405 = vsel %vm387, 1, 0
      %v406 = vsel %vm388, 1, 0
      %v407 = vsel %vm389, 1, 0
      %v408 = vsel %vm390, 1, 0
      %v409 = vsel %vm391, 1, 0
      %v410 = vsel %vm392, 1, 0
      %411 = vset.pattern.permute.xlu0 0
      %412 = vperm.xlu0 %411, %v393
      %v413 = vpop.permute.xlu0 %412
      %414 = vset.pattern.permute.xlu0 0
      %415 = vperm.xlu0 %414, %v394
      %v416 = vpop.permute.xlu0 %415
      %417 = vset.pattern.permute.xlu0 0
      %418 = vperm.xlu0 %417, %v395
      %v419 = vpop.permute.xlu0 %418
      %420 = vset.pattern.permute.xlu0 0
      %421 = vperm.xlu0 %420, %v396
      %v422 = vpop.permute.xlu0 %421
      %423 = vset.pattern.permute.xlu0 0
      %424 = vperm.xlu0 %423, %v397
      %v425 = vpop.permute.xlu0 %424
      %426 = vset.pattern.permute.xlu0 0
      %427 = vperm.xlu0 %426, %v398
      %v428 = vpop.permute.xlu0 %427
      %429 = vset.pattern.permute.xlu0 0
      %430 = vperm.xlu0 %429, %v399
      %v431 = vpop.permute.xlu0 %430
      %432 = vset.pattern.permute.xlu0 0
      %433 = vperm.xlu0 %432, %v400
      %v434 = vpop.permute.xlu0 %433
      %435 = vset.pattern.permute.xlu0 0
      %436 = vperm.xlu0 %435, %v401
      %v437 = vpop.permute.xlu0 %436
      %438 = vset.pattern.permute.xlu0 0
      %439 = vperm.xlu0 %438, %v402
      %v440 = vpop.permute.xlu0 %439
      %441 = vset.pattern.permute.xlu0 0
      %442 = vperm.xlu0 %441, %v403
      %v443 = vpop.permute.xlu0 %442
      %444 = vset.pattern.permute.xlu0 0
      %445 = vperm.xlu0 %444, %v404
      %v446 = vpop.permute.xlu0 %445
      %447 = vset.pattern.permute.xlu0 0
      %448 = vperm.xlu0 %447, %v405
      %v449 = vpop.permute.xlu0 %448
      %450 = vset.pattern.permute.xlu0 0
      %451 = vperm.xlu0 %450, %v406
      %v452 = vpop.permute.xlu0 %451
      %453 = vset.pattern.permute.xlu0 0
      %454 = vperm.xlu0 %453, %v407
      %v455 = vpop.permute.xlu0 %454
      %456 = vset.pattern.permute.xlu0 0
      %457 = vperm.xlu0 %456, %v408
      %v458 = vpop.permute.xlu0 %457
      %459 = vset.pattern.permute.xlu0 0
      %460 = vperm.xlu0 %459, %v409
      %v461 = vpop.permute.xlu0 %460
      %462 = vset.pattern.permute.xlu0 0
      %463 = vperm.xlu0 %462, %v410
      %v464 = vpop.permute.xlu0 %463
      %vm465 = vcmp.eq.s32.totalorder %v413, 1
      %vm466 = vcmp.eq.s32.totalorder %v416, 1
      %vm467 = vcmp.eq.s32.totalorder %v419, 1
      %vm468 = vcmp.eq.s32.totalorder %v422, 1
      %vm469 = vcmp.eq.s32.totalorder %v425, 1
      %vm470 = vcmp.eq.s32.totalorder %v428, 1
      %vm471 = vcmp.eq.s32.totalorder %v431, 1
      %vm472 = vcmp.eq.s32.totalorder %v434, 1
      %vm473 = vcmp.eq.s32.totalorder %v437, 1
      %vm474 = vcmp.eq.s32.totalorder %v440, 1
      %vm475 = vcmp.eq.s32.totalorder %v443, 1
      %vm476 = vcmp.eq.s32.totalorder %v446, 1
      %vm477 = vcmp.eq.s32.totalorder %v449, 1
      %vm478 = vcmp.eq.s32.totalorder %v452, 1
      %vm479 = vcmp.eq.s32.totalorder %v455, 1
      %vm480 = vcmp.eq.s32.totalorder %v458, 1
      %vm481 = vcmp.eq.s32.totalorder %v461, 1
      %vm482 = vcmp.eq.s32.totalorder %v464, 1
      %v483 = vld [vmem:[%s335] sm:$0xf]
      %v484 = vld [vmem:[%s335 + $0x4] sm:$0xf]
      %v485 = vld [vmem:[%s335 + $0x8] sm:$0xf]
      %v486 = vld [vmem:[%s335 + $0xc] sm:$0xf]
      %v487 = vld [vmem:[%s335 + $0x10] sm:$0xf]
      %v488 = vld [vmem:[%s335 + $0x14] sm:$0xf]
      %v489 = vld [vmem:[%s335 + $0x18] sm:$0xf]
      %v490 = vld [vmem:[%s335 + $0x1c] sm:$0xf]
      %v491 = vld [vmem:[%s335 + $0x20] sm:$0xf]
      %v492 = vld [vmem:[%s335 + $0x24] sm:$0xf]
      %v493 = vld [vmem:[%s335 + $0x28] sm:$0xf]
      %v494 = vld [vmem:[%s335 + $0x2c] sm:$0xf]
      %v495 = vld [vmem:[%s335 + $0x30] sm:$0xf]
      %v496 = vld [vmem:[%s335 + $0x34] sm:$0xf]
      %v497 = vld [vmem:[%s335 + $0x38] sm:$0xf]
      %v498 = vld [vmem:[%s335 + $0x3c] sm:$0xf]
      %v499 = vld [vmem:[%s335 + $0x40] sm:$0xf]
      %v500 = vld [vmem:[%s335 + $0x44] sm:$0xf]
      %v501 = vld [vmem:[%s2] sm:$0xf]
      %v502 = vld [vmem:[%s2 + $0x4] sm:$0xf]
      %v503 = vld [vmem:[%s2 + $0x8] sm:$0xf]
      %v504 = vld [vmem:[%s2 + $0xc] sm:$0xf]
      %v505 = vld [vmem:[%s2 + $0x10] sm:$0xf]
      %v506 = vld [vmem:[%s2 + $0x14] sm:$0xf]
      %v507 = vld [vmem:[%s2 + $0x18] sm:$0xf]
      %v508 = vld [vmem:[%s2 + $0x1c] sm:$0xf]
      %v509 = vld [vmem:[%s2 + $0x20] sm:$0xf]
      %v510 = vld [vmem:[%s2 + $0x24] sm:$0xf]
      %v511 = vld [vmem:[%s2 + $0x28] sm:$0xf]
      %v512 = vld [vmem:[%s2 + $0x2c] sm:$0xf]
      %v513 = vld [vmem:[%s5] sm:$0x1]
      %v514 = vlaneseq
      %v515 = vshrl.u32 %v514, 7
      %v516 = vsub.s32 0, %v515
      %v517 = vrot.slane %v513, %v516
      %v536 = vunpack.c.l.b16 %v483
      %v537 = vunpack.c.l.b16 %v484
      %v538 = vunpack.c.l.b16 %v485
      %v539 = vunpack.c.l.b16 %v486
      %v540 = vunpack.c.l.b16 %v487
      %v541 = vunpack.c.l.b16 %v488
      %v542 = vunpack.c.l.b16 %v489
      %v543 = vunpack.c.l.b16 %v490
      %v544 = vunpack.c.l.b16 %v491
      %v545 = vunpack.c.l.b16 %v492
      %v546 = vunpack.c.l.b16 %v493
      %v547 = vunpack.c.l.b16 %v494
      %v548 = vunpack.c.l.b16 %v495
      %v549 = vunpack.c.l.b16 %v496
      %v550 = vunpack.c.l.b16 %v497
      %v551 = vunpack.c.l.b16 %v498
      %v552 = vunpack.c.l.b16 %v499
      %v553 = vunpack.c.l.b16 %v500
      %v554 = vpack.c.b16 %v537, %v536
      %v555 = vpack.c.b16 %v539, %v538
      %v556 = vpack.c.b16 %v541, %v540
      %v557 = vpack.c.b16 %v543, %v542
      %v558 = vpack.c.b16 %v545, %v544
      %v559 = vpack.c.b16 %v547, %v546
      %v560 = vpack.c.b16 %v549, %v548
      %v561 = vpack.c.b16 %v551, %v550
      %v562 = vpack.c.b16 %v553, %v552
      %v575 = vunpack.c.l.b16 %v501
      %v576 = vunpack.c.l.b16 %v502
      %v577 = vunpack.c.l.b16 %v503
      %v578 = vunpack.c.l.b16 %v504
      %v579 = vunpack.c.l.b16 %v505
      %v580 = vunpack.c.l.b16 %v506
      %v581 = vunpack.c.l.b16 %v507
      %v582 = vunpack.c.l.b16 %v508
      %v583 = vunpack.c.l.b16 %v509
      %v584 = vunpack.c.l.b16 %v510
      %v585 = vunpack.c.l.b16 %v511
      %v586 = vunpack.c.l.b16 %v512
      %v587 = vpack.c.b16 %v576, %v575
      %v588 = vpack.c.b16 %v578, %v577
      %v589 = vpack.c.b16 %v580, %v579
      %v590 = vpack.c.b16 %v582, %v581
      %v591 = vpack.c.b16 %v584, %v583
      %v592 = vpack.c.b16 %v586, %v585
      %vm599 = vcmask 785408
      %v601 = vsel %vm599, %v554, 0
      %v604 = vsel %vm599, %v555, 0
      %v607 = vsel %vm599, %v556, 0
      %v610 = vsel %vm599, %v557, 0
      %v613 = vsel %vm599, %v558, 0
      %v616 = vsel %vm599, %v559, 0
      %v619 = vsel %vm599, %v560, 0
      %v622 = vsel %vm599, %v561, 0
      %v625 = vsel %vm599, %v562, 0
      %627 = vmatprep.subr.bf16.mxu0 0
      %628 = vmatpush1.bf16.msra.mxu0 %v587
      %629 = vmatprep.subr.bf16.mxu0 0
      %630 = vmatpush1.bf16.msra.mxu0 %v588
      %631 = vmatprep.subr.bf16.mxu0 0
      %632 = vmatpush1.bf16.msra.mxu0 %v589
      %633 = vmatprep.subr.bf16.mxu0 0
      %634 = vmatpush1.bf16.msra.mxu0 %v590
      %635 = vmatprep.subr.bf16.mxu0 0
      %636 = vmatpush1.bf16.msra.mxu0 %v591
      %637 = vmatprep.subr.bf16.mxu0 0
      %638 = vmatpush1.bf16.msra.mxu0 %v592
      %639 = vmatprep.subr.bf16.mxu0 0
      %640 = vmatpush1.bf16.msra.mxu0 0
      %641 = vmatprep.subr.bf16.mxu0 0
      %642 = vmatpush1.bf16.msra.mxu0 0
      %643 = vmatprep.subr.bf16.mxu0 0
      %644 = vmatpush1.bf16.msra.mxu0 0
      %645 = vmatprep.subr.bf16.mxu0 0
      %646 = vmatpush1.bf16.msra.mxu0 0
      %647 = vmatprep.subr.bf16.mxu0 0
      %648 = vmatpush1.bf16.msra.mxu0 0
      %649 = vmatprep.subr.bf16.mxu0 0
      %650 = vmatpush1.bf16.msra.mxu0 0
      %651 = vmatprep.subr.bf16.mxu0 0
      %652 = vmatpush1.bf16.msra.mxu0 0
      %653 = vmatprep.subr.bf16.mxu0 0
      %654 = vmatpush1.bf16.msra.mxu0 0
      %655 = vmatprep.subr.bf16.mxu0 0
      %656 = vmatpush1.bf16.msra.mxu0 0
      %657 = vmatprep.subr.bf16.mxu0 0
      %658 = vmatpush1.bf16.msra.mxu0 0
      %659 = vmatprep.mubr.bf16.mxu0 0
      %660 = vmatmul.mubr.bf16.gmra.mrb[0].mxu0 %v601
      %v661 = vpop.f32.mrb[0].mxu0
      %v662 = vadd.f32 %v517, %v661
      %v663 = vpop.f32.mrb[0].mxu0
      %v664 = vpop.f32.mrb[0].mxu0
      %v665 = vadd.f32 %v517, %v664
      %v666 = vpop.f32.mrb[0].mxu0
      %667 = vmatprep.mubr.bf16.mxu0 0
      %668 = vmatmul.mubr.bf16.gmra.mrb[0].mxu0 %v604
      %v669 = vpop.f32.mrb[0].mxu0
      %v670 = vadd.f32 %v517, %v669
      %v671 = vpop.f32.mrb[0].mxu0
      %v672 = vpop.f32.mrb[0].mxu0
      %v673 = vadd.f32 %v517, %v672
      %v674 = vpop.f32.mrb[0].mxu0
      %675 = vmatprep.mubr.bf16.mxu0 0
      %676 = vmatmul.mubr.bf16.gmra.mrb[0].mxu0 %v607
      %v677 = vpop.f32.mrb[0].mxu0
      %v678 = vadd.f32 %v517, %v677
      %v679 = vpop.f32.mrb[0].mxu0
      %v680 = vpop.f32.mrb[0].mxu0
      %v681 = vadd.f32 %v517, %v680
      %v682 = vpop.f32.mrb[0].mxu0
      %683 = vmatprep.mubr.bf16.mxu0 0
      %684 = vmatmul.mubr.bf16.gmra.mrb[0].mxu0 %v610
      %v685 = vpop.f32.mrb[0].mxu0
      %v686 = vadd.f32 %v517, %v685
      %v687 = vpop.f32.mrb[0].mxu0
      %v688 = vpop.f32.mrb[0].mxu0
      %v689 = vadd.f32 %v517, %v688
      %v690 = vpop.f32.mrb[0].mxu0
      %691 = vmatprep.mubr.bf16.mxu0 0
      %692 = vmatmul.mubr.bf16.gmra.mrb[0].mxu0 %v613
      %v693 = vpop.f32.mrb[0].mxu0
      %v694 = vadd.f32 %v517, %v693
      %v695 = vpop.f32.mrb[0].mxu0
      %v696 = vpop.f32.mrb[0].mxu0
      %v697 = vadd.f32 %v517, %v696
      %v698 = vpop.f32.mrb[0].mxu0
      %699 = vmatprep.mubr.bf16.mxu0 0
      %700 = vmatmul.mubr.bf16.gmra.mrb[0].mxu0 %v616
      %v701 = vpop.f32.mrb[0].mxu0
      %v702 = vadd.f32 %v517, %v701
      %v703 = vpop.f32.mrb[0].mxu0
      %v704 = vpop.f32.mrb[0].mxu0
      %v705 = vadd.f32 %v517, %v704
      %v706 = vpop.f32.mrb[0].mxu0
      %707 = vmatprep.mubr.bf16.mxu0 0
      %708 = vmatmul.mubr.bf16.gmra.mrb[0].mxu0 %v619
      %v709 = vpop.f32.mrb[0].mxu0
      %v710 = vadd.f32 %v517, %v709
      %v711 = vpop.f32.mrb[0].mxu0
      %v712 = vpop.f32.mrb[0].mxu0
      %v713 = vadd.f32 %v517, %v712
      %v714 = vpop.f32.mrb[0].mxu0
      %715 = vmatprep.mubr.bf16.mxu0 0
      %716 = vmatmul.mubr.bf16.gmra.mrb[0].mxu0 %v622
      %v717 = vpop.f32.mrb[0].mxu0
      %v718 = vadd.f32 %v517, %v717
      %v719 = vpop.f32.mrb[0].mxu0
      %v720 = vpop.f32.mrb[0].mxu0
      %v721 = vadd.f32 %v517, %v720
      %v722 = vpop.f32.mrb[0].mxu0
      %723 = vmatprep.mubr.bf16.mxu0 0
      %724 = vmatmul.mubr.bf16.gmra.mrb[0].mxu0 %v625
      %v725 = vpop.f32.mrb[0].mxu0
      %v726 = vadd.f32 %v517, %v725
      %v727 = vpop.f32.mrb[0].mxu0
      %v728 = vpop.f32.mrb[0].mxu0
      %v729 = vadd.f32 %v517, %v728
      %v730 = vpop.f32.mrb[0].mxu0
      %731 = vdwg.mxu0
      %v732 = vmax.f32 %v662, 0.0
      %v733 = vmax.f32 %v665, 0.0
      %v734 = vmax.f32 %v670, 0.0
      %v735 = vmax.f32 %v673, 0.0
      %v736 = vmax.f32 %v678, 0.0
      %v737 = vmax.f32 %v681, 0.0
      %v738 = vmax.f32 %v686, 0.0
      %v739 = vmax.f32 %v689, 0.0
      %v740 = vmax.f32 %v694, 0.0
      %v741 = vmax.f32 %v697, 0.0
      %v742 = vmax.f32 %v702, 0.0
      %v743 = vmax.f32 %v705, 0.0
      %v744 = vmax.f32 %v710, 0.0
      %v745 = vmax.f32 %v713, 0.0
      %v746 = vmax.f32 %v718, 0.0
      %v747 = vmax.f32 %v721, 0.0
      %v748 = vmax.f32 %v726, 0.0
      %v749 = vmax.f32 %v729, 0.0
      %v750 = vsel %vm465, %v732, 0.0
      %v751 = vsel %vm466, %v733, 0.0
      %v752 = vsel %vm467, %v734, 0.0
      %v753 = vsel %vm468, %v735, 0.0
      %v754 = vsel %vm469, %v736, 0.0
      %v755 = vsel %vm470, %v737, 0.0
      %v756 = vsel %vm471, %v738, 0.0
      %v757 = vsel %vm472, %v739, 0.0
      %v758 = vsel %vm473, %v740, 0.0
      %v759 = vsel %vm474, %v741, 0.0
      %v760 = vsel %vm475, %v742, 0.0
      %v761 = vsel %vm476, %v743, 0.0
      %v762 = vsel %vm477, %v744, 0.0
      %v763 = vsel %vm478, %v745, 0.0
      %v764 = vsel %vm479, %v746, 0.0
      %v765 = vsel %vm480, %v747, 0.0
      %v766 = vsel %vm481, %v748, 0.0
      %v767 = vsel %vm482, %v749, 0.0
      %v768 = vpack.c.bf16 %v751, %v750
      %v769 = vpack.c.bf16 %v753, %v752
      %v770 = vpack.c.bf16 %v755, %v754
      %v771 = vpack.c.bf16 %v757, %v756
      %v772 = vpack.c.bf16 %v759, %v758
      %v773 = vpack.c.bf16 %v761, %v760
      %v774 = vpack.c.bf16 %v763, %v762
      %v775 = vpack.c.bf16 %v765, %v764
      %v776 = vpack.c.bf16 %v767, %v766
      %vm777 = vsmask.f32 256
      %v779 = vshrl.u32 %v768, 16
      %v781 = vrot.slane %v779, 7
      %v782 = vshll.u32 %v768, 16
      %v784 = vor.u32 %v781, %v782
      %v786 = vshrl.u32 %v769, 16
      %v788 = vrot.slane %v786, 7
      %v789 = vshll.u32 %v769, 16
      %v791 = vor.u32 %v788, %v789
      %v792 = vsel %vm777, %v781, %v791
      %v794 = vshrl.u32 %v770, 16
      %v796 = vrot.slane %v794, 7
      %v797 = vshll.u32 %v770, 16
      %v799 = vor.u32 %v796, %v797
      %v800 = vsel %vm777, %v788, %v799
      %v802 = vshrl.u32 %v771, 16
      %v804 = vrot.slane %v802, 7
      %v805 = vshll.u32 %v771, 16
      %v807 = vor.u32 %v804, %v805
      %v808 = vsel %vm777, %v796, %v807
      %v810 = vshrl.u32 %v772, 16
      %v812 = vrot.slane %v810, 7
      %v813 = vshll.u32 %v772, 16
      %v815 = vor.u32 %v812, %v813
      %v816 = vsel %vm777, %v804, %v815
      %v818 = vshrl.u32 %v773, 16
      %v820 = vrot.slane %v818, 7
      %v821 = vshll.u32 %v773, 16
      %v823 = vor.u32 %v820, %v821
      %v824 = vsel %vm777, %v812, %v823
      %v826 = vshrl.u32 %v774, 16
      %v828 = vrot.slane %v826, 7
      %v829 = vshll.u32 %v774, 16
      %v831 = vor.u32 %v828, %v829
      %v832 = vsel %vm777, %v820, %v831
      %v834 = vshrl.u32 %v775, 16
      %v836 = vrot.slane %v834, 7
      %v837 = vshll.u32 %v775, 16
      %v839 = vor.u32 %v836, %v837
      %v840 = vsel %vm777, %v828, %v839
      %v842 = vshrl.u32 %v776, 16
      %v844 = vrot.slane %v842, 7
      %v845 = vshll.u32 %v776, 16
      %v847 = vor.u32 %v844, %v845
      %v848 = vsel %vm777, %v836, %v847
      %vm859 = vcmask 523264
      %vm860 = vsmask.f32 7938
      %vm861 = vmand %vm859, %vm860
      %v862 = vld [vmem:[#allocation2 + $0x20] sm:$0xff]
      %v863 = vsel %vm861, %v784, %v862
      %864 = vst [vmem:[#allocation2 + $0x20] sm:$0xff] %v863
      %865 = vst.msk [vmem:[#allocation2 + $0x30] sm:$0xff] %vm349, %v792
      %866 = vst.msk [vmem:[#allocation2 + $0x40] sm:$0xff] %vm349, %v800
      %867 = vst.msk [vmem:[#allocation2 + $0x50] sm:$0xff] %vm349, %v808
      %868 = vst.msk [vmem:[#allocation2 + $0x60] sm:$0xff] %vm349, %v816
      %869 = vst.msk [vmem:[#allocation2 + $0x70] sm:$0xff] %vm349, %v824
      %870 = vst.msk [vmem:[#allocation2 + $0x80] sm:$0xff] %vm349, %v832
      %871 = vst.msk [vmem:[#allocation2 + $0x90] sm:$0xff] %vm349, %v840
      %872 = vst.msk [vmem:[#allocation2 + $0xa0] sm:$0xff] %vm349, %v848
      %vm873 = vcmask 516096
      %vm874 = vmand %vm873, %vm777
      %v875 = vld [vmem:[#allocation2 + $0xb0] sm:$0x1]
      %v876 = vsel %vm874, %v844, %v875
      %877 = vst [vmem:[#allocation2 + $0xb0] sm:$0x1] %v876
      %887 = vrot.lane.b32.xlu0 %v768, 64
      %v888 = vpop.permute.xlu0 %887
      %889 = vrot.lane.b32.xlu0 %v769, 64
      %v890 = vpop.permute.xlu0 %889
      %891 = vrot.lane.b32.xlu0 %v770, 64
      %v892 = vpop.permute.xlu0 %891
      %893 = vrot.lane.b32.xlu0 %v771, 64
      %v894 = vpop.permute.xlu0 %893
      %895 = vrot.lane.b32.xlu0 %v772, 64
      %v896 = vpop.permute.xlu0 %895
      %897 = vrot.lane.b32.xlu0 %v773, 64
      %v898 = vpop.permute.xlu0 %897
      %899 = vrot.lane.b32.xlu0 %v774, 64
      %v900 = vpop.permute.xlu0 %899
      %901 = vrot.lane.b32.xlu0 %v775, 64
      %v902 = vpop.permute.xlu0 %901
      %903 = vrot.lane.b32.xlu0 %v776, 64
      %v904 = vpop.permute.xlu0 %903
      %vm914 = vcmask 1048064
      %915 = vst.msk [vmem:[#allocation2 + $0x20] sm:$0xff] %vm914, %v888
      %916 = vst.msk [vmem:[#allocation2 + $0x30] sm:$0xff] %vm914, %v890
      %917 = vst.msk [vmem:[#allocation2 + $0x40] sm:$0xff] %vm914, %v892
      %918 = vst.msk [vmem:[#allocation2 + $0x50] sm:$0xff] %vm914, %v894
      %919 = vst.msk [vmem:[#allocation2 + $0x60] sm:$0xff] %vm914, %v896
      %920 = vst.msk [vmem:[#allocation2 + $0x70] sm:$0xff] %vm914, %v898
      %921 = vst.msk [vmem:[#allocation2 + $0x80] sm:$0xff] %vm914, %v900
      %922 = vst.msk [vmem:[#allocation2 + $0x90] sm:$0xff] %vm914, %v902
      %923 = vst.msk [vmem:[#allocation2 + $0xa0] sm:$0xff] %vm914, %v904
      %vm924 = vsmask.f32 7424
      %v925 = vrot.slane %v782, 1
      %v926 = vor.u32 %v779, %v925
      %v927 = vrot.slane %v789, 1
      %v928 = vsel %vm924, %v926, %v927
      %v929 = vor.u32 %v786, %v927
      %v930 = vrot.slane %v797, 1
      %v931 = vsel %vm924, %v929, %v930
      %v932 = vor.u32 %v794, %v930
      %v933 = vrot.slane %v805, 1
      %v934 = vsel %vm924, %v932, %v933
      %v935 = vor.u32 %v802, %v933
      %v936 = vrot.slane %v813, 1
      %v937 = vsel %vm924, %v935, %v936
      %v938 = vor.u32 %v810, %v936
      %v939 = vrot.slane %v821, 1
      %v940 = vsel %vm924, %v938, %v939
      %v941 = vor.u32 %v818, %v939
      %v942 = vrot.slane %v829, 1
      %v943 = vsel %vm924, %v941, %v942
      %v944 = vor.u32 %v826, %v942
      %v945 = vrot.slane %v837, 1
      %v946 = vsel %vm924, %v944, %v945
      %v947 = vor.u32 %v834, %v945
      %v948 = vrot.slane %v845, 1
      %v949 = vsel %vm924, %v947, %v948
      %v950 = vor.u32 %v842, %v948
      %vm961 = vcmask 523271
      %vm962 = vsmask.f32 7966
      %vm963 = vmand %vm961, %vm962
      %v964 = vld [vmem:[#allocation2 + $0x18] sm:$0x80]
      %v965 = vsel %vm963, %v925, %v964
      %966 = vst [vmem:[#allocation2 + $0x18] sm:$0x80] %v965
      %967 = vst.msk [vmem:[#allocation2 + $0x28] sm:$0xff] %vm349, %v928
      %968 = vst.msk [vmem:[#allocation2 + $0x38] sm:$0xff] %vm349, %v931
      %969 = vst.msk [vmem:[#allocation2 + $0x48] sm:$0xff] %vm349, %v934
      %970 = vst.msk [vmem:[#allocation2 + $0x58] sm:$0xff] %vm349, %v937
      %971 = vst.msk [vmem:[#allocation2 + $0x68] sm:$0xff] %vm349, %v940
      %972 = vst.msk [vmem:[#allocation2 + $0x78] sm:$0xff] %vm349, %v943
      %973 = vst.msk [vmem:[#allocation2 + $0x88] sm:$0xff] %vm349, %v946
      %974 = vst.msk [vmem:[#allocation2 + $0x98] sm:$0xff] %vm349, %v949
      %vm975 = vmand %vm859, %vm924
      %v976 = vld [vmem:[#allocation2 + $0xa8] sm:$0xff]
      %v977 = vsel %vm975, %v950, %v976
      %978 = vst [vmem:[#allocation2 + $0xa8] sm:$0xff] %v977
      %v979 = vld [vmem:[#allocation2 + $0x10] sm:$0xfc]
      %v980 = vld [vmem:[#allocation2 + $0x18] sm:$0xfc]
      %v981 = vld [vmem:[#allocation2 + $0x20] sm:$0xff]
      %v982 = vld [vmem:[#allocation2 + $0x28] sm:$0xff]
      %v983 = vld [vmem:[#allocation2 + $0x30] sm:$0xff]
      %v984 = vld [vmem:[#allocation2 + $0x38] sm:$0xff]
      %v985 = vld [vmem:[#allocation2 + $0x40] sm:$0xff]
      %v986 = vld [vmem:[#allocation2 + $0x48] sm:$0xff]
      %v987 = vld [vmem:[#allocation2 + $0x50] sm:$0xff]
      %v988 = vld [vmem:[#allocation2 + $0x58] sm:$0xff]
      %v989 = vld [vmem:[#allocation2 + $0x60] sm:$0xff]
      %v990 = vld [vmem:[#allocation2 + $0x68] sm:$0xff]
      %v991 = vld [vmem:[#allocation2 + $0x70] sm:$0xff]
      %v992 = vld [vmem:[#allocation2 + $0x78] sm:$0xff]
      %v993 = vld [vmem:[#allocation2 + $0x80] sm:$0xff]
      %v994 = vld [vmem:[#allocation2 + $0x88] sm:$0xff]
      %v995 = vld [vmem:[#allocation2 + $0x90] sm:$0xff]
      %v996 = vld [vmem:[#allocation2 + $0x98] sm:$0xff]
      %v997 = vld [vmem:[#allocation2 + $0xa0] sm:$0x3]
      %v998 = vld [vmem:[#allocation2 + $0xa8] sm:$0x3]
      %v999 = vld [vmem:[%s3] sm:$0xf]
      %v1000 = vld [vmem:[%s3 + $0x4] sm:$0xf]
      %v1001 = vld [vmem:[%s3 + $0x8] sm:$0xf]
      %v1002 = vld [vmem:[%s3 + $0xc] sm:$0xf]
      %v1003 = vld [vmem:[%s3 + $0x10] sm:$0xf]
      %v1004 = vld [vmem:[%s3 + $0x14] sm:$0xf]
      %v1005 = vld [vmem:[%s3 + $0x18] sm:$0xf]
      %v1006 = vld [vmem:[%s3 + $0x1c] sm:$0xf]
      %v1007 = vld [vmem:[%s3 + $0x20] sm:$0xf]
      %v1008 = vld [vmem:[%s3 + $0x24] sm:$0xf]
      %v1009 = vld [vmem:[%s3 + $0x28] sm:$0xf]
      %v1010 = vld [vmem:[%s3 + $0x2c] sm:$0xf]
      %v1011 = vld [vmem:[%s3 + $0x30] sm:$0xf]
      %v1012 = vld [vmem:[%s3 + $0x34] sm:$0xf]
      %v1013 = vld [vmem:[%s3 + $0x38] sm:$0xf]
      %v1014 = vld [vmem:[%s3 + $0x3c] sm:$0xf]
      %v1015 = vld [vmem:[%s3 + $0x40] sm:$0xf]
      %v1016 = vld [vmem:[%s3 + $0x44] sm:$0xf]
      %v1017 = vld [vmem:[%s3 + $0x48] sm:$0xf]
      %v1018 = vld [vmem:[%s3 + $0x4c] sm:$0xf]
      %v1019 = vld [vmem:[%s3 + $0x50] sm:$0xf]
      %v1020 = vld [vmem:[%s3 + $0x54] sm:$0xf]
      %v1021 = vld [vmem:[%s3 + $0x58] sm:$0xf]
      %v1022 = vld [vmem:[%s3 + $0x5c] sm:$0xf]
      %v1023 = vld [vmem:[#allocation2 + $0xa0] sm:$0xff]
      %v1024 = vld [vmem:[#allocation2 + $0xa8] sm:$0xff]
      %v1025 = vld [vmem:[%s3 + $0x60] sm:$0xf]
      %v1026 = vld [vmem:[%s3 + $0x64] sm:$0xf]
      %v1027 = vld [vmem:[%s3 + $0x68] sm:$0xf]
      %v1028 = vld [vmem:[%s3 + $0x6c] sm:$0xf]
      %v1029 = vld [vmem:[%s3 + $0x70] sm:$0xf]
      %v1030 = vld [vmem:[%s3 + $0x74] sm:$0xf]
      %v1031 = vld [vmem:[%s3 + $0x78] sm:$0xf]
      %v1032 = vld [vmem:[%s3 + $0x7c] sm:$0xf]
      %v1033 = vld [vmem:[%s3 + $0x80] sm:$0xf]
      %v1034 = vld [vmem:[%s3 + $0x84] sm:$0xf]
      %v1035 = vld [vmem:[%s3 + $0x88] sm:$0xf]
      %v1036 = vld [vmem:[%s3 + $0x8c] sm:$0xf]
      %v1037 = vld [vmem:[%s3 + $0x90] sm:$0xf]
      %v1038 = vld [vmem:[%s3 + $0x94] sm:$0xf]
      %v1039 = vld [vmem:[%s3 + $0x98] sm:$0xf]
      %v1040 = vld [vmem:[%s3 + $0x9c] sm:$0xf]
      %v1041 = vld [vmem:[%s3 + $0xa0] sm:$0xf]
      %v1042 = vld [vmem:[%s3 + $0xa4] sm:$0xf]
      %v1043 = vld [vmem:[%s3 + $0xa8] sm:$0xf]
      %v1044 = vld [vmem:[%s3 + $0xac] sm:$0xf]
      %v1045 = vld [vmem:[%s3 + $0xb0] sm:$0xf]
      %v1046 = vld [vmem:[%s3 + $0xb4] sm:$0xf]
      %v1047 = vld [vmem:[%s3 + $0xb8] sm:$0xf]
      %v1048 = vld [vmem:[%s3 + $0xbc] sm:$0xf]
      %v1073 = vunpack.c.l.b16 %v1025
      %v1074 = vunpack.c.l.b16 %v1026
      %v1075 = vunpack.c.l.b16 %v1027
      %v1076 = vunpack.c.l.b16 %v1028
      %v1077 = vunpack.c.l.b16 %v1029
      %v1078 = vunpack.c.l.b16 %v1030
      %v1079 = vunpack.c.l.b16 %v1031
      %v1080 = vunpack.c.l.b16 %v1032
      %v1081 = vunpack.c.l.b16 %v1033
      %v1082 = vunpack.c.l.b16 %v1034
      %v1083 = vunpack.c.l.b16 %v1035
      %v1084 = vunpack.c.l.b16 %v1036
      %v1085 = vunpack.c.l.b16 %v1037
      %v1086 = vunpack.c.l.b16 %v1038
      %v1087 = vunpack.c.l.b16 %v1039
      %v1088 = vunpack.c.l.b16 %v1040
      %v1089 = vunpack.c.l.b16 %v1041
      %v1090 = vunpack.c.l.b16 %v1042
      %v1091 = vunpack.c.l.b16 %v1043
      %v1092 = vunpack.c.l.b16 %v1044
      %v1093 = vunpack.c.l.b16 %v1045
      %v1094 = vunpack.c.l.b16 %v1046
      %v1095 = vunpack.c.l.b16 %v1047
      %v1096 = vunpack.c.l.b16 %v1048
      %v1097 = vpack.c.b16 %v1074, %v1073
      %v1098 = vpack.c.b16 %v1076, %v1075
      %v1099 = vpack.c.b16 %v1078, %v1077
      %v1100 = vpack.c.b16 %v1080, %v1079
      %v1101 = vpack.c.b16 %v1082, %v1081
      %v1102 = vpack.c.b16 %v1084, %v1083
      %v1103 = vpack.c.b16 %v1086, %v1085
      %v1104 = vpack.c.b16 %v1088, %v1087
      %v1105 = vpack.c.b16 %v1090, %v1089
      %v1106 = vpack.c.b16 %v1092, %v1091
      %v1107 = vpack.c.b16 %v1094, %v1093
      %v1108 = vpack.c.b16 %v1096, %v1095
      %v1122 = vsel %vm349, %v982, 0
      %v1125 = vsel %vm349, %v984, 0
      %v1128 = vsel %vm349, %v986, 0
      %v1131 = vsel %vm349, %v988, 0
      %v1134 = vsel %vm349, %v990, 0
      %v1137 = vsel %vm349, %v992, 0
      %v1140 = vsel %vm349, %v994, 0
      %v1143 = vsel %vm349, %v996, 0
      %v1146 = vsel %vm349, %v1024, 0
      %1148 = vmatprep.subr.bf16.mxu0 0
      %1149 = vmatpush1.bf16.msra.mxu0 %v1097
      %1150 = vmatprep.subr.bf16.mxu0 0
      %1151 = vmatpush1.bf16.msra.mxu0 %v1098
      %1152 = vmatprep.subr.bf16.mxu0 0
      %1153 = vmatpush1.bf16.msra.mxu0 %v1099
      %1154 = vmatprep.subr.bf16.mxu0 0
      %1155 = vmatpush1.bf16.msra.mxu0 %v1100
      %1156 = vmatprep.subr.bf16.mxu0 0
      %1157 = vmatpush1.bf16.msra.mxu0 %v1101
      %1158 = vmatprep.subr.bf16.mxu0 0
      %1159 = vmatpush1.bf16.msra.mxu0 %v1102
      %1160 = vmatprep.subr.bf16.mxu0 0
      %1161 = vmatpush1.bf16.msra.mxu0 %v1103
      %1162 = vmatprep.subr.bf16.mxu0 0
      %1163 = vmatpush1.bf16.msra.mxu0 %v1104
      %1164 = vmatprep.subr.bf16.mxu0 0
      %1165 = vmatpush1.bf16.msra.mxu0 %v1105
      %1166 = vmatprep.subr.bf16.mxu0 0
      %1167 = vmatpush1.bf16.msra.mxu0 %v1106
      %1168 = vmatprep.subr.bf16.mxu0 0
      %1169 = vmatpush1.bf16.msra.mxu0 %v1107
      %1170 = vmatprep.subr.bf16.mxu0 0
      %1171 = vmatpush1.bf16.msra.mxu0 %v1108
      %1172 = vmatprep.subr.bf16.mxu0 0
      %1173 = vmatpush1.bf16.msra.mxu0 0
      %1174 = vmatprep.subr.bf16.mxu0 0
      %1175 = vmatpush1.bf16.msra.mxu0 0
      %1176 = vmatprep.subr.bf16.mxu0 0
      %1177 = vmatpush1.bf16.msra.mxu0 0
      %1178 = vmatprep.subr.bf16.mxu0 0
      %1179 = vmatpush1.bf16.msra.mxu0 0
      %1180 = vmatprep.mubr.bf16.mxu0 %v1122
      %1181 = vmatmul.mubr.bf16.gmra.mrb[0].mxu0 %v981
      %v1182 = vpop.f32.mrb[0].mxu0
      %v1183 = vadd.f32 0.0, %v1182
      %v1184 = vpop.f32.mrb[0].mxu0
      %v1185 = vpop.f32.mrb[0].mxu0
      %v1186 = vadd.f32 0.0, %v1185
      %v1187 = vpop.f32.mrb[0].mxu0
      %1188 = vmatprep.mubr.bf16.mxu0 %v1125
      %1189 = vmatmul.mubr.bf16.gmra.mrb[0].mxu0 %v983
      %v1190 = vpop.f32.mrb[0].mxu0
      %v1191 = vadd.f32 0.0, %v1190
      %v1192 = vpop.f32.mrb[0].mxu0
      %v1193 = vpop.f32.mrb[0].mxu0
      %v1194 = vadd.f32 0.0, %v1193
      %v1195 = vpop.f32.mrb[0].mxu0
      %1196 = vmatprep.mubr.bf16.mxu0 %v1128
      %1197 = vmatmul.mubr.bf16.gmra.mrb[0].mxu0 %v985
      %v1198 = vpop.f32.mrb[0].mxu0
      %v1199 = vadd.f32 0.0, %v1198
      %v1200 = vpop.f32.mrb[0].mxu0
      %v1201 = vpop.f32.mrb[0].mxu0
      %v1202 = vadd.f32 0.0, %v1201
      %v1203 = vpop.f32.mrb[0].mxu0
      %1204 = vmatprep.mubr.bf16.mxu0 %v1131
      %1205 = vmatmul.mubr.bf16.gmra.mrb[0].mxu0 %v987
      %v1206 = vpop.f32.mrb[0].mxu0
      %v1207 = vadd.f32 0.0, %v1206
      %v1208 = vpop.f32.mrb[0].mxu0
      %v1209 = vpop.f32.mrb[0].mxu0
      %v1210 = vadd.f32 0.0, %v1209
      %v1211 = vpop.f32.mrb[0].mxu0
      %1212 = vmatprep.mubr.bf16.mxu0 %v1134
      %1213 = vmatmul.mubr.bf16.gmra.mrb[0].mxu0 %v989
      %v1214 = vpop.f32.mrb[0].mxu0
      %v1215 = vadd.f32 0.0, %v1214
      %v1216 = vpop.f32.mrb[0].mxu0
      %v1217 = vpop.f32.mrb[0].mxu0
      %v1218 = vadd.f32 0.0, %v1217
      %v1219 = vpop.f32.mrb[0].mxu0
      %1220 = vmatprep.mubr.bf16.mxu0 %v1137
      %1221 = vmatmul.mubr.bf16.gmra.mrb[0].mxu0 %v991
      %v1222 = vpop.f32.mrb[0].mxu0
      %v1223 = vadd.f32 0.0, %v1222
      %v1224 = vpop.f32.mrb[0].mxu0
      %v1225 = vpop.f32.mrb[0].mxu0
      %v1226 = vadd.f32 0.0, %v1225
      %v1227 = vpop.f32.mrb[0].mxu0
      %1228 = vmatprep.mubr.bf16.mxu0 %v1140
      %1229 = vmatmul.mubr.bf16.gmra.mrb[0].mxu0 %v993
      %v1230 = vpop.f32.mrb[0].mxu0
      %v1231 = vadd.f32 0.0, %v1230
      %v1232 = vpop.f32.mrb[0].mxu0
      %v1233 = vpop.f32.mrb[0].mxu0
      %v1234 = vadd.f32 0.0, %v1233
      %v1235 = vpop.f32.mrb[0].mxu0
      %1236 = vmatprep.mubr.bf16.mxu0 %v1143
      %1237 = vmatmul.mubr.bf16.gmra.mrb[0].mxu0 %v995
      %v1238 = vpop.f32.mrb[0].mxu0
      %v1239 = vadd.f32 0.0, %v1238
      %v1240 = vpop.f32.mrb[0].mxu0
      %v1241 = vpop.f32.mrb[0].mxu0
      %v1242 = vadd.f32 0.0, %v1241
      %v1243 = vpop.f32.mrb[0].mxu0
      %1244 = vmatprep.mubr.bf16.mxu0 %v1146
      %1245 = vmatmul.mubr.bf16.gmra.mrb[0].mxu0 %v1023
      %v1246 = vpop.f32.mrb[0].mxu0
      %v1247 = vadd.f32 0.0, %v1246
      %v1248 = vpop.f32.mrb[0].mxu0
      %v1249 = vpop.f32.mrb[0].mxu0
      %v1250 = vadd.f32 0.0, %v1249
      %v1251 = vpop.f32.mrb[0].mxu0
      %1252 = vdwg.mxu0
      %vm1273 = vcmask 1045504
      %v1274 = vrot.slane %v979, 2
      %v1275 = vrot.slane %v981, 2
      %v1276 = vsel %vm1273, %v1274, %v1275
      %v1277 = vrot.slane %v980, 2
      %v1278 = vrot.slane %v982, 2
      %v1279 = vsel %vm1273, %v1277, %v1278
      %v1280 = vrot.slane %v983, 2
      %v1281 = vsel %vm1273, %v1275, %v1280
      %v1282 = vrot.slane %v984, 2
      %v1283 = vsel %vm1273, %v1278, %v1282
      %v1284 = vrot.slane %v985, 2
      %v1285 = vsel %vm1273, %v1280, %v1284
      %v1286 = vrot.slane %v986, 2
      %v1287 = vsel %vm1273, %v1282, %v1286
      %v1288 = vrot.slane %v987, 2
      %v1289 = vsel %vm1273, %v1284, %v1288
      %v1290 = vrot.slane %v988, 2
      %v1291 = vsel %vm1273, %v1286, %v1290
      %v1292 = vrot.slane %v989, 2
      %v1293 = vsel %vm1273, %v1288, %v1292
      %v1294 = vrot.slane %v990, 2
      %v1295 = vsel %vm1273, %v1290, %v1294
      %v1296 = vrot.slane %v991, 2
      %v1297 = vsel %vm1273, %v1292, %v1296
      %v1298 = vrot.slane %v992, 2
      %v1299 = vsel %vm1273, %v1294, %v1298
      %v1300 = vrot.slane %v993, 2
      %v1301 = vsel %vm1273, %v1296, %v1300
      %v1302 = vrot.slane %v994, 2
      %v1303 = vsel %vm1273, %v1298, %v1302
      %v1304 = vrot.slane %v995, 2
      %v1305 = vsel %vm1273, %v1300, %v1304
      %v1306 = vrot.slane %v996, 2
      %v1307 = vsel %vm1273, %v1302, %v1306
      %v1308 = vrot.slane %v997, 2
      %v1309 = vsel %vm1273, %v1304, %v1308
      %v1310 = vrot.slane %v998, 2
      %v1311 = vsel %vm1273, %v1306, %v1310
      %v1345 = vunpack.c.l.b16 %v999
      %v1346 = vunpack.c.l.b16 %v1000
      %v1347 = vunpack.c.l.b16 %v1001
      %v1348 = vunpack.c.l.b16 %v1002
      %v1349 = vunpack.c.l.b16 %v1003
      %v1350 = vunpack.c.l.b16 %v1004
      %v1351 = vunpack.c.l.b16 %v1005
      %v1352 = vunpack.c.l.b16 %v1006
      %v1353 = vunpack.c.l.b16 %v1007
      %v1354 = vunpack.c.l.b16 %v1008
      %v1355 = vunpack.c.l.b16 %v1009
      %v1356 = vunpack.c.l.b16 %v1010
      %v1357 = vunpack.c.l.b16 %v1011
      %v1358 = vunpack.c.l.b16 %v1012
      %v1359 = vunpack.c.l.b16 %v1013
      %v1360 = vunpack.c.l.b16 %v1014
      %v1361 = vunpack.c.l.b16 %v1015
      %v1362 = vunpack.c.l.b16 %v1016
      %v1363 = vunpack.c.l.b16 %v1017
      %v1364 = vunpack.c.l.b16 %v1018
      %v1365 = vunpack.c.l.b16 %v1019
      %v1366 = vunpack.c.l.b16 %v1020
      %v1367 = vunpack.c.l.b16 %v1021
      %v1368 = vunpack.c.l.b16 %v1022
      %v1369 = vpack.c.b16 %v1346, %v1345
      %v1370 = vpack.c.b16 %v1348, %v1347
      %v1371 = vpack.c.b16 %v1350, %v1349
      %v1372 = vpack.c.b16 %v1352, %v1351
      %v1373 = vpack.c.b16 %v1354, %v1353
      %v1374 = vpack.c.b16 %v1356, %v1355
      %v1375 = vpack.c.b16 %v1358, %v1357
      %v1376 = vpack.c.b16 %v1360, %v1359
      %v1377 = vpack.c.b16 %v1362, %v1361
      %v1378 = vpack.c.b16 %v1364, %v1363
      %v1379 = vpack.c.b16 %v1366, %v1365
      %v1380 = vpack.c.b16 %v1368, %v1367
      %v1394 = vsel %vm349, %v1279, 0
      %v1397 = vsel %vm349, %v1283, 0
      %v1400 = vsel %vm349, %v1287, 0
      %v1403 = vsel %vm349, %v1291, 0
      %v1406 = vsel %vm349, %v1295, 0
      %v1409 = vsel %vm349, %v1299, 0
      %v1412 = vsel %vm349, %v1303, 0
      %v1415 = vsel %vm349, %v1307, 0
      %v1418 = vsel %vm349, %v1311, 0
      %1420 = vmatprep.subr.bf16.mxu0 0
      %1421 = vmatpush1.bf16.msra.mxu0 %v1369
      %1422 = vmatprep.subr.bf16.mxu0 0
      %1423 = vmatpush1.bf16.msra.mxu0 %v1370
      %1424 = vmatprep.subr.bf16.mxu0 0
      %1425 = vmatpush1.bf16.msra.mxu0 %v1371
      %1426 = vmatprep.subr.bf16.mxu0 0
      %1427 = vmatpush1.bf16.msra.mxu0 %v1372
      %1428 = vmatprep.subr.bf16.mxu0 0
      %1429 = vmatpush1.bf16.msra.mxu0 %v1373
      %1430 = vmatprep.subr.bf16.mxu0 0
      %1431 = vmatpush1.bf16.msra.mxu0 %v1374
      %1432 = vmatprep.subr.bf16.mxu0 0
      %1433 = vmatpush1.bf16.msra.mxu0 %v1375
      %1434 = vmatprep.subr.bf16.mxu0 0
      %1435 = vmatpush1.bf16.msra.mxu0 %v1376
      %1436 = vmatprep.subr.bf16.mxu0 0
      %1437 = vmatpush1.bf16.msra.mxu0 %v1377
      %1438 = vmatprep.subr.bf16.mxu0 0
      %1439 = vmatpush1.bf16.msra.mxu0 %v1378
      %1440 = vmatprep.subr.bf16.mxu0 0
      %1441 = vmatpush1.bf16.msra.mxu0 %v1379
      %1442 = vmatprep.subr.bf16.mxu0 0
      %1443 = vmatpush1.bf16.msra.mxu0 %v1380
      %1444 = vmatprep.subr.bf16.mxu0 0
      %1445 = vmatpush1.bf16.msra.mxu0 0
      %1446 = vmatprep.subr.bf16.mxu0 0
      %1447 = vmatpush1.bf16.msra.mxu0 0
      %1448 = vmatprep.subr.bf16.mxu0 0
      %1449 = vmatpush1.bf16.msra.mxu0 0
      %1450 = vmatprep.subr.bf16.mxu0 0
      %1451 = vmatpush1.bf16.msra.mxu0 0
      %1452 = vmatprep.mubr.bf16.mxu0 %v1394
      %1453 = vmatmul.mubr.bf16.gmra.mrb[0].mxu0 %v1276
      %v1454 = vpop.f32.mrb[0].mxu0
      %v1455 = vadd.f32 %v1183, %v1454
      %v1456 = vpop.f32.mrb[0].mxu0
      %v1457 = vpop.f32.mrb[0].mxu0
      %v1458 = vadd.f32 %v1186, %v1457
      %v1459 = vpop.f32.mrb[0].mxu0
      %1460 = vmatprep.mubr.bf16.mxu0 %v1397
      %1461 = vmatmul.mubr.bf16.gmra.mrb[0].mxu0 %v1281
      %v1462 = vpop.f32.mrb[0].mxu0
      %v1463 = vadd.f32 %v1191, %v1462
      %v1464 = vpop.f32.mrb[0].mxu0
      %v1465 = vpop.f32.mrb[0].mxu0
      %v1466 = vadd.f32 %v1194, %v1465
      %v1467 = vpop.f32.mrb[0].mxu0
      %1468 = vmatprep.mubr.bf16.mxu0 %v1400
      %1469 = vmatmul.mubr.bf16.gmra.mrb[0].mxu0 %v1285
      %v1470 = vpop.f32.mrb[0].mxu0
      %v1471 = vadd.f32 %v1199, %v1470
      %v1472 = vpop.f32.mrb[0].mxu0
      %v1473 = vpop.f32.mrb[0].mxu0
      %v1474 = vadd.f32 %v1202, %v1473
      %v1475 = vpop.f32.mrb[0].mxu0
      %1476 = vmatprep.mubr.bf16.mxu0 %v1403
      %1477 = vmatmul.mubr.bf16.gmra.mrb[0].mxu0 %v1289
      %v1478 = vpop.f32.mrb[0].mxu0
      %v1479 = vadd.f32 %v1207, %v1478
      %v1480 = vpop.f32.mrb[0].mxu0
      %v1481 = vpop.f32.mrb[0].mxu0
      %v1482 = vadd.f32 %v1210, %v1481
      %v1483 = vpop.f32.mrb[0].mxu0
      %1484 = vmatprep.mubr.bf16.mxu0 %v1406
      %1485 = vmatmul.mubr.bf16.gmra.mrb[0].mxu0 %v1293
      %v1486 = vpop.f32.mrb[0].mxu0
      %v1487 = vadd.f32 %v1215, %v1486
      %v1488 = vpop.f32.mrb[0].mxu0
      %v1489 = vpop.f32.mrb[0].mxu0
      %v1490 = vadd.f32 %v1218, %v1489
      %v1491 = vpop.f32.mrb[0].mxu0
      %1492 = vmatprep.mubr.bf16.mxu0 %v1409
      %1493 = vmatmul.mubr.bf16.gmra.mrb[0].mxu0 %v1297
      %v1494 = vpop.f32.mrb[0].mxu0
      %v1495 = vadd.f32 %v1223, %v1494
      %v1496 = vpop.f32.mrb[0].mxu0
      %v1497 = vpop.f32.mrb[0].mxu0
      %v1498 = vadd.f32 %v1226, %v1497
      %v1499 = vpop.f32.mrb[0].mxu0
      %1500 = vmatprep.mubr.bf16.mxu0 %v1412
      %1501 = vmatmul.mubr.bf16.gmra.mrb[0].mxu0 %v1301
      %v1502 = vpop.f32.mrb[0].mxu0
      %v1503 = vadd.f32 %v1231, %v1502
      %v1504 = vpop.f32.mrb[0].mxu0
      %v1505 = vpop.f32.mrb[0].mxu0
      %v1506 = vadd.f32 %v1234, %v1505
      %v1507 = vpop.f32.mrb[0].mxu0
      %1508 = vmatprep.mubr.bf16.mxu0 %v1415
      %1509 = vmatmul.mubr.bf16.gmra.mrb[0].mxu0 %v1305
      %v1510 = vpop.f32.mrb[0].mxu0
      %v1511 = vadd.f32 %v1239, %v1510
      %v1512 = vpop.f32.mrb[0].mxu0
      %v1513 = vpop.f32.mrb[0].mxu0
      %v1514 = vadd.f32 %v1242, %v1513
      %v1515 = vpop.f32.mrb[0].mxu0
      %1516 = vmatprep.mubr.bf16.mxu0 %v1418
      %1517 = vmatmul.mubr.bf16.gmra.mrb[0].mxu0 %v1309
      %v1518 = vpop.f32.mrb[0].mxu0
      %v1519 = vadd.f32 %v1247, %v1518
      %v1520 = vpop.f32.mrb[0].mxu0
      %v1521 = vpop.f32.mrb[0].mxu0
      %v1522 = vadd.f32 %v1250, %v1521
      %v1523 = vpop.f32.mrb[0].mxu0
      %1524 = vdwg.mxu0
      %v1525 = vld [vmem:[#allocation2 + $0x20] sm:$0xc0]
      %v1526 = vld [vmem:[#allocation2 + $0x28] sm:$0xc0]
      %v1527 = vld [vmem:[#allocation2 + $0x30] sm:$0xff]
      %v1528 = vld [vmem:[#allocation2 + $0x38] sm:$0xff]
      %v1529 = vld [vmem:[#allocation2 + $0x40] sm:$0xff]
      %v1530 = vld [vmem:[#allocation2 + $0x48] sm:$0xff]
      %v1531 = vld [vmem:[#allocation2 + $0x50] sm:$0xff]
      %v1532 = vld [vmem:[#allocation2 + $0x58] sm:$0xff]
      %v1533 = vld [vmem:[#allocation2 + $0x60] sm:$0xff]
      %v1534 = vld [vmem:[#allocation2 + $0x68] sm:$0xff]
      %v1535 = vld [vmem:[#allocation2 + $0x70] sm:$0xff]
      %v1536 = vld [vmem:[#allocation2 + $0x78] sm:$0xff]
      %v1537 = vld [vmem:[#allocation2 + $0x80] sm:$0xff]
      %v1538 = vld [vmem:[#allocation2 + $0x88] sm:$0xff]
      %v1539 = vld [vmem:[#allocation2 + $0x90] sm:$0xff]
      %v1540 = vld [vmem:[#allocation2 + $0x98] sm:$0xff]
      %v1541 = vld [vmem:[#allocation2 + $0xa0] sm:$0xff]
      %v1542 = vld [vmem:[#allocation2 + $0xa8] sm:$0xff]
      %v1543 = vld [vmem:[#allocation2 + $0xb0] sm:$0x3f]
      %v1544 = vld [vmem:[#allocation2 + $0xb8] sm:$0x3f]
      %v1545 = vld [vmem:[%s3 + $0xc0] sm:$0xf]
      %v1546 = vld [vmem:[%s3 + $0xc4] sm:$0xf]
      %v1547 = vld [vmem:[%s3 + $0xc8] sm:$0xf]
      %v1548 = vld [vmem:[%s3 + $0xcc] sm:$0xf]
      %v1549 = vld [vmem:[%s3 + $0xd0] sm:$0xf]
      %v1550 = vld [vmem:[%s3 + $0xd4] sm:$0xf]
      %v1551 = vld [vmem:[%s3 + $0xd8] sm:$0xf]
      %v1552 = vld [vmem:[%s3 + $0xdc] sm:$0xf]
      %v1553 = vld [vmem:[%s3 + $0xe0] sm:$0xf]
      %v1554 = vld [vmem:[%s3 + $0xe4] sm:$0xf]
      %v1555 = vld [vmem:[%s3 + $0xe8] sm:$0xf]
      %v1556 = vld [vmem:[%s3 + $0xec] sm:$0xf]
      %v1557 = vld [vmem:[%s3 + $0xf0] sm:$0xf]
      %v1558 = vld [vmem:[%s3 + $0xf4] sm:$0xf]
      %v1559 = vld [vmem:[%s3 + $0xf8] sm:$0xf]
      %v1560 = vld [vmem:[%s3 + $0xfc] sm:$0xf]
      %v1561 = vld [vmem:[%s3 + $0x100] sm:$0xf]
      %v1562 = vld [vmem:[%s3 + $0x104] sm:$0xf]
      %v1563 = vld [vmem:[%s3 + $0x108] sm:$0xf]
      %v1564 = vld [vmem:[%s3 + $0x10c] sm:$0xf]
      %v1565 = vld [vmem:[%s3 + $0x110] sm:$0xf]
      %v1566 = vld [vmem:[%s3 + $0x114] sm:$0xf]
      %v1567 = vld [vmem:[%s3 + $0x118] sm:$0xf]
      %v1568 = vld [vmem:[%s3 + $0x11c] sm:$0xf]
      %vm1589 = vcmask 1041408
      %v1590 = vrot.slane %v1525, 6
      %v1591 = vrot.slane %v1527, 6
      %v1592 = vsel %vm1589, %v1590, %v1591
      %v1593 = vrot.slane %v1526, 6
      %v1594 = vrot.slane %v1528, 6
      %v1595 = vsel %vm1589, %v1593, %v1594
      %v1596 = vrot.slane %v1529, 6
      %v1597 = vsel %vm1589, %v1591, %v1596
      %v1598 = vrot.slane %v1530, 6
      %v1599 = vsel %vm1589, %v1594, %v1598
      %v1600 = vrot.slane %v1531, 6
      %v1601 = vsel %vm1589, %v1596, %v1600
      %v1602 = vrot.slane %v1532, 6
      %v1603 = vsel %vm1589, %v1598, %v1602
      %v1604 = vrot.slane %v1533, 6
      %v1605 = vsel %vm1589, %v1600, %v1604
      %v1606 = vrot.slane %v1534, 6
      %v1607 = vsel %vm1589, %v1602, %v1606
      %v1608 = vrot.slane %v1535, 6
      %v1609 = vsel %vm1589, %v1604, %v1608
      %v1610 = vrot.slane %v1536, 6
      %v1611 = vsel %vm1589, %v1606, %v1610
      %v1612 = vrot.slane %v1537, 6
      %v1613 = vsel %vm1589, %v1608, %v1612
      %v1614 = vrot.slane %v1538, 6
      %v1615 = vsel %vm1589, %v1610, %v1614
      %v1616 = vrot.slane %v1539, 6
      %v1617 = vsel %vm1589, %v1612, %v1616
      %v1618 = vrot.slane %v1540, 6
      %v1619 = vsel %vm1589, %v1614, %v1618
      %v1620 = vrot.slane %v1541, 6
      %v1621 = vsel %vm1589, %v1616, %v1620
      %v1622 = vrot.slane %v1542, 6
      %v1623 = vsel %vm1589, %v1618, %v1622
      %v1624 = vrot.slane %v1543, 6
      %v1625 = vsel %vm1589, %v1620, %v1624
      %v1626 = vrot.slane %v1544, 6
      %v1627 = vsel %vm1589, %v1622, %v1626
      %v1661 = vunpack.c.l.b16 %v1545
      %v1662 = vunpack.c.l.b16 %v1546
      %v1663 = vunpack.c.l.b16 %v1547
      %v1664 = vunpack.c.l.b16 %v1548
      %v1665 = vunpack.c.l.b16 %v1549
      %v1666 = vunpack.c.l.b16 %v1550
      %v1667 = vunpack.c.l.b16 %v1551
      %v1668 = vunpack.c.l.b16 %v1552
      %v1669 = vunpack.c.l.b16 %v1553
      %v1670 = vunpack.c.l.b16 %v1554
      %v1671 = vunpack.c.l.b16 %v1555
      %v1672 = vunpack.c.l.b16 %v1556
      %v1673 = vunpack.c.l.b16 %v1557
      %v1674 = vunpack.c.l.b16 %v1558
      %v1675 = vunpack.c.l.b16 %v1559
      %v1676 = vunpack.c.l.b16 %v1560
      %v1677 = vunpack.c.l.b16 %v1561
      %v1678 = vunpack.c.l.b16 %v1562
      %v1679 = vunpack.c.l.b16 %v1563
      %v1680 = vunpack.c.l.b16 %v1564
      %v1681 = vunpack.c.l.b16 %v1565
      %v1682 = vunpack.c.l.b16 %v1566
      %v1683 = vunpack.c.l.b16 %v1567
      %v1684 = vunpack.c.l.b16 %v1568
      %v1685 = vpack.c.b16 %v1662, %v1661
      %v1686 = vpack.c.b16 %v1664, %v1663
      %v1687 = vpack.c.b16 %v1666, %v1665
      %v1688 = vpack.c.b16 %v1668, %v1667
      %v1689 = vpack.c.b16 %v1670, %v1669
      %v1690 = vpack.c.b16 %v1672, %v1671
      %v1691 = vpack.c.b16 %v1674, %v1673
      %v1692 = vpack.c.b16 %v1676, %v1675
      %v1693 = vpack.c.b16 %v1678, %v1677
      %v1694 = vpack.c.b16 %v1680, %v1679
      %v1695 = vpack.c.b16 %v1682, %v1681
      %v1696 = vpack.c.b16 %v1684, %v1683
      %v1710 = vsel %vm349, %v1595, 0
      %v1713 = vsel %vm349, %v1599, 0
      %v1716 = vsel %vm349, %v1603, 0
      %v1719 = vsel %vm349, %v1607, 0
      %v1722 = vsel %vm349, %v1611, 0
      %v1725 = vsel %vm349, %v1615, 0
      %v1728 = vsel %vm349, %v1619, 0
      %v1731 = vsel %vm349, %v1623, 0
      %v1734 = vsel %vm349, %v1627, 0
      %1736 = vmatprep.subr.bf16.mxu0 0
      %1737 = vmatpush1.bf16.msra.mxu0 %v1685
      %1738 = vmatprep.subr.bf16.mxu0 0
      %1739 = vmatpush1.bf16.msra.mxu0 %v1686
      %1740 = vmatprep.subr.bf16.mxu0 0
      %1741 = vmatpush1.bf16.msra.mxu0 %v1687
      %1742 = vmatprep.subr.bf16.mxu0 0
      %1743 = vmatpush1.bf16.msra.mxu0 %v1688
      %1744 = vmatprep.subr.bf16.mxu0 0
      %1745 = vmatpush1.bf16.msra.mxu0 %v1689
      %1746 = vmatprep.subr.bf16.mxu0 0
      %1747 = vmatpush1.bf16.msra.mxu0 %v1690
      %1748 = vmatprep.subr.bf16.mxu0 0
      %1749 = vmatpush1.bf16.msra.mxu0 %v1691
      %1750 = vmatprep.subr.bf16.mxu0 0
      %1751 = vmatpush1.bf16.msra.mxu0 %v1692
      %1752 = vmatprep.subr.bf16.mxu0 0
      %1753 = vmatpush1.bf16.msra.mxu0 %v1693
      %1754 = vmatprep.subr.bf16.mxu0 0
      %1755 = vmatpush1.bf16.msra.mxu0 %v1694
      %1756 = vmatprep.subr.bf16.mxu0 0
      %1757 = vmatpush1.bf16.msra.mxu0 %v1695
      %1758 = vmatprep.subr.bf16.mxu0 0
      %1759 = vmatpush1.bf16.msra.mxu0 %v1696
      %1760 = vmatprep.subr.bf16.mxu0 0
      %1761 = vmatpush1.bf16.msra.mxu0 0
      %1762 = vmatprep.subr.bf16.mxu0 0
      %1763 = vmatpush1.bf16.msra.mxu0 0
      %1764 = vmatprep.subr.bf16.mxu0 0
      %1765 = vmatpush1.bf16.msra.mxu0 0
      %1766 = vmatprep.subr.bf16.mxu0 0
      %1767 = vmatpush1.bf16.msra.mxu0 0
      %1768 = vmatprep.mubr.bf16.mxu0 %v1710
      %1769 = vmatmul.mubr.bf16.gmra.mrb[0].mxu0 %v1592
      %v1770 = vpop.f32.mrb[0].mxu0
      %v1771 = vadd.f32 0.0, %v1770
      %v1772 = vpop.f32.mrb[0].mxu0
      %v1773 = vpop.f32.mrb[0].mxu0
      %v1774 = vadd.f32 0.0, %v1773
      %v1775 = vpop.f32.mrb[0].mxu0
      %1776 = vmatprep.mubr.bf16.mxu0 %v1713
      %1777 = vmatmul.mubr.bf16.gmra.mrb[0].mxu0 %v1597
      %v1778 = vpop.f32.mrb[0].mxu0
      %v1779 = vadd.f32 0.0, %v1778
      %v1780 = vpop.f32.mrb[0].mxu0
      %v1781 = vpop.f32.mrb[0].mxu0
      %v1782 = vadd.f32 0.0, %v1781
      %v1783 = vpop.f32.mrb[0].mxu0
      %1784 = vmatprep.mubr.bf16.mxu0 %v1716
      %1785 = vmatmul.mubr.bf16.gmra.mrb[0].mxu0 %v1601
      %v1786 = vpop.f32.mrb[0].mxu0
      %v1787 = vadd.f32 0.0, %v1786
      %v1788 = vpop.f32.mrb[0].mxu0
      %v1789 = vpop.f32.mrb[0].mxu0
      %v1790 = vadd.f32 0.0, %v1789
      %v1791 = vpop.f32.mrb[0].mxu0
      %1792 = vmatprep.mubr.bf16.mxu0 %v1719
      %1793 = vmatmul.mubr.bf16.gmra.mrb[0].mxu0 %v1605
      %v1794 = vpop.f32.mrb[0].mxu0
      %v1795 = vadd.f32 0.0, %v1794
      %v1796 = vpop.f32.mrb[0].mxu0
      %v1797 = vpop.f32.mrb[0].mxu0
      %v1798 = vadd.f32 0.0, %v1797
      %v1799 = vpop.f32.mrb[0].mxu0
      %1800 = vmatprep.mubr.bf16.mxu0 %v1722
      %1801 = vmatmul.mubr.bf16.gmra.mrb[0].mxu0 %v1609
      %v1802 = vpop.f32.mrb[0].mxu0
      %v1803 = vadd.f32 0.0, %v1802
      %v1804 = vpop.f32.mrb[0].mxu0
      %v1805 = vpop.f32.mrb[0].mxu0
      %v1806 = vadd.f32 0.0, %v1805
      %v1807 = vpop.f32.mrb[0].mxu0
      %1808 = vmatprep.mubr.bf16.mxu0 %v1725
      %1809 = vmatmul.mubr.bf16.gmra.mrb[0].mxu0 %v1613
      %v1810 = vpop.f32.mrb[0].mxu0
      %v1811 = vadd.f32 0.0, %v1810
      %v1812 = vpop.f32.mrb[0].mxu0
      %v1813 = vpop.f32.mrb[0].mxu0
      %v1814 = vadd.f32 0.0, %v1813
      %v1815 = vpop.f32.mrb[0].mxu0
      %1816 = vmatprep.mubr.bf16.mxu0 %v1728
      %1817 = vmatmul.mubr.bf16.gmra.mrb[0].mxu0 %v1617
      %v1818 = vpop.f32.mrb[0].mxu0
      %v1819 = vadd.f32 0.0, %v1818
      %v1820 = vpop.f32.mrb[0].mxu0
      %v1821 = vpop.f32.mrb[0].mxu0
      %v1822 = vadd.f32 0.0, %v1821
      %v1823 = vpop.f32.mrb[0].mxu0
      %1824 = vmatprep.mubr.bf16.mxu0 %v1731
      %1825 = vmatmul.mubr.bf16.gmra.mrb[0].mxu0 %v1621
      %v1826 = vpop.f32.mrb[0].mxu0
      %v1827 = vadd.f32 0.0, %v1826
      %v1828 = vpop.f32.mrb[0].mxu0
      %v1829 = vpop.f32.mrb[0].mxu0
      %v1830 = vadd.f32 0.0, %v1829
      %v1831 = vpop.f32.mrb[0].mxu0
      %1832 = vmatprep.mubr.bf16.mxu0 %v1734
      %1833 = vmatmul.mubr.bf16.gmra.mrb[0].mxu0 %v1625
      %v1834 = vpop.f32.mrb[0].mxu0
      %v1835 = vadd.f32 0.0, %v1834
      %v1836 = vpop.f32.mrb[0].mxu0
      %v1837 = vpop.f32.mrb[0].mxu0
      %v1838 = vadd.f32 0.0, %v1837
      %v1839 = vpop.f32.mrb[0].mxu0
      %1840 = vdwg.mxu0
      %v1841 = vadd.f32 %v1455, %v1771
      %v1842 = vadd.f32 %v1458, %v1774
      %v1843 = vadd.f32 %v1463, %v1779
      %v1844 = vadd.f32 %v1466, %v1782
      %v1845 = vadd.f32 %v1471, %v1787
      %v1846 = vadd.f32 %v1474, %v1790
      %v1847 = vadd.f32 %v1479, %v1795
      %v1848 = vadd.f32 %v1482, %v1798
      %v1849 = vadd.f32 %v1487, %v1803
      %v1850 = vadd.f32 %v1490, %v1806
      %v1851 = vadd.f32 %v1495, %v1811
      %v1852 = vadd.f32 %v1498, %v1814
      %v1853 = vadd.f32 %v1503, %v1819
      %v1854 = vadd.f32 %v1506, %v1822
      %v1855 = vadd.f32 %v1511, %v1827
      %v1856 = vadd.f32 %v1514, %v1830
      %v1857 = vadd.f32 %v1519, %v1835
      %v1858 = vadd.f32 %v1522, %v1838
      %v1859 = vld [vmem:[%s5 + $0x1] sm:$0x1]
      %v1860 = vlaneseq
      %v1861 = vshrl.u32 %v1860, 7
      %v1862 = vsub.s32 0, %v1861
      %v1863 = vrot.slane %v1859, %v1862
      %v1864 = vadd.f32 %v1841, %v1863
      %v1865 = vadd.f32 %v1842, %v1863
      %v1866 = vadd.f32 %v1843, %v1863
      %v1867 = vadd.f32 %v1844, %v1863
      %v1868 = vadd.f32 %v1845, %v1863
      %v1869 = vadd.f32 %v1846, %v1863
      %v1870 = vadd.f32 %v1847, %v1863
      %v1871 = vadd.f32 %v1848, %v1863
      %v1872 = vadd.f32 %v1849, %v1863
      %v1873 = vadd.f32 %v1850, %v1863
      %v1874 = vadd.f32 %v1851, %v1863
      %v1875 = vadd.f32 %v1852, %v1863
      %v1876 = vadd.f32 %v1853, %v1863
      %v1877 = vadd.f32 %v1854, %v1863
      %v1878 = vadd.f32 %v1855, %v1863
      %v1879 = vadd.f32 %v1856, %v1863
      %v1880 = vadd.f32 %v1857, %v1863
      %v1881 = vadd.f32 %v1858, %v1863
      %v1882 = vmax.f32 %v1864, 0.0
      %v1883 = vmax.f32 %v1865, 0.0
      %v1884 = vmax.f32 %v1866, 0.0
      %v1885 = vmax.f32 %v1867, 0.0
      %v1886 = vmax.f32 %v1868, 0.0
      %v1887 = vmax.f32 %v1869, 0.0
      %v1888 = vmax.f32 %v1870, 0.0
      %v1889 = vmax.f32 %v1871, 0.0
      %v1890 = vmax.f32 %v1872, 0.0
      %v1891 = vmax.f32 %v1873, 0.0
      %v1892 = vmax.f32 %v1874, 0.0
      %v1893 = vmax.f32 %v1875, 0.0
      %v1894 = vmax.f32 %v1876, 0.0
      %v1895 = vmax.f32 %v1877, 0.0
      %v1896 = vmax.f32 %v1878, 0.0
      %v1897 = vmax.f32 %v1879, 0.0
      %v1898 = vmax.f32 %v1880, 0.0
      %v1899 = vmax.f32 %v1881, 0.0
      %v1900 = vsel %vm465, %v1882, 0.0
      %v1901 = vsel %vm466, %v1883, 0.0
      %v1902 = vsel %vm467, %v1884, 0.0
      %v1903 = vsel %vm468, %v1885, 0.0
      %v1904 = vsel %vm469, %v1886, 0.0
      %v1905 = vsel %vm470, %v1887, 0.0
      %v1906 = vsel %vm471, %v1888, 0.0
      %v1907 = vsel %vm472, %v1889, 0.0
      %v1908 = vsel %vm473, %v1890, 0.0
      %v1909 = vsel %vm474, %v1891, 0.0
      %v1910 = vsel %vm475, %v1892, 0.0
      %v1911 = vsel %vm476, %v1893, 0.0
      %v1912 = vsel %vm477, %v1894, 0.0
      %v1913 = vsel %vm478, %v1895, 0.0
      %v1914 = vsel %vm479, %v1896, 0.0
      %v1915 = vsel %vm480, %v1897, 0.0
      %v1916 = vsel %vm481, %v1898, 0.0
      %v1917 = vsel %vm482, %v1899, 0.0
      %v1918 = vpack.c.bf16 %v1901, %v1900
      %v1919 = vpack.c.bf16 %v1903, %v1902
      %v1920 = vpack.c.bf16 %v1905, %v1904
      %v1921 = vpack.c.bf16 %v1907, %v1906
      %v1922 = vpack.c.bf16 %v1909, %v1908
      %v1923 = vpack.c.bf16 %v1911, %v1910
      %v1924 = vpack.c.bf16 %v1913, %v1912
      %v1925 = vpack.c.bf16 %v1915, %v1914
      %v1926 = vpack.c.bf16 %v1917, %v1916
      %v1928 = vshrl.u32 %v1918, 16
      %v1930 = vrot.slane %v1928, 7
      %v1931 = vshll.u32 %v1918, 16
      %v1933 = vor.u32 %v1930, %v1931
      %v1935 = vshrl.u32 %v1919, 16
      %v1937 = vrot.slane %v1935, 7
      %v1938 = vshll.u32 %v1919, 16
      %v1940 = vor.u32 %v1937, %v1938
      %v1941 = vsel %vm777, %v1930, %v1940
      %v1943 = vshrl.u32 %v1920, 16
      %v1945 = vrot.slane %v1943, 7
      %v1946 = vshll.u32 %v1920, 16
      %v1948 = vor.u32 %v1945, %v1946
      %v1949 = vsel %vm777, %v1937, %v1948
      %v1951 = vshrl.u32 %v1921, 16
      %v1953 = vrot.slane %v1951, 7
      %v1954 = vshll.u32 %v1921, 16
      %v1956 = vor.u32 %v1953, %v1954
      %v1957 = vsel %vm777, %v1945, %v1956
      %v1959 = vshrl.u32 %v1922, 16
      %v1961 = vrot.slane %v1959, 7
      %v1962 = vshll.u32 %v1922, 16
      %v1964 = vor.u32 %v1961, %v1962
      %v1965 = vsel %vm777, %v1953, %v1964
      %v1967 = vshrl.u32 %v1923, 16
      %v1969 = vrot.slane %v1967, 7
      %v1970 = vshll.u32 %v1923, 16
      %v1972 = vor.u32 %v1969, %v1970
      %v1973 = vsel %vm777, %v1961, %v1972
      %v1975 = vshrl.u32 %v1924, 16
      %v1977 = vrot.slane %v1975, 7
      %v1978 = vshll.u32 %v1924, 16
      %v1980 = vor.u32 %v1977, %v1978
      %v1981 = vsel %vm777, %v1969, %v1980
      %v1983 = vshrl.u32 %v1925, 16
      %v1985 = vrot.slane %v1983, 7
      %v1986 = vshll.u32 %v1925, 16
      %v1988 = vor.u32 %v1985, %v1986
      %v1989 = vsel %vm777, %v1977, %v1988
      %v1991 = vshrl.u32 %v1926, 16
      %v1993 = vrot.slane %v1991, 7
      %v1994 = vshll.u32 %v1926, 16
      %v1996 = vor.u32 %v1993, %v1994
      %v1997 = vsel %vm777, %v1985, %v1996
      %v2008 = vld [vmem:[#allocation2 + $0x20] sm:$0xff]
      %v2009 = vsel %vm861, %v1933, %v2008
      %2010 = vst [vmem:[#allocation2 + $0x20] sm:$0xff] %v2009
      %2011 = vst.msk [vmem:[#allocation2 + $0x30] sm:$0xff] %vm349, %v1941
      %2012 = vst.msk [vmem:[#allocation2 + $0x40] sm:$0xff] %vm349, %v1949
      %2013 = vst.msk [vmem:[#allocation2 + $0x50] sm:$0xff] %vm349, %v1957
      %2014 = vst.msk [vmem:[#allocation2 + $0x60] sm:$0xff] %vm349, %v1965
      %2015 = vst.msk [vmem:[#allocation2 + $0x70] sm:$0xff] %vm349, %v1973
      %2016 = vst.msk [vmem:[#allocation2 + $0x80] sm:$0xff] %vm349, %v1981
      %2017 = vst.msk [vmem:[#allocation2 + $0x90] sm:$0xff] %vm349, %v1989
      %2018 = vst.msk [vmem:[#allocation2 + $0xa0] sm:$0xff] %vm349, %v1997
      %v2019 = vld [vmem:[#allocation2 + $0xb0] sm:$0x1]
      %v2020 = vsel %vm874, %v1993, %v2019
      %2021 = vst [vmem:[#allocation2 + $0xb0] sm:$0x1] %v2020
      %2031 = vrot.lane.b32.xlu0 %v1918, 64
      %v2032 = vpop.permute.xlu0 %2031
      %2033 = vrot.lane.b32.xlu0 %v1919, 64
      %v2034 = vpop.permute.xlu0 %2033
      %2035 = vrot.lane.b32.xlu0 %v1920, 64
      %v2036 = vpop.permute.xlu0 %2035
      %2037 = vrot.lane.b32.xlu0 %v1921, 64
      %v2038 = vpop.permute.xlu0 %2037
      %2039 = vrot.lane.b32.xlu0 %v1922, 64
      %v2040 = vpop.permute.xlu0 %2039
      %2041 = vrot.lane.b32.xlu0 %v1923, 64
      %v2042 = vpop.permute.xlu0 %2041
      %2043 = vrot.lane.b32.xlu0 %v1924, 64
      %v2044 = vpop.permute.xlu0 %2043
      %2045 = vrot.lane.b32.xlu0 %v1925, 64
      %v2046 = vpop.permute.xlu0 %2045
      %2047 = vrot.lane.b32.xlu0 %v1926, 64
      %v2048 = vpop.permute.xlu0 %2047
      %2058 = vst.msk [vmem:[#allocation2 + $0x20] sm:$0xff] %vm914, %v2032
      %2059 = vst.msk [vmem:[#allocation2 + $0x30] sm:$0xff] %vm914, %v2034
      %2060 = vst.msk [vmem:[#allocation2 + $0x40] sm:$0xff] %vm914, %v2036
      %2061 = vst.msk [vmem:[#allocation2 + $0x50] sm:$0xff] %vm914, %v2038
      %2062 = vst.msk [vmem:[#allocation2 + $0x60] sm:$0xff] %vm914, %v2040
      %2063 = vst.msk [vmem:[#allocation2 + $0x70] sm:$0xff] %vm914, %v2042
      %2064 = vst.msk [vmem:[#allocation2 + $0x80] sm:$0xff] %vm914, %v2044
      %2065 = vst.msk [vmem:[#allocation2 + $0x90] sm:$0xff] %vm914, %v2046
      %2066 = vst.msk [vmem:[#allocation2 + $0xa0] sm:$0xff] %vm914, %v2048
      %v2067 = vrot.slane %v1931, 1
      %v2068 = vor.u32 %v1928, %v2067
      %v2069 = vrot.slane %v1938, 1
      %v2070 = vsel %vm924, %v2068, %v2069
      %v2071 = vor.u32 %v1935, %v2069
      %v2072 = vrot.slane %v1946, 1
      %v2073 = vsel %vm924, %v2071, %v2072
      %v2074 = vor.u32 %v1943, %v2072
      %v2075 = vrot.slane %v1954, 1
      %v2076 = vsel %vm924, %v2074, %v2075
      %v2077 = vor.u32 %v1951, %v2075
      %v2078 = vrot.slane %v1962, 1
      %v2079 = vsel %vm924, %v2077, %v2078
      %v2080 = vor.u32 %v1959, %v2078
      %v2081 = vrot.slane %v1970, 1
      %v2082 = vsel %vm924, %v2080, %v2081
      %v2083 = vor.u32 %v1967, %v2081
      %v2084 = vrot.slane %v1978, 1
      %v2085 = vsel %vm924, %v2083, %v2084
      %v2086 = vor.u32 %v1975, %v2084
      %v2087 = vrot.slane %v1986, 1
      %v2088 = vsel %vm924, %v2086, %v2087
      %v2089 = vor.u32 %v1983, %v2087
      %v2090 = vrot.slane %v1994, 1
      %v2091 = vsel %vm924, %v2089, %v2090
      %v2092 = vor.u32 %v1991, %v2090
      %v2103 = vld [vmem:[#allocation2 + $0x18] sm:$0x80]
      %v2104 = vsel %vm963, %v2067, %v2103
      %2105 = vst [vmem:[#allocation2 + $0x18] sm:$0x80] %v2104
      %2106 = vst.msk [vmem:[#allocation2 + $0x28] sm:$0xff] %vm349, %v2070
      %2107 = vst.msk [vmem:[#allocation2 + $0x38] sm:$0xff] %vm349, %v2073
      %2108 = vst.msk [vmem:[#allocation2 + $0x48] sm:$0xff] %vm349, %v2076
      %2109 = vst.msk [vmem:[#allocation2 + $0x58] sm:$0xff] %vm349, %v2079
      %2110 = vst.msk [vmem:[#allocation2 + $0x68] sm:$0xff] %vm349, %v2082
      %2111 = vst.msk [vmem:[#allocation2 + $0x78] sm:$0xff] %vm349, %v2085
      %2112 = vst.msk [vmem:[#allocation2 + $0x88] sm:$0xff] %vm349, %v2088
      %2113 = vst.msk [vmem:[#allocation2 + $0x98] sm:$0xff] %vm349, %v2091
      %v2114 = vld [vmem:[#allocation2 + $0xa8] sm:$0xff]
      %v2115 = vsel %vm975, %v2092, %v2114
      %2116 = vst [vmem:[#allocation2 + $0xa8] sm:$0xff] %v2115
      %v2117 = vld [vmem:[#allocation2 + $0x10] sm:$0xfc]
      %v2118 = vld [vmem:[#allocation2 + $0x18] sm:$0xfc]
      %v2119 = vld [vmem:[#allocation2 + $0x20] sm:$0xff]
      %v2120 = vld [vmem:[#allocation2 + $0x28] sm:$0xff]
      %v2121 = vld [vmem:[#allocation2 + $0x30] sm:$0xff]
      %v2122 = vld [vmem:[#allocation2 + $0x38] sm:$0xff]
      %v2123 = vld [vmem:[#allocation2 + $0x40] sm:$0xff]
      %v2124 = vld [vmem:[#allocation2 + $0x48] sm:$0xff]
      %v2125 = vld [vmem:[#allocation2 + $0x50] sm:$0xff]
      %v2126 = vld [vmem:[#allocation2 + $0x58] sm:$0xff]
      %v2127 = vld [vmem:[#allocation2 + $0x60] sm:$0xff]
      %v2128 = vld [vmem:[#allocation2 + $0x68] sm:$0xff]
      %v2129 = vld [vmem:[#allocation2 + $0x70] sm:$0xff]
      %v2130 = vld [vmem:[#allocation2 + $0x78] sm:$0xff]
      %v2131 = vld [vmem:[#allocation2 + $0x80] sm:$0xff]
      %v2132 = vld [vmem:[#allocation2 + $0x88] sm:$0xff]
      %v2133 = vld [vmem:[#allocation2 + $0x90] sm:$0xff]
      %v2134 = vld [vmem:[#allocation2 + $0x98] sm:$0xff]
      %v2135 = vld [vmem:[#allocation2 + $0xa0] sm:$0x3]
      %v2136 = vld [vmem:[#allocation2 + $0xa8] sm:$0x3]
      %v2137 = vld [vmem:[%s3 + $0x120] sm:$0xf]
      %v2138 = vld [vmem:[%s3 + $0x124] sm:$0xf]
      %v2139 = vld [vmem:[%s3 + $0x128] sm:$0xf]
      %v2140 = vld [vmem:[%s3 + $0x12c] sm:$0xf]
      %v2141 = vld [vmem:[%s3 + $0x130] sm:$0xf]
      %v2142 = vld [vmem:[%s3 + $0x134] sm:$0xf]
      %v2143 = vld [vmem:[%s3 + $0x138] sm:$0xf]
      %v2144 = vld [vmem:[%s3 + $0x13c] sm:$0xf]
      %v2145 = vld [vmem:[%s3 + $0x140] sm:$0xf]
      %v2146 = vld [vmem:[%s3 + $0x144] sm:$0xf]
      %v2147 = vld [vmem:[%s3 + $0x148] sm:$0xf]
      %v2148 = vld [vmem:[%s3 + $0x14c] sm:$0xf]
      %v2149 = vld [vmem:[%s3 + $0x150] sm:$0xf]
      %v2150 = vld [vmem:[%s3 + $0x154] sm:$0xf]
      %v2151 = vld [vmem:[%s3 + $0x158] sm:$0xf]
      %v2152 = vld [vmem:[%s3 + $0x15c] sm:$0xf]
      %v2153 = vld [vmem:[%s3 + $0x160] sm:$0xf]
      %v2154 = vld [vmem:[%s3 + $0x164] sm:$0xf]
      %v2155 = vld [vmem:[%s3 + $0x168] sm:$0xf]
      %v2156 = vld [vmem:[%s3 + $0x16c] sm:$0xf]
      %v2157 = vld [vmem:[%s3 + $0x170] sm:$0xf]
      %v2158 = vld [vmem:[%s3 + $0x174] sm:$0xf]
      %v2159 = vld [vmem:[%s3 + $0x178] sm:$0xf]
      %v2160 = vld [vmem:[%s3 + $0x17c] sm:$0xf]
      %v2161 = vld [vmem:[#allocation2 + $0xa0] sm:$0xff]
      %v2162 = vld [vmem:[#allocation2 + $0xa8] sm:$0xff]
      %v2163 = vld [vmem:[%s3 + $0x180] sm:$0xf]
      %v2164 = vld [vmem:[%s3 + $0x184] sm:$0xf]
      %v2165 = vld [vmem:[%s3 + $0x188] sm:$0xf]
      %v2166 = vld [vmem:[%s3 + $0x18c] sm:$0xf]
      %v2167 = vld [vmem:[%s3 + $0x190] sm:$0xf]
      %v2168 = vld [vmem:[%s3 + $0x194] sm:$0xf]
      %v2169 = vld [vmem:[%s3 + $0x198] sm:$0xf]
      %v2170 = vld [vmem:[%s3 + $0x19c] sm:$0xf]
      %v2171 = vld [vmem:[%s3 + $0x1a0] sm:$0xf]
      %v2172 = vld [vmem:[%s3 + $0x1a4] sm:$0xf]
      %v2173 = vld [vmem:[%s3 + $0x1a8] sm:$0xf]
      %v2174 = vld [vmem:[%s3 + $0x1ac] sm:$0xf]
      %v2175 = vld [vmem:[%s3 + $0x1b0] sm:$0xf]
      %v2176 = vld [vmem:[%s3 + $0x1b4] sm:$0xf]
      %v2177 = vld [vmem:[%s3 + $0x1b8] sm:$0xf]
      %v2178 = vld [vmem:[%s3 + $0x1bc] sm:$0xf]
      %v2179 = vld [vmem:[%s3 + $0x1c0] sm:$0xf]
      %v2180 = vld [vmem:[%s3 + $0x1c4] sm:$0xf]
      %v2181 = vld [vmem:[%s3 + $0x1c8] sm:$0xf]
      %v2182 = vld [vmem:[%s3 + $0x1cc] sm:$0xf]
      %v2183 = vld [vmem:[%s3 + $0x1d0] sm:$0xf]
      %v2184 = vld [vmem:[%s3 + $0x1d4] sm:$0xf]
      %v2185 = vld [vmem:[%s3 + $0x1d8] sm:$0xf]
      %v2186 = vld [vmem:[%s3 + $0x1dc] sm:$0xf]
      %v2211 = vunpack.c.l.b16 %v2163
      %v2212 = vunpack.c.l.b16 %v2164
      %v2213 = vunpack.c.l.b16 %v2165
      %v2214 = vunpack.c.l.b16 %v2166
      %v2215 = vunpack.c.l.b16 %v2167
      %v2216 = vunpack.c.l.b16 %v2168
      %v2217 = vunpack.c.l.b16 %v2169
      %v2218 = vunpack.c.l.b16 %v2170
      %v2219 = vunpack.c.l.b16 %v2171
      %v2220 = vunpack.c.l.b16 %v2172
      %v2221 = vunpack.c.l.b16 %v2173
      %v2222 = vunpack.c.l.b16 %v2174
      %v2223 = vunpack.c.l.b16 %v2175
      %v2224 = vunpack.c.l.b16 %v2176
      %v2225 = vunpack.c.l.b16 %v2177
      %v2226 = vunpack.c.l.b16 %v2178
      %v2227 = vunpack.c.l.b16 %v2179
      %v2228 = vunpack.c.l.b16 %v2180
      %v2229 = vunpack.c.l.b16 %v2181
      %v2230 = vunpack.c.l.b16 %v2182
      %v2231 = vunpack.c.l.b16 %v2183
      %v2232 = vunpack.c.l.b16 %v2184
      %v2233 = vunpack.c.l.b16 %v2185
      %v2234 = vunpack.c.l.b16 %v2186
      %v2235 = vpack.c.b16 %v2212, %v2211
      %v2236 = vpack.c.b16 %v2214, %v2213
      %v2237 = vpack.c.b16 %v2216, %v2215
      %v2238 = vpack.c.b16 %v2218, %v2217
      %v2239 = vpack.c.b16 %v2220, %v2219
      %v2240 = vpack.c.b16 %v2222, %v2221
      %v2241 = vpack.c.b16 %v2224, %v2223
      %v2242 = vpack.c.b16 %v2226, %v2225
      %v2243 = vpack.c.b16 %v2228, %v2227
      %v2244 = vpack.c.b16 %v2230, %v2229
      %v2245 = vpack.c.b16 %v2232, %v2231
      %v2246 = vpack.c.b16 %v2234, %v2233
      %v2260 = vsel %vm349, %v2120, 0
      %v2263 = vsel %vm349, %v2122, 0
      %v2266 = vsel %vm349, %v2124, 0
      %v2269 = vsel %vm349, %v2126, 0
      %v2272 = vsel %vm349, %v2128, 0
      %v2275 = vsel %vm349, %v2130, 0
      %v2278 = vsel %vm349, %v2132, 0
      %v2281 = vsel %vm349, %v2134, 0
      %v2284 = vsel %vm349, %v2162, 0
      %2286 = vmatprep.subr.bf16.mxu0 0
      %2287 = vmatpush1.bf16.msra.mxu0 %v2235
      %2288 = vmatprep.subr.bf16.mxu0 0
      %2289 = vmatpush1.bf16.msra.mxu0 %v2236
      %2290 = vmatprep.subr.bf16.mxu0 0
      %2291 = vmatpush1.bf16.msra.mxu0 %v2237
      %2292 = vmatprep.subr.bf16.mxu0 0
      %2293 = vmatpush1.bf16.msra.mxu0 %v2238
      %2294 = vmatprep.subr.bf16.mxu0 0
      %2295 = vmatpush1.bf16.msra.mxu0 %v2239
      %2296 = vmatprep.subr.bf16.mxu0 0
      %2297 = vmatpush1.bf16.msra.mxu0 %v2240
      %2298 = vmatprep.subr.bf16.mxu0 0
      %2299 = vmatpush1.bf16.msra.mxu0 %v2241
      %2300 = vmatprep.subr.bf16.mxu0 0
      %2301 = vmatpush1.bf16.msra.mxu0 %v2242
      %2302 = vmatprep.subr.bf16.mxu0 0
      %2303 = vmatpush1.bf16.msra.mxu0 %v2243
      %2304 = vmatprep.subr.bf16.mxu0 0
      %2305 = vmatpush1.bf16.msra.mxu0 %v2244
      %2306 = vmatprep.subr.bf16.mxu0 0
      %2307 = vmatpush1.bf16.msra.mxu0 %v2245
      %2308 = vmatprep.subr.bf16.mxu0 0
      %2309 = vmatpush1.bf16.msra.mxu0 %v2246
      %2310 = vmatprep.subr.bf16.mxu0 0
      %2311 = vmatpush1.bf16.msra.mxu0 0
      %2312 = vmatprep.subr.bf16.mxu0 0
      %2313 = vmatpush1.bf16.msra.mxu0 0
      %2314 = vmatprep.subr.bf16.mxu0 0
      %2315 = vmatpush1.bf16.msra.mxu0 0
      %2316 = vmatprep.subr.bf16.mxu0 0
      %2317 = vmatpush1.bf16.msra.mxu0 0
      %2318 = vmatprep.mubr.bf16.mxu0 %v2260
      %2319 = vmatmul.mubr.bf16.gmra.mrb[0].mxu0 %v2119
      %v2320 = vpop.f32.mrb[0].mxu0
      %v2321 = vadd.f32 0.0, %v2320
      %v2322 = vpop.f32.mrb[0].mxu0
      %v2323 = vpop.f32.mrb[0].mxu0
      %v2324 = vadd.f32 0.0, %v2323
      %v2325 = vpop.f32.mrb[0].mxu0
      %2326 = vmatprep.mubr.bf16.mxu0 %v2263
      %2327 = vmatmul.mubr.bf16.gmra.mrb[0].mxu0 %v2121
      %v2328 = vpop.f32.mrb[0].mxu0
      %v2329 = vadd.f32 0.0, %v2328
      %v2330 = vpop.f32.mrb[0].mxu0
      %v2331 = vpop.f32.mrb[0].mxu0
      %v2332 = vadd.f32 0.0, %v2331
      %v2333 = vpop.f32.mrb[0].mxu0
      %2334 = vmatprep.mubr.bf16.mxu0 %v2266
      %2335 = vmatmul.mubr.bf16.gmra.mrb[0].mxu0 %v2123
      %v2336 = vpop.f32.mrb[0].mxu0
      %v2337 = vadd.f32 0.0, %v2336
      %v2338 = vpop.f32.mrb[0].mxu0
      %v2339 = vpop.f32.mrb[0].mxu0
      %v2340 = vadd.f32 0.0, %v2339
      %v2341 = vpop.f32.mrb[0].mxu0
      %2342 = vmatprep.mubr.bf16.mxu0 %v2269
      %2343 = vmatmul.mubr.bf16.gmra.mrb[0].mxu0 %v2125
      %v2344 = vpop.f32.mrb[0].mxu0
      %v2345 = vadd.f32 0.0, %v2344
      %v2346 = vpop.f32.mrb[0].mxu0
      %v2347 = vpop.f32.mrb[0].mxu0
      %v2348 = vadd.f32 0.0, %v2347
      %v2349 = vpop.f32.mrb[0].mxu0
      %2350 = vmatprep.mubr.bf16.mxu0 %v2272
      %2351 = vmatmul.mubr.bf16.gmra.mrb[0].mxu0 %v2127
      %v2352 = vpop.f32.mrb[0].mxu0
      %v2353 = vadd.f32 0.0, %v2352
      %v2354 = vpop.f32.mrb[0].mxu0
      %v2355 = vpop.f32.mrb[0].mxu0
      %v2356 = vadd.f32 0.0, %v2355
      %v2357 = vpop.f32.mrb[0].mxu0
      %2358 = vmatprep.mubr.bf16.mxu0 %v2275
      %2359 = vmatmul.mubr.bf16.gmra.mrb[0].mxu0 %v2129
      %v2360 = vpop.f32.mrb[0].mxu0
      %v2361 = vadd.f32 0.0, %v2360
      %v2362 = vpop.f32.mrb[0].mxu0
      %v2363 = vpop.f32.mrb[0].mxu0
      %v2364 = vadd.f32 0.0, %v2363
      %v2365 = vpop.f32.mrb[0].mxu0
      %2366 = vmatprep.mubr.bf16.mxu0 %v2278
      %2367 = vmatmul.mubr.bf16.gmra.mrb[0].mxu0 %v2131
      %v2368 = vpop.f32.mrb[0].mxu0
      %v2369 = vadd.f32 0.0, %v2368
      %v2370 = vpop.f32.mrb[0].mxu0
      %v2371 = vpop.f32.mrb[0].mxu0
      %v2372 = vadd.f32 0.0, %v2371
      %v2373 = vpop.f32.mrb[0].mxu0
      %2374 = vmatprep.mubr.bf16.mxu0 %v2281
      %2375 = vmatmul.mubr.bf16.gmra.mrb[0].mxu0 %v2133
      %v2376 = vpop.f32.mrb[0].mxu0
      %v2377 = vadd.f32 0.0, %v2376
      %v2378 = vpop.f32.mrb[0].mxu0
      %v2379 = vpop.f32.mrb[0].mxu0
      %v2380 = vadd.f32 0.0, %v2379
      %v2381 = vpop.f32.mrb[0].mxu0
      %2382 = vmatprep.mubr.bf16.mxu0 %v2284
      %2383 = vmatmul.mubr.bf16.gmra.mrb[0].mxu0 %v2161
      %v2384 = vpop.f32.mrb[0].mxu0
      %v2385 = vadd.f32 0.0, %v2384
      %v2386 = vpop.f32.mrb[0].mxu0
      %v2387 = vpop.f32.mrb[0].mxu0
      %v2388 = vadd.f32 0.0, %v2387
      %v2389 = vpop.f32.mrb[0].mxu0
      %2390 = vdwg.mxu0
      %v2411 = vrot.slane %v2117, 2
      %v2412 = vrot.slane %v2119, 2
      %v2413 = vsel %vm1273, %v2411, %v2412
      %v2414 = vrot.slane %v2118, 2
      %v2415 = vrot.slane %v2120, 2
      %v2416 = vsel %vm1273, %v2414, %v2415
      %v2417 = vrot.slane %v2121, 2
      %v2418 = vsel %vm1273, %v2412, %v2417
      %v2419 = vrot.slane %v2122, 2
      %v2420 = vsel %vm1273, %v2415, %v2419
      %v2421 = vrot.slane %v2123, 2
      %v2422 = vsel %vm1273, %v2417, %v2421
      %v2423 = vrot.slane %v2124, 2
      %v2424 = vsel %vm1273, %v2419, %v2423
      %v2425 = vrot.slane %v2125, 2
      %v2426 = vsel %vm1273, %v2421, %v2425
      %v2427 = vrot.slane %v2126, 2
      %v2428 = vsel %vm1273, %v2423, %v2427
      %v2429 = vrot.slane %v2127, 2
      %v2430 = vsel %vm1273, %v2425, %v2429
      %v2431 = vrot.slane %v2128, 2
      %v2432 = vsel %vm1273, %v2427, %v2431
      %v2433 = vrot.slane %v2129, 2
      %v2434 = vsel %vm1273, %v2429, %v2433
      %v2435 = vrot.slane %v2130, 2
      %v2436 = vsel %vm1273, %v2431, %v2435
      %v2437 = vrot.slane %v2131, 2
      %v2438 = vsel %vm1273, %v2433, %v2437
      %v2439 = vrot.slane %v2132, 2
      %v2440 = vsel %vm1273, %v2435, %v2439
      %v2441 = vrot.slane %v2133, 2
      %v2442 = vsel %vm1273, %v2437, %v2441
      %v2443 = vrot.slane %v2134, 2
      %v2444 = vsel %vm1273, %v2439, %v2443
      %v2445 = vrot.slane %v2135, 2
      %v2446 = vsel %vm1273, %v2441, %v2445
      %v2447 = vrot.slane %v2136, 2
      %v2448 = vsel %vm1273, %v2443, %v2447
      %v2482 = vunpack.c.l.b16 %v2137
      %v2483 = vunpack.c.l.b16 %v2138
      %v2484 = vunpack.c.l.b16 %v2139
      %v2485 = vunpack.c.l.b16 %v2140
      %v2486 = vunpack.c.l.b16 %v2141
      %v2487 = vunpack.c.l.b16 %v2142
      %v2488 = vunpack.c.l.b16 %v2143
      %v2489 = vunpack.c.l.b16 %v2144
      %v2490 = vunpack.c.l.b16 %v2145
      %v2491 = vunpack.c.l.b16 %v2146
      %v2492 = vunpack.c.l.b16 %v2147
      %v2493 = vunpack.c.l.b16 %v2148
      %v2494 = vunpack.c.l.b16 %v2149
      %v2495 = vunpack.c.l.b16 %v2150
      %v2496 = vunpack.c.l.b16 %v2151
      %v2497 = vunpack.c.l.b16 %v2152
      %v2498 = vunpack.c.l.b16 %v2153
      %v2499 = vunpack.c.l.b16 %v2154
      %v2500 = vunpack.c.l.b16 %v2155
      %v2501 = vunpack.c.l.b16 %v2156
      %v2502 = vunpack.c.l.b16 %v2157
      %v2503 = vunpack.c.l.b16 %v2158
      %v2504 = vunpack.c.l.b16 %v2159
      %v2505 = vunpack.c.l.b16 %v2160
      %v2506 = vpack.c.b16 %v2483, %v2482
      %v2507 = vpack.c.b16 %v2485, %v2484
      %v2508 = vpack.c.b16 %v2487, %v2486
      %v2509 = vpack.c.b16 %v2489, %v2488
      %v2510 = vpack.c.b16 %v2491, %v2490
      %v2511 = vpack.c.b16 %v2493, %v2492
      %v2512 = vpack.c.b16 %v2495, %v2494
      %v2513 = vpack.c.b16 %v2497, %v2496
      %v2514 = vpack.c.b16 %v2499, %v2498
      %v2515 = vpack.c.b16 %v2501, %v2500
      %v2516 = vpack.c.b16 %v2503, %v2502
      %v2517 = vpack.c.b16 %v2505, %v2504
      %v2531 = vsel %vm349, %v2416, 0
      %v2534 = vsel %vm349, %v2420, 0
      %v2537 = vsel %vm349, %v2424, 0
      %v2540 = vsel %vm349, %v2428, 0
      %v2543 = vsel %vm349, %v2432, 0
      %v2546 = vsel %vm349, %v2436, 0
      %v2549 = vsel %vm349, %v2440, 0
      %v2552 = vsel %vm349, %v2444, 0
      %v2555 = vsel %vm349, %v2448, 0
      %2557 = vmatprep.subr.bf16.mxu0 0
      %2558 = vmatpush1.bf16.msra.mxu0 %v2506
      %2559 = vmatprep.subr.bf16.mxu0 0
      %2560 = vmatpush1.bf16.msra.mxu0 %v2507
      %2561 = vmatprep.subr.bf16.mxu0 0
      %2562 = vmatpush1.bf16.msra.mxu0 %v2508
      %2563 = vmatprep.subr.bf16.mxu0 0
      %2564 = vmatpush1.bf16.msra.mxu0 %v2509
      %2565 = vmatprep.subr.bf16.mxu0 0
      %2566 = vmatpush1.bf16.msra.mxu0 %v2510
      %2567 = vmatprep.subr.bf16.mxu0 0
      %2568 = vmatpush1.bf16.msra.mxu0 %v2511
      %2569 = vmatprep.subr.bf16.mxu0 0
      %2570 = vmatpush1.bf16.msra.mxu0 %v2512
      %2571 = vmatprep.subr.bf16.mxu0 0
      %2572 = vmatpush1.bf16.msra.mxu0 %v2513
      %2573 = vmatprep.subr.bf16.mxu0 0
      %2574 = vmatpush1.bf16.msra.mxu0 %v2514
      %2575 = vmatprep.subr.bf16.mxu0 0
      %2576 = vmatpush1.bf16.msra.mxu0 %v2515
      %2577 = vmatprep.subr.bf16.mxu0 0
      %2578 = vmatpush1.bf16.msra.mxu0 %v2516
      %2579 = vmatprep.subr.bf16.mxu0 0
      %2580 = vmatpush1.bf16.msra.mxu0 %v2517
      %2581 = vmatprep.subr.bf16.mxu0 0
      %2582 = vmatpush1.bf16.msra.mxu0 0
      %2583 = vmatprep.subr.bf16.mxu0 0
      %2584 = vmatpush1.bf16.msra.mxu0 0
      %2585 = vmatprep.subr.bf16.mxu0 0
      %2586 = vmatpush1.bf16.msra.mxu0 0
      %2587 = vmatprep.subr.bf16.mxu0 0
      %2588 = vmatpush1.bf16.msra.mxu0 0
      %2589 = vmatprep.mubr.bf16.mxu0 %v2531
      %2590 = vmatmul.mubr.bf16.gmra.mrb[0].mxu0 %v2413
      %v2591 = vpop.f32.mrb[0].mxu0
      %v2592 = vadd.f32 %v2321, %v2591
      %v2593 = vpop.f32.mrb[0].mxu0
      %v2594 = vpop.f32.mrb[0].mxu0
      %v2595 = vadd.f32 %v2324, %v2594
      %v2596 = vpop.f32.mrb[0].mxu0
      %2597 = vmatprep.mubr.bf16.mxu0 %v2534
      %2598 = vmatmul.mubr.bf16.gmra.mrb[0].mxu0 %v2418
      %v2599 = vpop.f32.mrb[0].mxu0
      %v2600 = vadd.f32 %v2329, %v2599
      %v2601 = vpop.f32.mrb[0].mxu0
      %v2602 = vpop.f32.mrb[0].mxu0
      %v2603 = vadd.f32 %v2332, %v2602
      %v2604 = vpop.f32.mrb[0].mxu0
      %2605 = vmatprep.mubr.bf16.mxu0 %v2537
      %2606 = vmatmul.mubr.bf16.gmra.mrb[0].mxu0 %v2422
      %v2607 = vpop.f32.mrb[0].mxu0
      %v2608 = vadd.f32 %v2337, %v2607
      %v2609 = vpop.f32.mrb[0].mxu0
      %v2610 = vpop.f32.mrb[0].mxu0
      %v2611 = vadd.f32 %v2340, %v2610
      %v2612 = vpop.f32.mrb[0].mxu0
      %2613 = vmatprep.mubr.bf16.mxu0 %v2540
      %2614 = vmatmul.mubr.bf16.gmra.mrb[0].mxu0 %v2426
      %v2615 = vpop.f32.mrb[0].mxu0
      %v2616 = vadd.f32 %v2345, %v2615
      %v2617 = vpop.f32.mrb[0].mxu0
      %v2618 = vpop.f32.mrb[0].mxu0
      %v2619 = vadd.f32 %v2348, %v2618
      %v2620 = vpop.f32.mrb[0].mxu0
      %2621 = vmatprep.mubr.bf16.mxu0 %v2543
      %2622 = vmatmul.mubr.bf16.gmra.mrb[0].mxu0 %v2430
      %v2623 = vpop.f32.mrb[0].mxu0
      %v2624 = vadd.f32 %v2353, %v2623
      %v2625 = vpop.f32.mrb[0].mxu0
      %v2626 = vpop.f32.mrb[0].mxu0
      %v2627 = vadd.f32 %v2356, %v2626
      %v2628 = vpop.f32.mrb[0].mxu0
      %2629 = vmatprep.mubr.bf16.mxu0 %v2546
      %2630 = vmatmul.mubr.bf16.gmra.mrb[0].mxu0 %v2434
      %v2631 = vpop.f32.mrb[0].mxu0
      %v2632 = vadd.f32 %v2361, %v2631
      %v2633 = vpop.f32.mrb[0].mxu0
      %v2634 = vpop.f32.mrb[0].mxu0
      %v2635 = vadd.f32 %v2364, %v2634
      %v2636 = vpop.f32.mrb[0].mxu0
      %2637 = vmatprep.mubr.bf16.mxu0 %v2549
      %2638 = vmatmul.mubr.bf16.gmra.mrb[0].mxu0 %v2438
      %v2639 = vpop.f32.mrb[0].mxu0
      %v2640 = vadd.f32 %v2369, %v2639
      %v2641 = vpop.f32.mrb[0].mxu0
      %v2642 = vpop.f32.mrb[0].mxu0
      %v2643 = vadd.f32 %v2372, %v2642
      %v2644 = vpop.f32.mrb[0].mxu0
      %2645 = vmatprep.mubr.bf16.mxu0 %v2552
      %2646 = vmatmul.mubr.bf16.gmra.mrb[0].mxu0 %v2442
      %v2647 = vpop.f32.mrb[0].mxu0
      %v2648 = vadd.f32 %v2377, %v2647
      %v2649 = vpop.f32.mrb[0].mxu0
      %v2650 = vpop.f32.mrb[0].mxu0
      %v2651 = vadd.f32 %v2380, %v2650
      %v2652 = vpop.f32.mrb[0].mxu0
      %2653 = vmatprep.mubr.bf16.mxu0 %v2555
      %2654 = vmatmul.mubr.bf16.gmra.mrb[0].mxu0 %v2446
      %v2655 = vpop.f32.mrb[0].mxu0
      %v2656 = vadd.f32 %v2385, %v2655
      %v2657 = vpop.f32.mrb[0].mxu0
      %v2658 = vpop.f32.mrb[0].mxu0
      %v2659 = vadd.f32 %v2388, %v2658
      %v2660 = vpop.f32.mrb[0].mxu0
      %2661 = vdwg.mxu0
      %v2662 = vld [vmem:[#allocation2 + $0x20] sm:$0xc0]
      %v2663 = vld [vmem:[#allocation2 + $0x28] sm:$0xc0]
      %v2664 = vld [vmem:[#allocation2 + $0x30] sm:$0xff]
      %v2665 = vld [vmem:[#allocation2 + $0x38] sm:$0xff]
      %v2666 = vld [vmem:[#allocation2 + $0x40] sm:$0xff]
      %v2667 = vld [vmem:[#allocation2 + $0x48] sm:$0xff]
      %v2668 = vld [vmem:[#allocation2 + $0x50] sm:$0xff]
      %v2669 = vld [vmem:[#allocation2 + $0x58] sm:$0xff]
      %v2670 = vld [vmem:[#allocation2 + $0x60] sm:$0xff]
      %v2671 = vld [vmem:[#allocation2 + $0x68] sm:$0xff]
      %v2672 = vld [vmem:[#allocation2 + $0x70] sm:$0xff]
      %v2673 = vld [vmem:[#allocation2 + $0x78] sm:$0xff]
      %v2674 = vld [vmem:[#allocation2 + $0x80] sm:$0xff]
      %v2675 = vld [vmem:[#allocation2 + $0x88] sm:$0xff]
      %v2676 = vld [vmem:[#allocation2 + $0x90] sm:$0xff]
      %v2677 = vld [vmem:[#allocation2 + $0x98] sm:$0xff]
      %v2678 = vld [vmem:[#allocation2 + $0xa0] sm:$0xff]
      %v2679 = vld [vmem:[#allocation2 + $0xa8] sm:$0xff]
      %v2680 = vld [vmem:[#allocation2 + $0xb0] sm:$0x3f]
      %v2681 = vld [vmem:[#allocation2 + $0xb8] sm:$0x3f]
      %v2682 = vld [vmem:[%s3 + $0x1e0] sm:$0xf]
      %v2683 = vld [vmem:[%s3 + $0x1e4] sm:$0xf]
      %v2684 = vld [vmem:[%s3 + $0x1e8] sm:$0xf]
      %v2685 = vld [vmem:[%s3 + $0x1ec] sm:$0xf]
      %v2686 = vld [vmem:[%s3 + $0x1f0] sm:$0xf]
      %v2687 = vld [vmem:[%s3 + $0x1f4] sm:$0xf]
      %v2688 = vld [vmem:[%s3 + $0x1f8] sm:$0xf]
      %v2689 = vld [vmem:[%s3 + $0x1fc] sm:$0xf]
      %v2690 = vld [vmem:[%s3 + $0x200] sm:$0xf]
      %v2691 = vld [vmem:[%s3 + $0x204] sm:$0xf]
      %v2692 = vld [vmem:[%s3 + $0x208] sm:$0xf]
      %v2693 = vld [vmem:[%s3 + $0x20c] sm:$0xf]
      %v2694 = vld [vmem:[%s3 + $0x210] sm:$0xf]
      %v2695 = vld [vmem:[%s3 + $0x214] sm:$0xf]
      %v2696 = vld [vmem:[%s3 + $0x218] sm:$0xf]
      %v2697 = vld [vmem:[%s3 + $0x21c] sm:$0xf]
      %v2698 = vld [vmem:[%s3 + $0x220] sm:$0xf]
      %v2699 = vld [vmem:[%s3 + $0x224] sm:$0xf]
      %v2700 = vld [vmem:[%s3 + $0x228] sm:$0xf]
      %v2701 = vld [vmem:[%s3 + $0x22c] sm:$0xf]
      %v2702 = vld [vmem:[%s3 + $0x230] sm:$0xf]
      %v2703 = vld [vmem:[%s3 + $0x234] sm:$0xf]
      %v2704 = vld [vmem:[%s3 + $0x238] sm:$0xf]
      %v2705 = vld [vmem:[%s3 + $0x23c] sm:$0xf]
      %v2726 = vrot.slane %v2662, 6
      %v2727 = vrot.slane %v2664, 6
      %v2728 = vsel %vm1589, %v2726, %v2727
      %v2729 = vrot.slane %v2663, 6
      %v2730 = vrot.slane %v2665, 6
      %v2731 = vsel %vm1589, %v2729, %v2730
      %v2732 = vrot.slane %v2666, 6
      %v2733 = vsel %vm1589, %v2727, %v2732
      %v2734 = vrot.slane %v2667, 6
      %v2735 = vsel %vm1589, %v2730, %v2734
      %v2736 = vrot.slane %v2668, 6
      %v2737 = vsel %vm1589, %v2732, %v2736
      %v2738 = vrot.slane %v2669, 6
      %v2739 = vsel %vm1589, %v2734, %v2738
      %v2740 = vrot.slane %v2670, 6
      %v2741 = vsel %vm1589, %v2736, %v2740
      %v2742 = vrot.slane %v2671, 6
      %v2743 = vsel %vm1589, %v2738, %v2742
      %v2744 = vrot.slane %v2672, 6
      %v2745 = vsel %vm1589, %v2740, %v2744
      %v2746 = vrot.slane %v2673, 6
      %v2747 = vsel %vm1589, %v2742, %v2746
      %v2748 = vrot.slane %v2674, 6
      %v2749 = vsel %vm1589, %v2744, %v2748
      %v2750 = vrot.slane %v2675, 6
      %v2751 = vsel %vm1589, %v2746, %v2750
      %v2752 = vrot.slane %v2676, 6
      %v2753 = vsel %vm1589, %v2748, %v2752
      %v2754 = vrot.slane %v2677, 6
      %v2755 = vsel %vm1589, %v2750, %v2754
      %v2756 = vrot.slane %v2678, 6
      %v2757 = vsel %vm1589, %v2752, %v2756
      %v2758 = vrot.slane %v2679, 6
      %v2759 = vsel %vm1589, %v2754, %v2758
      %v2760 = vrot.slane %v2680, 6
      %v2761 = vsel %vm1589, %v2756, %v2760
      %v2762 = vrot.slane %v2681, 6
      %v2763 = vsel %vm1589, %v2758, %v2762
      %v2797 = vunpack.c.l.b16 %v2682
      %v2798 = vunpack.c.l.b16 %v2683
      %v2799 = vunpack.c.l.b16 %v2684
      %v2800 = vunpack.c.l.b16 %v2685
      %v2801 = vunpack.c.l.b16 %v2686
      %v2802 = vunpack.c.l.b16 %v2687
      %v2803 = vunpack.c.l.b16 %v2688
      %v2804 = vunpack.c.l.b16 %v2689
      %v2805 = vunpack.c.l.b16 %v2690
      %v2806 = vunpack.c.l.b16 %v2691
      %v2807 = vunpack.c.l.b16 %v2692
      %v2808 = vunpack.c.l.b16 %v2693
      %v2809 = vunpack.c.l.b16 %v2694
      %v2810 = vunpack.c.l.b16 %v2695
      %v2811 = vunpack.c.l.b16 %v2696
      %v2812 = vunpack.c.l.b16 %v2697
      %v2813 = vunpack.c.l.b16 %v2698
      %v2814 = vunpack.c.l.b16 %v2699
      %v2815 = vunpack.c.l.b16 %v2700
      %v2816 = vunpack.c.l.b16 %v2701
      %v2817 = vunpack.c.l.b16 %v2702
      %v2818 = vunpack.c.l.b16 %v2703
      %v2819 = vunpack.c.l.b16 %v2704
      %v2820 = vunpack.c.l.b16 %v2705
      %v2821 = vpack.c.b16 %v2798, %v2797
      %v2822 = vpack.c.b16 %v2800, %v2799
      %v2823 = vpack.c.b16 %v2802, %v2801
      %v2824 = vpack.c.b16 %v2804, %v2803
      %v2825 = vpack.c.b16 %v2806, %v2805
      %v2826 = vpack.c.b16 %v2808, %v2807
      %v2827 = vpack.c.b16 %v2810, %v2809
      %v2828 = vpack.c.b16 %v2812, %v2811
      %v2829 = vpack.c.b16 %v2814, %v2813
      %v2830 = vpack.c.b16 %v2816, %v2815
      %v2831 = vpack.c.b16 %v2818, %v2817
      %v2832 = vpack.c.b16 %v2820, %v2819
      %v2846 = vsel %vm349, %v2731, 0
      %v2849 = vsel %vm349, %v2735, 0
      %v2852 = vsel %vm349, %v2739, 0
      %v2855 = vsel %vm349, %v2743, 0
      %v2858 = vsel %vm349, %v2747, 0
      %v2861 = vsel %vm349, %v2751, 0
      %v2864 = vsel %vm349, %v2755, 0
      %v2867 = vsel %vm349, %v2759, 0
      %v2870 = vsel %vm349, %v2763, 0
      %2872 = vmatprep.subr.bf16.mxu0 0
      %2873 = vmatpush1.bf16.msra.mxu0 %v2821
      %2874 = vmatprep.subr.bf16.mxu0 0
      %2875 = vmatpush1.bf16.msra.mxu0 %v2822
      %2876 = vmatprep.subr.bf16.mxu0 0
      %2877 = vmatpush1.bf16.msra.mxu0 %v2823
      %2878 = vmatprep.subr.bf16.mxu0 0
      %2879 = vmatpush1.bf16.msra.mxu0 %v2824
      %2880 = vmatprep.subr.bf16.mxu0 0
      %2881 = vmatpush1.bf16.msra.mxu0 %v2825
      %2882 = vmatprep.subr.bf16.mxu0 0
      %2883 = vmatpush1.bf16.msra.mxu0 %v2826
      %2884 = vmatprep.subr.bf16.mxu0 0
      %2885 = vmatpush1.bf16.msra.mxu0 %v2827
      %2886 = vmatprep.subr.bf16.mxu0 0
      %2887 = vmatpush1.bf16.msra.mxu0 %v2828
      %2888 = vmatprep.subr.bf16.mxu0 0
      %2889 = vmatpush1.bf16.msra.mxu0 %v2829
      %2890 = vmatprep.subr.bf16.mxu0 0
      %2891 = vmatpush1.bf16.msra.mxu0 %v2830
      %2892 = vmatprep.subr.bf16.mxu0 0
      %2893 = vmatpush1.bf16.msra.mxu0 %v2831
      %2894 = vmatprep.subr.bf16.mxu0 0
      %2895 = vmatpush1.bf16.msra.mxu0 %v2832
      %2896 = vmatprep.subr.bf16.mxu0 0
      %2897 = vmatpush1.bf16.msra.mxu0 0
      %2898 = vmatprep.subr.bf16.mxu0 0
      %2899 = vmatpush1.bf16.msra.mxu0 0
      %2900 = vmatprep.subr.bf16.mxu0 0
      %2901 = vmatpush1.bf16.msra.mxu0 0
      %2902 = vmatprep.subr.bf16.mxu0 0
      %2903 = vmatpush1.bf16.msra.mxu0 0
      %2904 = vmatprep.mubr.bf16.mxu0 %v2846
      %2905 = vmatmul.mubr.bf16.gmra.mrb[0].mxu0 %v2728
      %v2906 = vpop.f32.mrb[0].mxu0
      %v2907 = vadd.f32 0.0, %v2906
      %v2908 = vpop.f32.mrb[0].mxu0
      %v2909 = vpop.f32.mrb[0].mxu0
      %v2910 = vadd.f32 0.0, %v2909
      %v2911 = vpop.f32.mrb[0].mxu0
      %2912 = vmatprep.mubr.bf16.mxu0 %v2849
      %2913 = vmatmul.mubr.bf16.gmra.mrb[0].mxu0 %v2733
      %v2914 = vpop.f32.mrb[0].mxu0
      %v2915 = vadd.f32 0.0, %v2914
      %v2916 = vpop.f32.mrb[0].mxu0
      %v2917 = vpop.f32.mrb[0].mxu0
      %v2918 = vadd.f32 0.0, %v2917
      %v2919 = vpop.f32.mrb[0].mxu0
      %2920 = vmatprep.mubr.bf16.mxu0 %v2852
      %2921 = vmatmul.mubr.bf16.gmra.mrb[0].mxu0 %v2737
      %v2922 = vpop.f32.mrb[0].mxu0
      %v2923 = vadd.f32 0.0, %v2922
      %v2924 = vpop.f32.mrb[0].mxu0
      %v2925 = vpop.f32.mrb[0].mxu0
      %v2926 = vadd.f32 0.0, %v2925
      %v2927 = vpop.f32.mrb[0].mxu0
      %2928 = vmatprep.mubr.bf16.mxu0 %v2855
      %2929 = vmatmul.mubr.bf16.gmra.mrb[0].mxu0 %v2741
      %v2930 = vpop.f32.mrb[0].mxu0
      %v2931 = vadd.f32 0.0, %v2930
      %v2932 = vpop.f32.mrb[0].mxu0
      %v2933 = vpop.f32.mrb[0].mxu0
      %v2934 = vadd.f32 0.0, %v2933
      %v2935 = vpop.f32.mrb[0].mxu0
      %2936 = vmatprep.mubr.bf16.mxu0 %v2858
      %2937 = vmatmul.mubr.bf16.gmra.mrb[0].mxu0 %v2745
      %v2938 = vpop.f32.mrb[0].mxu0
      %v2939 = vadd.f32 0.0, %v2938
      %v2940 = vpop.f32.mrb[0].mxu0
      %v2941 = vpop.f32.mrb[0].mxu0
      %v2942 = vadd.f32 0.0, %v2941
      %v2943 = vpop.f32.mrb[0].mxu0
      %2944 = vmatprep.mubr.bf16.mxu0 %v2861
      %2945 = vmatmul.mubr.bf16.gmra.mrb[0].mxu0 %v2749
      %v2946 = vpop.f32.mrb[0].mxu0
      %v2947 = vadd.f32 0.0, %v2946
      %v2948 = vpop.f32.mrb[0].mxu0
      %v2949 = vpop.f32.mrb[0].mxu0
      %v2950 = vadd.f32 0.0, %v2949
      %v2951 = vpop.f32.mrb[0].mxu0
      %2952 = vmatprep.mubr.bf16.mxu0 %v2864
      %2953 = vmatmul.mubr.bf16.gmra.mrb[0].mxu0 %v2753
      %v2954 = vpop.f32.mrb[0].mxu0
      %v2955 = vadd.f32 0.0, %v2954
      %v2956 = vpop.f32.mrb[0].mxu0
      %v2957 = vpop.f32.mrb[0].mxu0
      %v2958 = vadd.f32 0.0, %v2957
      %v2959 = vpop.f32.mrb[0].mxu0
      %2960 = vmatprep.mubr.bf16.mxu0 %v2867
      %2961 = vmatmul.mubr.bf16.gmra.mrb[0].mxu0 %v2757
      %v2962 = vpop.f32.mrb[0].mxu0
      %v2963 = vadd.f32 0.0, %v2962
      %v2964 = vpop.f32.mrb[0].mxu0
      %v2965 = vpop.f32.mrb[0].mxu0
      %v2966 = vadd.f32 0.0, %v2965
      %v2967 = vpop.f32.mrb[0].mxu0
      %2968 = vmatprep.mubr.bf16.mxu0 %v2870
      %2969 = vmatmul.mubr.bf16.gmra.mrb[0].mxu0 %v2761
      %v2970 = vpop.f32.mrb[0].mxu0
      %v2971 = vadd.f32 0.0, %v2970
      %v2972 = vpop.f32.mrb[0].mxu0
      %v2973 = vpop.f32.mrb[0].mxu0
      %v2974 = vadd.f32 0.0, %v2973
      %v2975 = vpop.f32.mrb[0].mxu0
      %2976 = vdwg.mxu0
      %v2977 = vadd.f32 %v2592, %v2907
      %v2978 = vadd.f32 %v2595, %v2910
      %v2979 = vadd.f32 %v2600, %v2915
      %v2980 = vadd.f32 %v2603, %v2918
      %v2981 = vadd.f32 %v2608, %v2923
      %v2982 = vadd.f32 %v2611, %v2926
      %v2983 = vadd.f32 %v2616, %v2931
      %v2984 = vadd.f32 %v2619, %v2934
      %v2985 = vadd.f32 %v2624, %v2939
      %v2986 = vadd.f32 %v2627, %v2942
      %v2987 = vadd.f32 %v2632, %v2947
      %v2988 = vadd.f32 %v2635, %v2950
      %v2989 = vadd.f32 %v2640, %v2955
      %v2990 = vadd.f32 %v2643, %v2958
      %v2991 = vadd.f32 %v2648, %v2963
      %v2992 = vadd.f32 %v2651, %v2966
      %v2993 = vadd.f32 %v2656, %v2971
      %v2994 = vadd.f32 %v2659, %v2974
      %v2995 = vld [vmem:[%s5 + $0x2] sm:$0x1]
      %v2996 = vlaneseq
      %v2997 = vshrl.u32 %v2996, 7
      %v2998 = vsub.s32 0, %v2997
      %v2999 = vrot.slane %v2995, %v2998
      %v3000 = vadd.f32 %v2977, %v2999
      %v3001 = vadd.f32 %v2978, %v2999
      %v3002 = vadd.f32 %v2979, %v2999
      %v3003 = vadd.f32 %v2980, %v2999
      %v3004 = vadd.f32 %v2981, %v2999
      %v3005 = vadd.f32 %v2982, %v2999
      %v3006 = vadd.f32 %v2983, %v2999
      %v3007 = vadd.f32 %v2984, %v2999
      %v3008 = vadd.f32 %v2985, %v2999
      %v3009 = vadd.f32 %v2986, %v2999
      %v3010 = vadd.f32 %v2987, %v2999
      %v3011 = vadd.f32 %v2988, %v2999
      %v3012 = vadd.f32 %v2989, %v2999
      %v3013 = vadd.f32 %v2990, %v2999
      %v3014 = vadd.f32 %v2991, %v2999
      %v3015 = vadd.f32 %v2992, %v2999
      %v3016 = vadd.f32 %v2993, %v2999
      %v3017 = vadd.f32 %v2994, %v2999
      %v3018 = vmax.f32 %v3000, 0.0
      %v3019 = vmax.f32 %v3001, 0.0
      %v3020 = vmax.f32 %v3002, 0.0
      %v3021 = vmax.f32 %v3003, 0.0
      %v3022 = vmax.f32 %v3004, 0.0
      %v3023 = vmax.f32 %v3005, 0.0
      %v3024 = vmax.f32 %v3006, 0.0
      %v3025 = vmax.f32 %v3007, 0.0
      %v3026 = vmax.f32 %v3008, 0.0
      %v3027 = vmax.f32 %v3009, 0.0
      %v3028 = vmax.f32 %v3010, 0.0
      %v3029 = vmax.f32 %v3011, 0.0
      %v3030 = vmax.f32 %v3012, 0.0
      %v3031 = vmax.f32 %v3013, 0.0
      %v3032 = vmax.f32 %v3014, 0.0
      %v3033 = vmax.f32 %v3015, 0.0
      %v3034 = vmax.f32 %v3016, 0.0
      %v3035 = vmax.f32 %v3017, 0.0
      %v3036 = vsel %vm465, %v3018, 0.0
      %v3037 = vsel %vm466, %v3019, 0.0
      %v3038 = vsel %vm467, %v3020, 0.0
      %v3039 = vsel %vm468, %v3021, 0.0
      %v3040 = vsel %vm469, %v3022, 0.0
      %v3041 = vsel %vm470, %v3023, 0.0
      %v3042 = vsel %vm471, %v3024, 0.0
      %v3043 = vsel %vm472, %v3025, 0.0
      %v3044 = vsel %vm473, %v3026, 0.0
      %v3045 = vsel %vm474, %v3027, 0.0
      %v3046 = vsel %vm475, %v3028, 0.0
      %v3047 = vsel %vm476, %v3029, 0.0
      %v3048 = vsel %vm477, %v3030, 0.0
      %v3049 = vsel %vm478, %v3031, 0.0
      %v3050 = vsel %vm479, %v3032, 0.0
      %v3051 = vsel %vm480, %v3033, 0.0
      %v3052 = vsel %vm481, %v3034, 0.0
      %v3053 = vsel %vm482, %v3035, 0.0
      %v3054 = vadd.f32 %v3036, %v1900
      %v3055 = vadd.f32 %v3037, %v1901
      %v3056 = vadd.f32 %v3038, %v1902
      %v3057 = vadd.f32 %v3039, %v1903
      %v3058 = vadd.f32 %v3040, %v1904
      %v3059 = vadd.f32 %v3041, %v1905
      %v3060 = vadd.f32 %v3042, %v1906
      %v3061 = vadd.f32 %v3043, %v1907
      %v3062 = vadd.f32 %v3044, %v1908
      %v3063 = vadd.f32 %v3045, %v1909
      %v3064 = vadd.f32 %v3046, %v1910
      %v3065 = vadd.f32 %v3047, %v1911
      %v3066 = vadd.f32 %v3048, %v1912
      %v3067 = vadd.f32 %v3049, %v1913
      %v3068 = vadd.f32 %v3050, %v1914
      %v3069 = vadd.f32 %v3051, %v1915
      %v3070 = vadd.f32 %v3052, %v1916
      %v3071 = vadd.f32 %v3053, %v1917
      %v3072 = vpack.c.bf16 %v3055, %v3054
      %v3073 = vpack.c.bf16 %v3057, %v3056
      %v3074 = vpack.c.bf16 %v3059, %v3058
      %v3075 = vpack.c.bf16 %v3061, %v3060
      %v3076 = vpack.c.bf16 %v3063, %v3062
      %v3077 = vpack.c.bf16 %v3065, %v3064
      %v3078 = vpack.c.bf16 %v3067, %v3066
      %v3079 = vpack.c.bf16 %v3069, %v3068
      %v3080 = vpack.c.bf16 %v3071, %v3070
      %v3082 = vshrl.u32 %v3072, 16
      %v3084 = vrot.slane %v3082, 7
      %v3085 = vshll.u32 %v3072, 16
      %v3087 = vor.u32 %v3084, %v3085
      %v3089 = vshrl.u32 %v3073, 16
      %v3091 = vrot.slane %v3089, 7
      %v3092 = vshll.u32 %v3073, 16
      %v3094 = vor.u32 %v3091, %v3092
      %v3095 = vsel %vm777, %v3084, %v3094
      %v3097 = vshrl.u32 %v3074, 16
      %v3099 = vrot.slane %v3097, 7
      %v3100 = vshll.u32 %v3074, 16
      %v3102 = vor.u32 %v3099, %v3100
      %v3103 = vsel %vm777, %v3091, %v3102
      %v3105 = vshrl.u32 %v3075, 16
      %v3107 = vrot.slane %v3105, 7
      %v3108 = vshll.u32 %v3075, 16
      %v3110 = vor.u32 %v3107, %v3108
      %v3111 = vsel %vm777, %v3099, %v3110
      %v3113 = vshrl.u32 %v3076, 16
      %v3115 = vrot.slane %v3113, 7
      %v3116 = vshll.u32 %v3076, 16
      %v3118 = vor.u32 %v3115, %v3116
      %v3119 = vsel %vm777, %v3107, %v3118
      %v3121 = vshrl.u32 %v3077, 16
      %v3123 = vrot.slane %v3121, 7
      %v3124 = vshll.u32 %v3077, 16
      %v3126 = vor.u32 %v3123, %v3124
      %v3127 = vsel %vm777, %v3115, %v3126
      %v3129 = vshrl.u32 %v3078, 16
      %v3131 = vrot.slane %v3129, 7
      %v3132 = vshll.u32 %v3078, 16
      %v3134 = vor.u32 %v3131, %v3132
      %v3135 = vsel %vm777, %v3123, %v3134
      %v3137 = vshrl.u32 %v3079, 16
      %v3139 = vrot.slane %v3137, 7
      %v3140 = vshll.u32 %v3079, 16
      %v3142 = vor.u32 %v3139, %v3140
      %v3143 = vsel %vm777, %v3131, %v3142
      %v3145 = vshrl.u32 %v3080, 16
      %v3147 = vrot.slane %v3145, 7
      %v3148 = vshll.u32 %v3080, 16
      %v3150 = vor.u32 %v3147, %v3148
      %v3151 = vsel %vm777, %v3139, %v3150
      %v3162 = vld [vmem:[#allocation2 + $0x20] sm:$0xff]
      %v3163 = vsel %vm861, %v3087, %v3162
      %3164 = vst [vmem:[#allocation2 + $0x20] sm:$0xff] %v3163
      %3165 = vst.msk [vmem:[#allocation2 + $0x30] sm:$0xff] %vm349, %v3095
      %3166 = vst.msk [vmem:[#allocation2 + $0x40] sm:$0xff] %vm349, %v3103
      %3167 = vst.msk [vmem:[#allocation2 + $0x50] sm:$0xff] %vm349, %v3111
      %3168 = vst.msk [vmem:[#allocation2 + $0x60] sm:$0xff] %vm349, %v3119
      %3169 = vst.msk [vmem:[#allocation2 + $0x70] sm:$0xff] %vm349, %v3127
      %3170 = vst.msk [vmem:[#allocation2 + $0x80] sm:$0xff] %vm349, %v3135
      %3171 = vst.msk [vmem:[#allocation2 + $0x90] sm:$0xff] %vm349, %v3143
      %3172 = vst.msk [vmem:[#allocation2 + $0xa0] sm:$0xff] %vm349, %v3151
      %v3173 = vld [vmem:[#allocation2 + $0xb0] sm:$0x1]
      %v3174 = vsel %vm874, %v3147, %v3173
      %3175 = vst [vmem:[#allocation2 + $0xb0] sm:$0x1] %v3174
      %3185 = vrot.lane.b32.xlu0 %v3072, 64
      %v3186 = vpop.permute.xlu0 %3185
      %3187 = vrot.lane.b32.xlu0 %v3073, 64
      %v3188 = vpop.permute.xlu0 %3187
      %3189 = vrot.lane.b32.xlu0 %v3074, 64
      %v3190 = vpop.permute.xlu0 %3189
      %3191 = vrot.lane.b32.xlu0 %v3075, 64
      %v3192 = vpop.permute.xlu0 %3191
      %3193 = vrot.lane.b32.xlu0 %v3076, 64
      %v3194 = vpop.permute.xlu0 %3193
      %3195 = vrot.lane.b32.xlu0 %v3077, 64
      %v3196 = vpop.permute.xlu0 %3195
      %3197 = vrot.lane.b32.xlu0 %v3078, 64
      %v3198 = vpop.permute.xlu0 %3197
      %3199 = vrot.lane.b32.xlu0 %v3079, 64
      %v3200 = vpop.permute.xlu0 %3199
      %3201 = vrot.lane.b32.xlu0 %v3080, 64
      %v3202 = vpop.permute.xlu0 %3201
      %3212 = vst.msk [vmem:[#allocation2 + $0x20] sm:$0xff] %vm914, %v3186
      %3213 = vst.msk [vmem:[#allocation2 + $0x30] sm:$0xff] %vm914, %v3188
      %3214 = vst.msk [vmem:[#allocation2 + $0x40] sm:$0xff] %vm914, %v3190
      %3215 = vst.msk [vmem:[#allocation2 + $0x50] sm:$0xff] %vm914, %v3192
      %3216 = vst.msk [vmem:[#allocation2 + $0x60] sm:$0xff] %vm914, %v3194
      %3217 = vst.msk [vmem:[#allocation2 + $0x70] sm:$0xff] %vm914, %v3196
      %3218 = vst.msk [vmem:[#allocation2 + $0x80] sm:$0xff] %vm914, %v3198
      %3219 = vst.msk [vmem:[#allocation2 + $0x90] sm:$0xff] %vm914, %v3200
      %3220 = vst.msk [vmem:[#allocation2 + $0xa0] sm:$0xff] %vm914, %v3202
      %v3221 = vrot.slane %v3085, 1
      %v3222 = vor.u32 %v3082, %v3221
      %v3223 = vrot.slane %v3092, 1
      %v3224 = vsel %vm924, %v3222, %v3223
      %v3225 = vor.u32 %v3089, %v3223
      %v3226 = vrot.slane %v3100, 1
      %v3227 = vsel %vm924, %v3225, %v3226
      %v3228 = vor.u32 %v3097, %v3226
      %v3229 = vrot.slane %v3108, 1
      %v3230 = vsel %vm924, %v3228, %v3229
      %v3231 = vor.u32 %v3105, %v3229
      %v3232 = vrot.slane %v3116, 1
      %v3233 = vsel %vm924, %v3231, %v3232
      %v3234 = vor.u32 %v3113, %v3232
      %v3235 = vrot.slane %v3124, 1
      %v3236 = vsel %vm924, %v3234, %v3235
      %v3237 = vor.u32 %v3121, %v3235
      %v3238 = vrot.slane %v3132, 1
      %v3239 = vsel %vm924, %v3237, %v3238
      %v3240 = vor.u32 %v3129, %v3238
      %v3241 = vrot.slane %v3140, 1
      %v3242 = vsel %vm924, %v3240, %v3241
      %v3243 = vor.u32 %v3137, %v3241
      %v3244 = vrot.slane %v3148, 1
      %v3245 = vsel %vm924, %v3243, %v3244
      %v3246 = vor.u32 %v3145, %v3244
      %v3257 = vld [vmem:[#allocation2 + $0x18] sm:$0x80]
      %v3258 = vsel %vm963, %v3221, %v3257
      %3259 = vst [vmem:[#allocation2 + $0x18] sm:$0x80] %v3258
      %3260 = vst.msk [vmem:[#allocation2 + $0x28] sm:$0xff] %vm349, %v3224
      %3261 = vst.msk [vmem:[#allocation2 + $0x38] sm:$0xff] %vm349, %v3227
      %3262 = vst.msk [vmem:[#allocation2 + $0x48] sm:$0xff] %vm349, %v3230
      %3263 = vst.msk [vmem:[#allocation2 + $0x58] sm:$0xff] %vm349, %v3233
      %3264 = vst.msk [vmem:[#allocation2 + $0x68] sm:$0xff] %vm349, %v3236
      %3265 = vst.msk [vmem:[#allocation2 + $0x78] sm:$0xff] %vm349, %v3239
      %3266 = vst.msk [vmem:[#allocation2 + $0x88] sm:$0xff] %vm349, %v3242
      %3267 = vst.msk [vmem:[#allocation2 + $0x98] sm:$0xff] %vm349, %v3245
      %v3268 = vld [vmem:[#allocation2 + $0xa8] sm:$0xff]
      %v3269 = vsel %vm975, %v3246, %v3268
      %3270 = vst [vmem:[#allocation2 + $0xa8] sm:$0xff] %v3269
      %v3271 = vld [vmem:[%s4] sm:$0xf]
      %v3272 = vld [vmem:[%s4 + $0x4] sm:$0xf]
      %v3273 = vld [vmem:[%s4 + $0x8] sm:$0xf]
      %v3274 = vld [vmem:[%s4 + $0xc] sm:$0xf]
      %v3275 = vld [vmem:[%s4 + $0x10] sm:$0xf]
      %v3276 = vld [vmem:[%s4 + $0x14] sm:$0xf]
      %v3277 = vld [vmem:[%s4 + $0x18] sm:$0xf]
      %v3278 = vld [vmem:[%s4 + $0x1c] sm:$0xf]
      %v3279 = vld [vmem:[%s6 + $0x3] sm:$0x1]
      %v3280 = vlaneseq
      %v3281 = vshrl.u32 %v3280, 7
      %v3282 = vsub.s32 0, %v3281
      %v3283 = vrot.slane %v3279, %v3282
      %v3292 = vunpack.c.l.b16 %v3271
      %v3293 = vunpack.c.l.b16 %v3272
      %v3294 = vunpack.c.l.b16 %v3273
      %v3295 = vunpack.c.l.b16 %v3274
      %v3296 = vunpack.c.l.b16 %v3275
      %v3297 = vunpack.c.l.b16 %v3276
      %v3298 = vunpack.c.l.b16 %v3277
      %v3299 = vunpack.c.l.b16 %v3278
      %v3300 = vpack.c.b16 %v3293, %v3292
      %v3301 = vpack.c.b16 %v3295, %v3294
      %v3302 = vpack.c.b16 %v3297, %v3296
      %v3303 = vpack.c.b16 %v3299, %v3298
      %v3308 = vsel %vm349, %v3072, 0
      %v3310 = vsel %vm349, %v3073, 0
      %v3312 = vsel %vm349, %v3074, 0
      %v3314 = vsel %vm349, %v3075, 0
      %v3316 = vsel %vm349, %v3076, 0
      %v3318 = vsel %vm349, %v3077, 0
      %v3320 = vsel %vm349, %v3078, 0
      %v3322 = vsel %vm349, %v3079, 0
      %v3324 = vsel %vm349, %v3080, 0
      %3326 = vmatprep.subr.bf16.mxu0 0
      %3327 = vmatpush1.bf16.msra.mxu0 %v3300
      %3328 = vmatprep.subr.bf16.mxu0 0
      %3329 = vmatpush1.bf16.msra.mxu0 %v3301
      %3330 = vmatprep.subr.bf16.mxu0 0
      %3331 = vmatpush1.bf16.msra.mxu0 %v3302
      %3332 = vmatprep.subr.bf16.mxu0 0
      %3333 = vmatpush1.bf16.msra.mxu0 %v3303
      %3334 = vmatprep.subr.bf16.mxu0 0
      %3335 = vmatpush1.bf16.msra.mxu0 0
      %3336 = vmatprep.subr.bf16.mxu0 0
      %3337 = vmatpush1.bf16.msra.mxu0 0
      %3338 = vmatprep.subr.bf16.mxu0 0
      %3339 = vmatpush1.bf16.msra.mxu0 0
      %3340 = vmatprep.subr.bf16.mxu0 0
      %3341 = vmatpush1.bf16.msra.mxu0 0
      %3342 = vmatprep.subr.bf16.mxu0 0
      %3343 = vmatpush1.bf16.msra.mxu0 0
      %3344 = vmatprep.subr.bf16.mxu0 0
      %3345 = vmatpush1.bf16.msra.mxu0 0
      %3346 = vmatprep.subr.bf16.mxu0 0
      %3347 = vmatpush1.bf16.msra.mxu0 0
      %3348 = vmatprep.subr.bf16.mxu0 0
      %3349 = vmatpush1.bf16.msra.mxu0 0
      %3350 = vmatprep.subr.bf16.mxu0 0
      %3351 = vmatpush1.bf16.msra.mxu0 0
      %3352 = vmatprep.subr.bf16.mxu0 0
      %3353 = vmatpush1.bf16.msra.mxu0 0
      %3354 = vmatprep.subr.bf16.mxu0 0
      %3355 = vmatpush1.bf16.msra.mxu0 0
      %3356 = vmatprep.subr.bf16.mxu0 0
      %3357 = vmatpush1.bf16.msra.mxu0 0
      %3358 = vmatprep.mubr.bf16.mxu0 0
      %3359 = vmatmul.mubr.bf16.gmra.mrb[0].mxu0 %v3308
      %v3360 = vpop.f32.mrb[0].mxu0
      %v3361 = vadd.f32 %v3283, %v3360
      %v3362 = vpop.f32.mrb[0].mxu0
      %v3363 = vpop.f32.mrb[0].mxu0
      %v3364 = vadd.f32 %v3283, %v3363
      %v3365 = vpop.f32.mrb[0].mxu0
      %3366 = vmatprep.mubr.bf16.mxu0 0
      %3367 = vmatmul.mubr.bf16.gmra.mrb[0].mxu0 %v3310
      %v3368 = vpop.f32.mrb[0].mxu0
      %v3369 = vadd.f32 %v3283, %v3368
      %v3370 = vpop.f32.mrb[0].mxu0
      %v3371 = vpop.f32.mrb[0].mxu0
      %v3372 = vadd.f32 %v3283, %v3371
      %v3373 = vpop.f32.mrb[0].mxu0
      %3374 = vmatprep.mubr.bf16.mxu0 0
      %3375 = vmatmul.mubr.bf16.gmra.mrb[0].mxu0 %v3312
      %v3376 = vpop.f32.mrb[0].mxu0
      %v3377 = vadd.f32 %v3283, %v3376
      %v3378 = vpop.f32.mrb[0].mxu0
      %v3379 = vpop.f32.mrb[0].mxu0
      %v3380 = vadd.f32 %v3283, %v3379
      %v3381 = vpop.f32.mrb[0].mxu0
      %3382 = vmatprep.mubr.bf16.mxu0 0
      %3383 = vmatmul.mubr.bf16.gmra.mrb[0].mxu0 %v3314
      %v3384 = vpop.f32.mrb[0].mxu0
      %v3385 = vadd.f32 %v3283, %v3384
      %v3386 = vpop.f32.mrb[0].mxu0
      %v3387 = vpop.f32.mrb[0].mxu0
      %v3388 = vadd.f32 %v3283, %v3387
      %v3389 = vpop.f32.mrb[0].mxu0
      %3390 = vmatprep.mubr.bf16.mxu0 0
      %3391 = vmatmul.mubr.bf16.gmra.mrb[0].mxu0 %v3316
      %v3392 = vpop.f32.mrb[0].mxu0
      %v3393 = vadd.f32 %v3283, %v3392
      %v3394 = vpop.f32.mrb[0].mxu0
      %v3395 = vpop.f32.mrb[0].mxu0
      %v3396 = vadd.f32 %v3283, %v3395
      %v3397 = vpop.f32.mrb[0].mxu0
      %3398 = vmatprep.mubr.bf16.mxu0 0
      %3399 = vmatmul.mubr.bf16.gmra.mrb[0].mxu0 %v3318
      %v3400 = vpop.f32.mrb[0].mxu0
      %v3401 = vadd.f32 %v3283, %v3400
      %v3402 = vpop.f32.mrb[0].mxu0
      %v3403 = vpop.f32.mrb[0].mxu0
      %v3404 = vadd.f32 %v3283, %v3403
      %v3405 = vpop.f32.mrb[0].mxu0
      %3406 = vmatprep.mubr.bf16.mxu0 0
      %3407 = vmatmul.mubr.bf16.gmra.mrb[0].mxu0 %v3320
      %v3408 = vpop.f32.mrb[0].mxu0
      %v3409 = vadd.f32 %v3283, %v3408
      %v3410 = vpop.f32.mrb[0].mxu0
      %v3411 = vpop.f32.mrb[0].mxu0
      %v3412 = vadd.f32 %v3283, %v3411
      %v3413 = vpop.f32.mrb[0].mxu0
      %3414 = vmatprep.mubr.bf16.mxu0 0
      %3415 = vmatmul.mubr.bf16.gmra.mrb[0].mxu0 %v3322
      %v3416 = vpop.f32.mrb[0].mxu0
      %v3417 = vadd.f32 %v3283, %v3416
      %v3418 = vpop.f32.mrb[0].mxu0
      %v3419 = vpop.f32.mrb[0].mxu0
      %v3420 = vadd.f32 %v3283, %v3419
      %v3421 = vpop.f32.mrb[0].mxu0
      %3422 = vmatprep.mubr.bf16.mxu0 0
      %3423 = vmatmul.mubr.bf16.gmra.mrb[0].mxu0 %v3324
      %v3424 = vpop.f32.mrb[0].mxu0
      %v3425 = vadd.f32 %v3283, %v3424
      %v3426 = vpop.f32.mrb[0].mxu0
      %v3427 = vpop.f32.mrb[0].mxu0
      %v3428 = vadd.f32 %v3283, %v3427
      %v3429 = vpop.f32.mrb[0].mxu0
      %3430 = vdwg.mxu0
      %vm3431 = vcmask 130048
      %v3432 = vsel %vm3431, %v3361, 0.0
      %v3433 = vsel %vm3431, %v3364, 0.0
      %v3434 = vsel %vm3431, %v3369, 0.0
      %v3435 = vsel %vm3431, %v3372, 0.0
      %v3436 = vsel %vm3431, %v3377, 0.0
      %v3437 = vsel %vm3431, %v3380, 0.0
      %v3438 = vsel %vm3431, %v3385, 0.0
      %v3439 = vsel %vm3431, %v3388, 0.0
      %v3440 = vsel %vm3431, %v3393, 0.0
      %v3441 = vsel %vm3431, %v3396, 0.0
      %v3442 = vsel %vm3431, %v3401, 0.0
      %v3443 = vsel %vm3431, %v3404, 0.0
      %v3444 = vsel %vm3431, %v3409, 0.0
      %v3445 = vsel %vm3431, %v3412, 0.0
      %v3446 = vsel %vm3431, %v3417, 0.0
      %v3447 = vsel %vm3431, %v3420, 0.0
      %v3448 = vsel %vm3431, %v3425, 0.0
      %v3449 = vsel %vm3431, %v3428, 0.0
      %3450 = vst [vmem:[%s341] sm:$0xff] %v3432
      %3451 = vst [vmem:[%s341 + $0x8] sm:$0xff] %v3433
      %3452 = vst [vmem:[%s341 + $0x10] sm:$0xff] %v3434
      %3453 = vst [vmem:[%s341 + $0x18] sm:$0xff] %v3435
      %3454 = vst [vmem:[%s341 + $0x20] sm:$0xff] %v3436
      %3455 = vst [vmem:[%s341 + $0x28] sm:$0xff] %v3437
      %3456 = vst [vmem:[%s341 + $0x30] sm:$0xff] %v3438
      %3457 = vst [vmem:[%s341 + $0x38] sm:$0xff] %v3439
      %3458 = vst [vmem:[%s341 + $0x40] sm:$0xff] %v3440
      %3459 = vst [vmem:[%s341 + $0x48] sm:$0xff] %v3441
      %3460 = vst [vmem:[%s341 + $0x50] sm:$0xff] %v3442
      %3461 = vst [vmem:[%s341 + $0x58] sm:$0xff] %v3443
      %3462 = vst [vmem:[%s341 + $0x60] sm:$0xff] %v3444
      %3463 = vst [vmem:[%s341 + $0x68] sm:$0xff] %v3445
      %3464 = vst [vmem:[%s341 + $0x70] sm:$0xff] %v3446
      %3465 = vst [vmem:[%s341 + $0x78] sm:$0xff] %v3447
      %3466 = vst [vmem:[%s341 + $0x80] sm:$0xff] %v3448
      %3467 = vst [vmem:[%s341 + $0x88] sm:$0xff] %v3449
      %v3468 = vld [vmem:[#allocation2 + $0x10] sm:$0xfc]
      %v3469 = vld [vmem:[#allocation2 + $0x18] sm:$0xfc]
      %v3470 = vld [vmem:[#allocation2 + $0x20] sm:$0xff]
      %v3471 = vld [vmem:[#allocation2 + $0x28] sm:$0xff]
      %v3472 = vld [vmem:[#allocation2 + $0x30] sm:$0xff]
      %v3473 = vld [vmem:[#allocation2 + $0x38] sm:$0xff]
      %v3474 = vld [vmem:[#allocation2 + $0x40] sm:$0xff]
      %v3475 = vld [vmem:[#allocation2 + $0x48] sm:$0xff]
      %v3476 = vld [vmem:[#allocation2 + $0x50] sm:$0xff]
      %v3477 = vld [vmem:[#allocation2 + $0x58] sm:$0xff]
      %v3478 = vld [vmem:[#allocation2 + $0x60] sm:$0xff]
      %v3479 = vld [vmem:[#allocation2 + $0x68] sm:$0xff]
      %v3480 = vld [vmem:[#allocation2 + $0x70] sm:$0xff]
      %v3481 = vld [vmem:[#allocation2 + $0x78] sm:$0xff]
      %v3482 = vld [vmem:[#allocation2 + $0x80] sm:$0xff]
      %v3483 = vld [vmem:[#allocation2 + $0x88] sm:$0xff]
      %v3484 = vld [vmem:[#allocation2 + $0x90] sm:$0xff]
      %v3485 = vld [vmem:[#allocation2 + $0x98] sm:$0xff]
      %v3486 = vld [vmem:[#allocation2 + $0xa0] sm:$0x3]
      %v3487 = vld [vmem:[#allocation2 + $0xa8] sm:$0x3]
      %v3488 = vld [vmem:[%s3 + $0x240] sm:$0xf]
      %v3489 = vld [vmem:[%s3 + $0x244] sm:$0xf]
      %v3490 = vld [vmem:[%s3 + $0x248] sm:$0xf]
      %v3491 = vld [vmem:[%s3 + $0x24c] sm:$0xf]
      %v3492 = vld [vmem:[%s3 + $0x250] sm:$0xf]
      %v3493 = vld [vmem:[%s3 + $0x254] sm:$0xf]
      %v3494 = vld [vmem:[%s3 + $0x258] sm:$0xf]
      %v3495 = vld [vmem:[%s3 + $0x25c] sm:$0xf]
      %v3496 = vld [vmem:[%s3 + $0x260] sm:$0xf]
      %v3497 = vld [vmem:[%s3 + $0x264] sm:$0xf]
      %v3498 = vld [vmem:[%s3 + $0x268] sm:$0xf]
      %v3499 = vld [vmem:[%s3 + $0x26c] sm:$0xf]
      %v3500 = vld [vmem:[%s3 + $0x270] sm:$0xf]
      %v3501 = vld [vmem:[%s3 + $0x274] sm:$0xf]
      %v3502 = vld [vmem:[%s3 + $0x278] sm:$0xf]
      %v3503 = vld [vmem:[%s3 + $0x27c] sm:$0xf]
      %v3504 = vld [vmem:[%s3 + $0x280] sm:$0xf]
      %v3505 = vld [vmem:[%s3 + $0x284] sm:$0xf]
      %v3506 = vld [vmem:[%s3 + $0x288] sm:$0xf]
      %v3507 = vld [vmem:[%s3 + $0x28c] sm:$0xf]
      %v3508 = vld [vmem:[%s3 + $0x290] sm:$0xf]
      %v3509 = vld [vmem:[%s3 + $0x294] sm:$0xf]
      %v3510 = vld [vmem:[%s3 + $0x298] sm:$0xf]
      %v3511 = vld [vmem:[%s3 + $0x29c] sm:$0xf]
      %v3512 = vld [vmem:[#allocation2 + $0xa0] sm:$0xff]
      %v3513 = vld [vmem:[#allocation2 + $0xa8] sm:$0xff]
      %v3514 = vld [vmem:[%s3 + $0x2a0] sm:$0xf]
      %v3515 = vld [vmem:[%s3 + $0x2a4] sm:$0xf]
      %v3516 = vld [vmem:[%s3 + $0x2a8] sm:$0xf]
      %v3517 = vld [vmem:[%s3 + $0x2ac] sm:$0xf]
      %v3518 = vld [vmem:[%s3 + $0x2b0] sm:$0xf]
      %v3519 = vld [vmem:[%s3 + $0x2b4] sm:$0xf]
      %v3520 = vld [vmem:[%s3 + $0x2b8] sm:$0xf]
      %v3521 = vld [vmem:[%s3 + $0x2bc] sm:$0xf]
      %v3522 = vld [vmem:[%s3 + $0x2c0] sm:$0xf]
      %v3523 = vld [vmem:[%s3 + $0x2c4] sm:$0xf]
      %v3524 = vld [vmem:[%s3 + $0x2c8] sm:$0xf]
      %v3525 = vld [vmem:[%s3 + $0x2cc] sm:$0xf]
      %v3526 = vld [vmem:[%s3 + $0x2d0] sm:$0xf]
      %v3527 = vld [vmem:[%s3 + $0x2d4] sm:$0xf]
      %v3528 = vld [vmem:[%s3 + $0x2d8] sm:$0xf]
      %v3529 = vld [vmem:[%s3 + $0x2dc] sm:$0xf]
      %v3530 = vld [vmem:[%s3 + $0x2e0] sm:$0xf]
      %v3531 = vld [vmem:[%s3 + $0x2e4] sm:$0xf]
      %v3532 = vld [vmem:[%s3 + $0x2e8] sm:$0xf]
      %v3533 = vld [vmem:[%s3 + $0x2ec] sm:$0xf]
      %v3534 = vld [vmem:[%s3 + $0x2f0] sm:$0xf]
      %v3535 = vld [vmem:[%s3 + $0x2f4] sm:$0xf]
      %v3536 = vld [vmem:[%s3 + $0x2f8] sm:$0xf]
      %v3537 = vld [vmem:[%s3 + $0x2fc] sm:$0xf]
      %v3562 = vunpack.c.l.b16 %v3514
      %v3563 = vunpack.c.l.b16 %v3515
      %v3564 = vunpack.c.l.b16 %v3516
      %v3565 = vunpack.c.l.b16 %v3517
      %v3566 = vunpack.c.l.b16 %v3518
      %v3567 = vunpack.c.l.b16 %v3519
      %v3568 = vunpack.c.l.b16 %v3520
      %v3569 = vunpack.c.l.b16 %v3521
      %v3570 = vunpack.c.l.b16 %v3522
      %v3571 = vunpack.c.l.b16 %v3523
      %v3572 = vunpack.c.l.b16 %v3524
      %v3573 = vunpack.c.l.b16 %v3525
      %v3574 = vunpack.c.l.b16 %v3526
      %v3575 = vunpack.c.l.b16 %v3527
      %v3576 = vunpack.c.l.b16 %v3528
      %v3577 = vunpack.c.l.b16 %v3529
      %v3578 = vunpack.c.l.b16 %v3530
      %v3579 = vunpack.c.l.b16 %v3531
      %v3580 = vunpack.c.l.b16 %v3532
      %v3581 = vunpack.c.l.b16 %v3533
      %v3582 = vunpack.c.l.b16 %v3534
      %v3583 = vunpack.c.l.b16 %v3535
      %v3584 = vunpack.c.l.b16 %v3536
      %v3585 = vunpack.c.l.b16 %v3537
      %v3586 = vpack.c.b16 %v3563, %v3562
      %v3587 = vpack.c.b16 %v3565, %v3564
      %v3588 = vpack.c.b16 %v3567, %v3566
      %v3589 = vpack.c.b16 %v3569, %v3568
      %v3590 = vpack.c.b16 %v3571, %v3570
      %v3591 = vpack.c.b16 %v3573, %v3572
      %v3592 = vpack.c.b16 %v3575, %v3574
      %v3593 = vpack.c.b16 %v3577, %v3576
      %v3594 = vpack.c.b16 %v3579, %v3578
      %v3595 = vpack.c.b16 %v3581, %v3580
      %v3596 = vpack.c.b16 %v3583, %v3582
      %v3597 = vpack.c.b16 %v3585, %v3584
      %v3611 = vsel %vm349, %v3471, 0
      %v3614 = vsel %vm349, %v3473, 0
      %v3617 = vsel %vm349, %v3475, 0
      %v3620 = vsel %vm349, %v3477, 0
      %v3623 = vsel %vm349, %v3479, 0
      %v3626 = vsel %vm349, %v3481, 0
      %v3629 = vsel %vm349, %v3483, 0
      %v3632 = vsel %vm349, %v3485, 0
      %v3635 = vsel %vm349, %v3513, 0
      %3637 = vmatprep.subr.bf16.mxu0 0
      %3638 = vmatpush1.bf16.msra.mxu0 %v3586
      %3639 = vmatprep.subr.bf16.mxu0 0
      %3640 = vmatpush1.bf16.msra.mxu0 %v3587
      %3641 = vmatprep.subr.bf16.mxu0 0
      %3642 = vmatpush1.bf16.msra.mxu0 %v3588
      %3643 = vmatprep.subr.bf16.mxu0 0
      %3644 = vmatpush1.bf16.msra.mxu0 %v3589
      %3645 = vmatprep.subr.bf16.mxu0 0
      %3646 = vmatpush1.bf16.msra.mxu0 %v3590
      %3647 = vmatprep.subr.bf16.mxu0 0
      %3648 = vmatpush1.bf16.msra.mxu0 %v3591
      %3649 = vmatprep.subr.bf16.mxu0 0
      %3650 = vmatpush1.bf16.msra.mxu0 %v3592
      %3651 = vmatprep.subr.bf16.mxu0 0
      %3652 = vmatpush1.bf16.msra.mxu0 %v3593
      %3653 = vmatprep.subr.bf16.mxu0 0
      %3654 = vmatpush1.bf16.msra.mxu0 %v3594
      %3655 = vmatprep.subr.bf16.mxu0 0
      %3656 = vmatpush1.bf16.msra.mxu0 %v3595
      %3657 = vmatprep.subr.bf16.mxu0 0
      %3658 = vmatpush1.bf16.msra.mxu0 %v3596
      %3659 = vmatprep.subr.bf16.mxu0 0
      %3660 = vmatpush1.bf16.msra.mxu0 %v3597
      %3661 = vmatprep.subr.bf16.mxu0 0
      %3662 = vmatpush1.bf16.msra.mxu0 0
      %3663 = vmatprep.subr.bf16.mxu0 0
      %3664 = vmatpush1.bf16.msra.mxu0 0
      %3665 = vmatprep.subr.bf16.mxu0 0
      %3666 = vmatpush1.bf16.msra.mxu0 0
      %3667 = vmatprep.subr.bf16.mxu0 0
      %3668 = vmatpush1.bf16.msra.mxu0 0
      %3669 = vmatprep.mubr.bf16.mxu0 %v3611
      %3670 = vmatmul.mubr.bf16.gmra.mrb[0].mxu0 %v3470
      %v3671 = vpop.f32.mrb[0].mxu0
      %v3672 = vadd.f32 0.0, %v3671
      %v3673 = vpop.f32.mrb[0].mxu0
      %v3674 = vpop.f32.mrb[0].mxu0
      %v3675 = vadd.f32 0.0, %v3674
      %v3676 = vpop.f32.mrb[0].mxu0
      %3677 = vmatprep.mubr.bf16.mxu0 %v3614
      %3678 = vmatmul.mubr.bf16.gmra.mrb[0].mxu0 %v3472
      %v3679 = vpop.f32.mrb[0].mxu0
      %v3680 = vadd.f32 0.0, %v3679
      %v3681 = vpop.f32.mrb[0].mxu0
      %v3682 = vpop.f32.mrb[0].mxu0
      %v3683 = vadd.f32 0.0, %v3682
      %v3684 = vpop.f32.mrb[0].mxu0
      %3685 = vmatprep.mubr.bf16.mxu0 %v3617
      %3686 = vmatmul.mubr.bf16.gmra.mrb[0].mxu0 %v3474
      %v3687 = vpop.f32.mrb[0].mxu0
      %v3688 = vadd.f32 0.0, %v3687
      %v3689 = vpop.f32.mrb[0].mxu0
      %v3690 = vpop.f32.mrb[0].mxu0
      %v3691 = vadd.f32 0.0, %v3690
      %v3692 = vpop.f32.mrb[0].mxu0
      %3693 = vmatprep.mubr.bf16.mxu0 %v3620
      %3694 = vmatmul.mubr.bf16.gmra.mrb[0].mxu0 %v3476
      %v3695 = vpop.f32.mrb[0].mxu0
      %v3696 = vadd.f32 0.0, %v3695
      %v3697 = vpop.f32.mrb[0].mxu0
      %v3698 = vpop.f32.mrb[0].mxu0
      %v3699 = vadd.f32 0.0, %v3698
      %v3700 = vpop.f32.mrb[0].mxu0
      %3701 = vmatprep.mubr.bf16.mxu0 %v3623
      %3702 = vmatmul.mubr.bf16.gmra.mrb[0].mxu0 %v3478
      %v3703 = vpop.f32.mrb[0].mxu0
      %v3704 = vadd.f32 0.0, %v3703
      %v3705 = vpop.f32.mrb[0].mxu0
      %v3706 = vpop.f32.mrb[0].mxu0
      %v3707 = vadd.f32 0.0, %v3706
      %v3708 = vpop.f32.mrb[0].mxu0
      %3709 = vmatprep.mubr.bf16.mxu0 %v3626
      %3710 = vmatmul.mubr.bf16.gmra.mrb[0].mxu0 %v3480
      %v3711 = vpop.f32.mrb[0].mxu0
      %v3712 = vadd.f32 0.0, %v3711
      %v3713 = vpop.f32.mrb[0].mxu0
      %v3714 = vpop.f32.mrb[0].mxu0
      %v3715 = vadd.f32 0.0, %v3714
      %v3716 = vpop.f32.mrb[0].mxu0
      %3717 = vmatprep.mubr.bf16.mxu0 %v3629
      %3718 = vmatmul.mubr.bf16.gmra.mrb[0].mxu0 %v3482
      %v3719 = vpop.f32.mrb[0].mxu0
      %v3720 = vadd.f32 0.0, %v3719
      %v3721 = vpop.f32.mrb[0].mxu0
      %v3722 = vpop.f32.mrb[0].mxu0
      %v3723 = vadd.f32 0.0, %v3722
      %v3724 = vpop.f32.mrb[0].mxu0
      %3725 = vmatprep.mubr.bf16.mxu0 %v3632
      %3726 = vmatmul.mubr.bf16.gmra.mrb[0].mxu0 %v3484
      %v3727 = vpop.f32.mrb[0].mxu0
      %v3728 = vadd.f32 0.0, %v3727
      %v3729 = vpop.f32.mrb[0].mxu0
      %v3730 = vpop.f32.mrb[0].mxu0
      %v3731 = vadd.f32 0.0, %v3730
      %v3732 = vpop.f32.mrb[0].mxu0
      %3733 = vmatprep.mubr.bf16.mxu0 %v3635
      %3734 = vmatmul.mubr.bf16.gmra.mrb[0].mxu0 %v3512
      %v3735 = vpop.f32.mrb[0].mxu0
      %v3736 = vadd.f32 0.0, %v3735
      %v3737 = vpop.f32.mrb[0].mxu0
      %v3738 = vpop.f32.mrb[0].mxu0
      %v3739 = vadd.f32 0.0, %v3738
      %v3740 = vpop.f32.mrb[0].mxu0
      %3741 = vdwg.mxu0
      %v3762 = vrot.slane %v3468, 2
      %v3763 = vrot.slane %v3470, 2
      %v3764 = vsel %vm1273, %v3762, %v3763
      %v3765 = vrot.slane %v3469, 2
      %v3766 = vrot.slane %v3471, 2
      %v3767 = vsel %vm1273, %v3765, %v3766
      %v3768 = vrot.slane %v3472, 2
      %v3769 = vsel %vm1273, %v3763, %v3768
      %v3770 = vrot.slane %v3473, 2
      %v3771 = vsel %vm1273, %v3766, %v3770
      %v3772 = vrot.slane %v3474, 2
      %v3773 = vsel %vm1273, %v3768, %v3772
      %v3774 = vrot.slane %v3475, 2
      %v3775 = vsel %vm1273, %v3770, %v3774
      %v3776 = vrot.slane %v3476, 2
      %v3777 = vsel %vm1273, %v3772, %v3776
      %v3778 = vrot.slane %v3477, 2
      %v3779 = vsel %vm1273, %v3774, %v3778
      %v3780 = vrot.slane %v3478, 2
      %v3781 = vsel %vm1273, %v3776, %v3780
      %v3782 = vrot.slane %v3479, 2
      %v3783 = vsel %vm1273, %v3778, %v3782
      %v3784 = vrot.slane %v3480, 2
      %v3785 = vsel %vm1273, %v3780, %v3784
      %v3786 = vrot.slane %v3481, 2
      %v3787 = vsel %vm1273, %v3782, %v3786
      %v3788 = vrot.slane %v3482, 2
      %v3789 = vsel %vm1273, %v3784, %v3788
      %v3790 = vrot.slane %v3483, 2
      %v3791 = vsel %vm1273, %v3786, %v3790
      %v3792 = vrot.slane %v3484, 2
      %v3793 = vsel %vm1273, %v3788, %v3792
      %v3794 = vrot.slane %v3485, 2
      %v3795 = vsel %vm1273, %v3790, %v3794
      %v3796 = vrot.slane %v3486, 2
      %v3797 = vsel %vm1273, %v3792, %v3796
      %v3798 = vrot.slane %v3487, 2
      %v3799 = vsel %vm1273, %v3794, %v3798
      %v3833 = vunpack.c.l.b16 %v3488
      %v3834 = vunpack.c.l.b16 %v3489
      %v3835 = vunpack.c.l.b16 %v3490
      %v3836 = vunpack.c.l.b16 %v3491
      %v3837 = vunpack.c.l.b16 %v3492
      %v3838 = vunpack.c.l.b16 %v3493
      %v3839 = vunpack.c.l.b16 %v3494
      %v3840 = vunpack.c.l.b16 %v3495
      %v3841 = vunpack.c.l.b16 %v3496
      %v3842 = vunpack.c.l.b16 %v3497
      %v3843 = vunpack.c.l.b16 %v3498
      %v3844 = vunpack.c.l.b16 %v3499
      %v3845 = vunpack.c.l.b16 %v3500
      %v3846 = vunpack.c.l.b16 %v3501
      %v3847 = vunpack.c.l.b16 %v3502
      %v3848 = vunpack.c.l.b16 %v3503
      %v3849 = vunpack.c.l.b16 %v3504
      %v3850 = vunpack.c.l.b16 %v3505
      %v3851 = vunpack.c.l.b16 %v3506
      %v3852 = vunpack.c.l.b16 %v3507
      %v3853 = vunpack.c.l.b16 %v3508
      %v3854 = vunpack.c.l.b16 %v3509
      %v3855 = vunpack.c.l.b16 %v3510
      %v3856 = vunpack.c.l.b16 %v3511
      %v3857 = vpack.c.b16 %v3834, %v3833
      %v3858 = vpack.c.b16 %v3836, %v3835
      %v3859 = vpack.c.b16 %v3838, %v3837
      %v3860 = vpack.c.b16 %v3840, %v3839
      %v3861 = vpack.c.b16 %v3842, %v3841
      %v3862 = vpack.c.b16 %v3844, %v3843
      %v3863 = vpack.c.b16 %v3846, %v3845
      %v3864 = vpack.c.b16 %v3848, %v3847
      %v3865 = vpack.c.b16 %v3850, %v3849
      %v3866 = vpack.c.b16 %v3852, %v3851
      %v3867 = vpack.c.b16 %v3854, %v3853
      %v3868 = vpack.c.b16 %v3856, %v3855
      %v3882 = vsel %vm349, %v3767, 0
      %v3885 = vsel %vm349, %v3771, 0
      %v3888 = vsel %vm349, %v3775, 0
      %v3891 = vsel %vm349, %v3779, 0
      %v3894 = vsel %vm349, %v3783, 0
      %v3897 = vsel %vm349, %v3787, 0
      %v3900 = vsel %vm349, %v3791, 0
      %v3903 = vsel %vm349, %v3795, 0
      %v3906 = vsel %vm349, %v3799, 0
      %3908 = vmatprep.subr.bf16.mxu0 0
      %3909 = vmatpush1.bf16.msra.mxu0 %v3857
      %3910 = vmatprep.subr.bf16.mxu0 0
      %3911 = vmatpush1.bf16.msra.mxu0 %v3858
      %3912 = vmatprep.subr.bf16.mxu0 0
      %3913 = vmatpush1.bf16.msra.mxu0 %v3859
      %3914 = vmatprep.subr.bf16.mxu0 0
      %3915 = vmatpush1.bf16.msra.mxu0 %v3860
      %3916 = vmatprep.subr.bf16.mxu0 0
      %3917 = vmatpush1.bf16.msra.mxu0 %v3861
      %3918 = vmatprep.subr.bf16.mxu0 0
      %3919 = vmatpush1.bf16.msra.mxu0 %v3862
      %3920 = vmatprep.subr.bf16.mxu0 0
      %3921 = vmatpush1.bf16.msra.mxu0 %v3863
      %3922 = vmatprep.subr.bf16.mxu0 0
      %3923 = vmatpush1.bf16.msra.mxu0 %v3864
      %3924 = vmatprep.subr.bf16.mxu0 0
      %3925 = vmatpush1.bf16.msra.mxu0 %v3865
      %3926 = vmatprep.subr.bf16.mxu0 0
      %3927 = vmatpush1.bf16.msra.mxu0 %v3866
      %3928 = vmatprep.subr.bf16.mxu0 0
      %3929 = vmatpush1.bf16.msra.mxu0 %v3867
      %3930 = vmatprep.subr.bf16.mxu0 0
      %3931 = vmatpush1.bf16.msra.mxu0 %v3868
      %3932 = vmatprep.subr.bf16.mxu0 0
      %3933 = vmatpush1.bf16.msra.mxu0 0
      %3934 = vmatprep.subr.bf16.mxu0 0
      %3935 = vmatpush1.bf16.msra.mxu0 0
      %3936 = vmatprep.subr.bf16.mxu0 0
      %3937 = vmatpush1.bf16.msra.mxu0 0
      %3938 = vmatprep.subr.bf16.mxu0 0
      %3939 = vmatpush1.bf16.msra.mxu0 0
      %3940 = vmatprep.mubr.bf16.mxu0 %v3882
      %3941 = vmatmul.mubr.bf16.gmra.mrb[0].mxu0 %v3764
      %v3942 = vpop.f32.mrb[0].mxu0
      %v3943 = vadd.f32 %v3672, %v3942
      %v3944 = vpop.f32.mrb[0].mxu0
      %v3945 = vpop.f32.mrb[0].mxu0
      %v3946 = vadd.f32 %v3675, %v3945
      %v3947 = vpop.f32.mrb[0].mxu0
      %3948 = vmatprep.mubr.bf16.mxu0 %v3885
      %3949 = vmatmul.mubr.bf16.gmra.mrb[0].mxu0 %v3769
      %v3950 = vpop.f32.mrb[0].mxu0
      %v3951 = vadd.f32 %v3680, %v3950
      %v3952 = vpop.f32.mrb[0].mxu0
      %v3953 = vpop.f32.mrb[0].mxu0
      %v3954 = vadd.f32 %v3683, %v3953
      %v3955 = vpop.f32.mrb[0].mxu0
      %3956 = vmatprep.mubr.bf16.mxu0 %v3888
      %3957 = vmatmul.mubr.bf16.gmra.mrb[0].mxu0 %v3773
      %v3958 = vpop.f32.mrb[0].mxu0
      %v3959 = vadd.f32 %v3688, %v3958
      %v3960 = vpop.f32.mrb[0].mxu0
      %v3961 = vpop.f32.mrb[0].mxu0
      %v3962 = vadd.f32 %v3691, %v3961
      %v3963 = vpop.f32.mrb[0].mxu0
      %3964 = vmatprep.mubr.bf16.mxu0 %v3891
      %3965 = vmatmul.mubr.bf16.gmra.mrb[0].mxu0 %v3777
      %v3966 = vpop.f32.mrb[0].mxu0
      %v3967 = vadd.f32 %v3696, %v3966
      %v3968 = vpop.f32.mrb[0].mxu0
      %v3969 = vpop.f32.mrb[0].mxu0
      %v3970 = vadd.f32 %v3699, %v3969
      %v3971 = vpop.f32.mrb[0].mxu0
      %3972 = vmatprep.mubr.bf16.mxu0 %v3894
      %3973 = vmatmul.mubr.bf16.gmra.mrb[0].mxu0 %v3781
      %v3974 = vpop.f32.mrb[0].mxu0
      %v3975 = vadd.f32 %v3704, %v3974
      %v3976 = vpop.f32.mrb[0].mxu0
      %v3977 = vpop.f32.mrb[0].mxu0
      %v3978 = vadd.f32 %v3707, %v3977
      %v3979 = vpop.f32.mrb[0].mxu0
      %3980 = vmatprep.mubr.bf16.mxu0 %v3897
      %3981 = vmatmul.mubr.bf16.gmra.mrb[0].mxu0 %v3785
      %v3982 = vpop.f32.mrb[0].mxu0
      %v3983 = vadd.f32 %v3712, %v3982
      %v3984 = vpop.f32.mrb[0].mxu0
      %v3985 = vpop.f32.mrb[0].mxu0
      %v3986 = vadd.f32 %v3715, %v3985
      %v3987 = vpop.f32.mrb[0].mxu0
      %3988 = vmatprep.mubr.bf16.mxu0 %v3900
      %3989 = vmatmul.mubr.bf16.gmra.mrb[0].mxu0 %v3789
      %v3990 = vpop.f32.mrb[0].mxu0
      %v3991 = vadd.f32 %v3720, %v3990
      %v3992 = vpop.f32.mrb[0].mxu0
      %v3993 = vpop.f32.mrb[0].mxu0
      %v3994 = vadd.f32 %v3723, %v3993
      %v3995 = vpop.f32.mrb[0].mxu0
      %3996 = vmatprep.mubr.bf16.mxu0 %v3903
      %3997 = vmatmul.mubr.bf16.gmra.mrb[0].mxu0 %v3793
      %v3998 = vpop.f32.mrb[0].mxu0
      %v3999 = vadd.f32 %v3728, %v3998
      %v4000 = vpop.f32.mrb[0].mxu0
      %v4001 = vpop.f32.mrb[0].mxu0
      %v4002 = vadd.f32 %v3731, %v4001
      %v4003 = vpop.f32.mrb[0].mxu0
      %4004 = vmatprep.mubr.bf16.mxu0 %v3906
      %4005 = vmatmul.mubr.bf16.gmra.mrb[0].mxu0 %v3797
      %v4006 = vpop.f32.mrb[0].mxu0
      %v4007 = vadd.f32 %v3736, %v4006
      %v4008 = vpop.f32.mrb[0].mxu0
      %v4009 = vpop.f32.mrb[0].mxu0
      %v4010 = vadd.f32 %v3739, %v4009
      %v4011 = vpop.f32.mrb[0].mxu0
      %4012 = vdwg.mxu0
      %v4013 = vld [vmem:[#allocation2 + $0x20] sm:$0xc0]
      %v4014 = vld [vmem:[#allocation2 + $0x28] sm:$0xc0]
      %v4015 = vld [vmem:[#allocation2 + $0x30] sm:$0xff]
      %v4016 = vld [vmem:[#allocation2 + $0x38] sm:$0xff]
      %v4017 = vld [vmem:[#allocation2 + $0x40] sm:$0xff]
      %v4018 = vld [vmem:[#allocation2 + $0x48] sm:$0xff]
      %v4019 = vld [vmem:[#allocation2 + $0x50] sm:$0xff]
      %v4020 = vld [vmem:[#allocation2 + $0x58] sm:$0xff]
      %v4021 = vld [vmem:[#allocation2 + $0x60] sm:$0xff]
      %v4022 = vld [vmem:[#allocation2 + $0x68] sm:$0xff]
      %v4023 = vld [vmem:[#allocation2 + $0x70] sm:$0xff]
      %v4024 = vld [vmem:[#allocation2 + $0x78] sm:$0xff]
      %v4025 = vld [vmem:[#allocation2 + $0x80] sm:$0xff]
      %v4026 = vld [vmem:[#allocation2 + $0x88] sm:$0xff]
      %v4027 = vld [vmem:[#allocation2 + $0x90] sm:$0xff]
      %v4028 = vld [vmem:[#allocation2 + $0x98] sm:$0xff]
      %v4029 = vld [vmem:[#allocation2 + $0xa0] sm:$0xff]
      %v4030 = vld [vmem:[#allocation2 + $0xa8] sm:$0xff]
      %v4031 = vld [vmem:[#allocation2 + $0xb0] sm:$0x3f]
      %v4032 = vld [vmem:[#allocation2 + $0xb8] sm:$0x3f]
      %v4033 = vld [vmem:[%s3 + $0x300] sm:$0xf]
      %v4034 = vld [vmem:[%s3 + $0x304] sm:$0xf]
      %v4035 = vld [vmem:[%s3 + $0x308] sm:$0xf]
      %v4036 = vld [vmem:[%s3 + $0x30c] sm:$0xf]
      %v4037 = vld [vmem:[%s3 + $0x310] sm:$0xf]
      %v4038 = vld [vmem:[%s3 + $0x314] sm:$0xf]
      %v4039 = vld [vmem:[%s3 + $0x318] sm:$0xf]
      %v4040 = vld [vmem:[%s3 + $0x31c] sm:$0xf]
      %v4041 = vld [vmem:[%s3 + $0x320] sm:$0xf]
      %v4042 = vld [vmem:[%s3 + $0x324] sm:$0xf]
      %v4043 = vld [vmem:[%s3 + $0x328] sm:$0xf]
      %v4044 = vld [vmem:[%s3 + $0x32c] sm:$0xf]
      %v4045 = vld [vmem:[%s3 + $0x330] sm:$0xf]
      %v4046 = vld [vmem:[%s3 + $0x334] sm:$0xf]
      %v4047 = vld [vmem:[%s3 + $0x338] sm:$0xf]
      %v4048 = vld [vmem:[%s3 + $0x33c] sm:$0xf]
      %v4049 = vld [vmem:[%s3 + $0x340] sm:$0xf]
      %v4050 = vld [vmem:[%s3 + $0x344] sm:$0xf]
      %v4051 = vld [vmem:[%s3 + $0x348] sm:$0xf]
      %v4052 = vld [vmem:[%s3 + $0x34c] sm:$0xf]
      %v4053 = vld [vmem:[%s3 + $0x350] sm:$0xf]
      %v4054 = vld [vmem:[%s3 + $0x354] sm:$0xf]
      %v4055 = vld [vmem:[%s3 + $0x358] sm:$0xf]
      %v4056 = vld [vmem:[%s3 + $0x35c] sm:$0xf]
      %v4077 = vrot.slane %v4013, 6
      %v4078 = vrot.slane %v4015, 6
      %v4079 = vsel %vm1589, %v4077, %v4078
      %v4080 = vrot.slane %v4014, 6
      %v4081 = vrot.slane %v4016, 6
      %v4082 = vsel %vm1589, %v4080, %v4081
      %v4083 = vrot.slane %v4017, 6
      %v4084 = vsel %vm1589, %v4078, %v4083
      %v4085 = vrot.slane %v4018, 6
      %v4086 = vsel %vm1589, %v4081, %v4085
      %v4087 = vrot.slane %v4019, 6
      %v4088 = vsel %vm1589, %v4083, %v4087
      %v4089 = vrot.slane %v4020, 6
      %v4090 = vsel %vm1589, %v4085, %v4089
      %v4091 = vrot.slane %v4021, 6
      %v4092 = vsel %vm1589, %v4087, %v4091
      %v4093 = vrot.slane %v4022, 6
      %v4094 = vsel %vm1589, %v4089, %v4093
      %v4095 = vrot.slane %v4023, 6
      %v4096 = vsel %vm1589, %v4091, %v4095
      %v4097 = vrot.slane %v4024, 6
      %v4098 = vsel %vm1589, %v4093, %v4097
      %v4099 = vrot.slane %v4025, 6
      %v4100 = vsel %vm1589, %v4095, %v4099
      %v4101 = vrot.slane %v4026, 6
      %v4102 = vsel %vm1589, %v4097, %v4101
      %v4103 = vrot.slane %v4027, 6
      %v4104 = vsel %vm1589, %v4099, %v4103
      %v4105 = vrot.slane %v4028, 6
      %v4106 = vsel %vm1589, %v4101, %v4105
      %v4107 = vrot.slane %v4029, 6
      %v4108 = vsel %vm1589, %v4103, %v4107
      %v4109 = vrot.slane %v4030, 6
      %v4110 = vsel %vm1589, %v4105, %v4109
      %v4111 = vrot.slane %v4031, 6
      %v4112 = vsel %vm1589, %v4107, %v4111
      %v4113 = vrot.slane %v4032, 6
      %v4114 = vsel %vm1589, %v4109, %v4113
      %v4148 = vunpack.c.l.b16 %v4033
      %v4149 = vunpack.c.l.b16 %v4034
      %v4150 = vunpack.c.l.b16 %v4035
      %v4151 = vunpack.c.l.b16 %v4036
      %v4152 = vunpack.c.l.b16 %v4037
      %v4153 = vunpack.c.l.b16 %v4038
      %v4154 = vunpack.c.l.b16 %v4039
      %v4155 = vunpack.c.l.b16 %v4040
      %v4156 = vunpack.c.l.b16 %v4041
      %v4157 = vunpack.c.l.b16 %v4042
      %v4158 = vunpack.c.l.b16 %v4043
      %v4159 = vunpack.c.l.b16 %v4044
      %v4160 = vunpack.c.l.b16 %v4045
      %v4161 = vunpack.c.l.b16 %v4046
      %v4162 = vunpack.c.l.b16 %v4047
      %v4163 = vunpack.c.l.b16 %v4048
      %v4164 = vunpack.c.l.b16 %v4049
      %v4165 = vunpack.c.l.b16 %v4050
      %v4166 = vunpack.c.l.b16 %v4051
      %v4167 = vunpack.c.l.b16 %v4052
      %v4168 = vunpack.c.l.b16 %v4053
      %v4169 = vunpack.c.l.b16 %v4054
      %v4170 = vunpack.c.l.b16 %v4055
      %v4171 = vunpack.c.l.b16 %v4056
      %v4172 = vpack.c.b16 %v4149, %v4148
      %v4173 = vpack.c.b16 %v4151, %v4150
      %v4174 = vpack.c.b16 %v4153, %v4152
      %v4175 = vpack.c.b16 %v4155, %v4154
      %v4176 = vpack.c.b16 %v4157, %v4156
      %v4177 = vpack.c.b16 %v4159, %v4158
      %v4178 = vpack.c.b16 %v4161, %v4160
      %v4179 = vpack.c.b16 %v4163, %v4162
      %v4180 = vpack.c.b16 %v4165, %v4164
      %v4181 = vpack.c.b16 %v4167, %v4166
      %v4182 = vpack.c.b16 %v4169, %v4168
      %v4183 = vpack.c.b16 %v4171, %v4170
      %v4197 = vsel %vm349, %v4082, 0
      %v4200 = vsel %vm349, %v4086, 0
      %v4203 = vsel %vm349, %v4090, 0
      %v4206 = vsel %vm349, %v4094, 0
      %v4209 = vsel %vm349, %v4098, 0
      %v4212 = vsel %vm349, %v4102, 0
      %v4215 = vsel %vm349, %v4106, 0
      %v4218 = vsel %vm349, %v4110, 0
      %v4221 = vsel %vm349, %v4114, 0
      %4223 = vmatprep.subr.bf16.mxu0 0
      %4224 = vmatpush1.bf16.msra.mxu0 %v4172
      %4225 = vmatprep.subr.bf16.mxu0 0
      %4226 = vmatpush1.bf16.msra.mxu0 %v4173
      %4227 = vmatprep.subr.bf16.mxu0 0
      %4228 = vmatpush1.bf16.msra.mxu0 %v4174
      %4229 = vmatprep.subr.bf16.mxu0 0
      %4230 = vmatpush1.bf16.msra.mxu0 %v4175
      %4231 = vmatprep.subr.bf16.mxu0 0
      %4232 = vmatpush1.bf16.msra.mxu0 %v4176
      %4233 = vmatprep.subr.bf16.mxu0 0
      %4234 = vmatpush1.bf16.msra.mxu0 %v4177
      %4235 = vmatprep.subr.bf16.mxu0 0
      %4236 = vmatpush1.bf16.msra.mxu0 %v4178
      %4237 = vmatprep.subr.bf16.mxu0 0
      %4238 = vmatpush1.bf16.msra.mxu0 %v4179
      %4239 = vmatprep.subr.bf16.mxu0 0
      %4240 = vmatpush1.bf16.msra.mxu0 %v4180
      %4241 = vmatprep.subr.bf16.mxu0 0
      %4242 = vmatpush1.bf16.msra.mxu0 %v4181
      %4243 = vmatprep.subr.bf16.mxu0 0
      %4244 = vmatpush1.bf16.msra.mxu0 %v4182
      %4245 = vmatprep.subr.bf16.mxu0 0
      %4246 = vmatpush1.bf16.msra.mxu0 %v4183
      %4247 = vmatprep.subr.bf16.mxu0 0
      %4248 = vmatpush1.bf16.msra.mxu0 0
      %4249 = vmatprep.subr.bf16.mxu0 0
      %4250 = vmatpush1.bf16.msra.mxu0 0
      %4251 = vmatprep.subr.bf16.mxu0 0
      %4252 = vmatpush1.bf16.msra.mxu0 0
      %4253 = vmatprep.subr.bf16.mxu0 0
      %4254 = vmatpush1.bf16.msra.mxu0 0
      %4255 = vmatprep.mubr.bf16.mxu0 %v4197
      %4256 = vmatmul.mubr.bf16.gmra.mrb[0].mxu0 %v4079
      %v4257 = vpop.f32.mrb[0].mxu0
      %v4258 = vadd.f32 0.0, %v4257
      %v4259 = vpop.f32.mrb[0].mxu0
      %v4260 = vpop.f32.mrb[0].mxu0
      %v4261 = vadd.f32 0.0, %v4260
      %v4262 = vpop.f32.mrb[0].mxu0
      %4263 = vmatprep.mubr.bf16.mxu0 %v4200
      %4264 = vmatmul.mubr.bf16.gmra.mrb[0].mxu0 %v4084
      %v4265 = vpop.f32.mrb[0].mxu0
      %v4266 = vadd.f32 0.0, %v4265
      %v4267 = vpop.f32.mrb[0].mxu0
      %v4268 = vpop.f32.mrb[0].mxu0
      %v4269 = vadd.f32 0.0, %v4268
      %v4270 = vpop.f32.mrb[0].mxu0
      %4271 = vmatprep.mubr.bf16.mxu0 %v4203
      %4272 = vmatmul.mubr.bf16.gmra.mrb[0].mxu0 %v4088
      %v4273 = vpop.f32.mrb[0].mxu0
      %v4274 = vadd.f32 0.0, %v4273
      %v4275 = vpop.f32.mrb[0].mxu0
      %v4276 = vpop.f32.mrb[0].mxu0
      %v4277 = vadd.f32 0.0, %v4276
      %v4278 = vpop.f32.mrb[0].mxu0
      %4279 = vmatprep.mubr.bf16.mxu0 %v4206
      %4280 = vmatmul.mubr.bf16.gmra.mrb[0].mxu0 %v4092
      %v4281 = vpop.f32.mrb[0].mxu0
      %v4282 = vadd.f32 0.0, %v4281
      %v4283 = vpop.f32.mrb[0].mxu0
      %v4284 = vpop.f32.mrb[0].mxu0
      %v4285 = vadd.f32 0.0, %v4284
      %v4286 = vpop.f32.mrb[0].mxu0
      %4287 = vmatprep.mubr.bf16.mxu0 %v4209
      %4288 = vmatmul.mubr.bf16.gmra.mrb[0].mxu0 %v4096
      %v4289 = vpop.f32.mrb[0].mxu0
      %v4290 = vadd.f32 0.0, %v4289
      %v4291 = vpop.f32.mrb[0].mxu0
      %v4292 = vpop.f32.mrb[0].mxu0
      %v4293 = vadd.f32 0.0, %v4292
      %v4294 = vpop.f32.mrb[0].mxu0
      %4295 = vmatprep.mubr.bf16.mxu0 %v4212
      %4296 = vmatmul.mubr.bf16.gmra.mrb[0].mxu0 %v4100
      %v4297 = vpop.f32.mrb[0].mxu0
      %v4298 = vadd.f32 0.0, %v4297
      %v4299 = vpop.f32.mrb[0].mxu0
      %v4300 = vpop.f32.mrb[0].mxu0
      %v4301 = vadd.f32 0.0, %v4300
      %v4302 = vpop.f32.mrb[0].mxu0
      %4303 = vmatprep.mubr.bf16.mxu0 %v4215
      %4304 = vmatmul.mubr.bf16.gmra.mrb[0].mxu0 %v4104
      %v4305 = vpop.f32.mrb[0].mxu0
      %v4306 = vadd.f32 0.0, %v4305
      %v4307 = vpop.f32.mrb[0].mxu0
      %v4308 = vpop.f32.mrb[0].mxu0
      %v4309 = vadd.f32 0.0, %v4308
      %v4310 = vpop.f32.mrb[0].mxu0
      %4311 = vmatprep.mubr.bf16.mxu0 %v4218
      %4312 = vmatmul.mubr.bf16.gmra.mrb[0].mxu0 %v4108
      %v4313 = vpop.f32.mrb[0].mxu0
      %v4314 = vadd.f32 0.0, %v4313
      %v4315 = vpop.f32.mrb[0].mxu0
      %v4316 = vpop.f32.mrb[0].mxu0
      %v4317 = vadd.f32 0.0, %v4316
      %v4318 = vpop.f32.mrb[0].mxu0
      %4319 = vmatprep.mubr.bf16.mxu0 %v4221
      %4320 = vmatmul.mubr.bf16.gmra.mrb[0].mxu0 %v4112
      %v4321 = vpop.f32.mrb[0].mxu0
      %v4322 = vadd.f32 0.0, %v4321
      %v4323 = vpop.f32.mrb[0].mxu0
      %v4324 = vpop.f32.mrb[0].mxu0
      %v4325 = vadd.f32 0.0, %v4324
      %v4326 = vpop.f32.mrb[0].mxu0
      %4327 = vdwg.mxu0
      %v4328 = vadd.f32 %v3943, %v4258
      %v4329 = vadd.f32 %v3946, %v4261
      %v4330 = vadd.f32 %v3951, %v4266
      %v4331 = vadd.f32 %v3954, %v4269
      %v4332 = vadd.f32 %v3959, %v4274
      %v4333 = vadd.f32 %v3962, %v4277
      %v4334 = vadd.f32 %v3967, %v4282
      %v4335 = vadd.f32 %v3970, %v4285
      %v4336 = vadd.f32 %v3975, %v4290
      %v4337 = vadd.f32 %v3978, %v4293
      %v4338 = vadd.f32 %v3983, %v4298
      %v4339 = vadd.f32 %v3986, %v4301
      %v4340 = vadd.f32 %v3991, %v4306
      %v4341 = vadd.f32 %v3994, %v4309
      %v4342 = vadd.f32 %v3999, %v4314
      %v4343 = vadd.f32 %v4002, %v4317
      %v4344 = vadd.f32 %v4007, %v4322
      %v4345 = vadd.f32 %v4010, %v4325
      %v4346 = vld [vmem:[%s5 + $0x3] sm:$0x1]
      %v4347 = vlaneseq
      %v4348 = vshrl.u32 %v4347, 7
      %v4349 = vsub.s32 0, %v4348
      %v4350 = vrot.slane %v4346, %v4349
      %v4351 = vadd.f32 %v4328, %v4350
      %v4352 = vadd.f32 %v4329, %v4350
      %v4353 = vadd.f32 %v4330, %v4350
      %v4354 = vadd.f32 %v4331, %v4350
      %v4355 = vadd.f32 %v4332, %v4350
      %v4356 = vadd.f32 %v4333, %v4350
      %v4357 = vadd.f32 %v4334, %v4350
      %v4358 = vadd.f32 %v4335, %v4350
      %v4359 = vadd.f32 %v4336, %v4350
      %v4360 = vadd.f32 %v4337, %v4350
      %v4361 = vadd.f32 %v4338, %v4350
      %v4362 = vadd.f32 %v4339, %v4350
      %v4363 = vadd.f32 %v4340, %v4350
      %v4364 = vadd.f32 %v4341, %v4350
      %v4365 = vadd.f32 %v4342, %v4350
      %v4366 = vadd.f32 %v4343, %v4350
      %v4367 = vadd.f32 %v4344, %v4350
      %v4368 = vadd.f32 %v4345, %v4350
      %v4369 = vmax.f32 %v4351, 0.0
      %v4370 = vmax.f32 %v4352, 0.0
      %v4371 = vmax.f32 %v4353, 0.0
      %v4372 = vmax.f32 %v4354, 0.0
      %v4373 = vmax.f32 %v4355, 0.0
      %v4374 = vmax.f32 %v4356, 0.0
      %v4375 = vmax.f32 %v4357, 0.0
      %v4376 = vmax.f32 %v4358, 0.0
      %v4377 = vmax.f32 %v4359, 0.0
      %v4378 = vmax.f32 %v4360, 0.0
      %v4379 = vmax.f32 %v4361, 0.0
      %v4380 = vmax.f32 %v4362, 0.0
      %v4381 = vmax.f32 %v4363, 0.0
      %v4382 = vmax.f32 %v4364, 0.0
      %v4383 = vmax.f32 %v4365, 0.0
      %v4384 = vmax.f32 %v4366, 0.0
      %v4385 = vmax.f32 %v4367, 0.0
      %v4386 = vmax.f32 %v4368, 0.0
      %vm4406 = vcmask 1046528
      %v4407 = vrot.slane %v4369, 1
      %v4408 = vrot.slane %v4370, 1
      %v4409 = vsel %vm4406, %v4407, %v4408
      %v4410 = vrot.slane %v4371, 1
      %v4411 = vsel %vm4406, %v4408, %v4410
      %v4412 = vrot.slane %v4372, 1
      %v4413 = vsel %vm4406, %v4410, %v4412
      %v4414 = vrot.slane %v4373, 1
      %v4415 = vsel %vm4406, %v4412, %v4414
      %v4416 = vrot.slane %v4374, 1
      %v4417 = vsel %vm4406, %v4414, %v4416
      %v4418 = vrot.slane %v4375, 1
      %v4419 = vsel %vm4406, %v4416, %v4418
      %v4420 = vrot.slane %v4376, 1
      %v4421 = vsel %vm4406, %v4418, %v4420
      %v4422 = vrot.slane %v4377, 1
      %v4423 = vsel %vm4406, %v4420, %v4422
      %v4424 = vrot.slane %v4378, 1
      %v4425 = vsel %vm4406, %v4422, %v4424
      %v4426 = vrot.slane %v4379, 1
      %v4427 = vsel %vm4406, %v4424, %v4426
      %v4428 = vrot.slane %v4380, 1
      %v4429 = vsel %vm4406, %v4426, %v4428
      %v4430 = vrot.slane %v4381, 1
      %v4431 = vsel %vm4406, %v4428, %v4430
      %v4432 = vrot.slane %v4382, 1
      %v4433 = vsel %vm4406, %v4430, %v4432
      %v4434 = vrot.slane %v4383, 1
      %v4435 = vsel %vm4406, %v4432, %v4434
      %v4436 = vrot.slane %v4384, 1
      %v4437 = vsel %vm4406, %v4434, %v4436
      %v4438 = vrot.slane %v4385, 1
      %v4439 = vsel %vm4406, %v4436, %v4438
      %v4440 = vrot.slane %v4386, 1
      %v4441 = vsel %vm4406, %v4438, %v4440
      %v4442 = vrot.slane 0.0, 1
      %v4443 = vsel %vm4406, %v4440, %v4442
      %v4462 = vmax.f32 %v4369, %v4409
      %v4463 = vmax.f32 %v4370, %v4411
      %v4464 = vmax.f32 %v4371, %v4413
      %v4465 = vmax.f32 %v4372, %v4415
      %v4466 = vmax.f32 %v4373, %v4417
      %v4467 = vmax.f32 %v4374, %v4419
      %v4468 = vmax.f32 %v4375, %v4421
      %v4469 = vmax.f32 %v4376, %v4423
      %v4470 = vmax.f32 %v4377, %v4425
      %v4471 = vmax.f32 %v4378, %v4427
      %v4472 = vmax.f32 %v4379, %v4429
      %v4473 = vmax.f32 %v4380, %v4431
      %v4474 = vmax.f32 %v4381, %v4433
      %v4475 = vmax.f32 %v4382, %v4435
      %v4476 = vmax.f32 %v4383, %v4437
      %v4477 = vmax.f32 %v4384, %v4439
      %v4478 = vmax.f32 %v4385, %v4441
      %v4479 = vmax.f32 %v4386, %v4443
      %v4480 = vsel %vm4406, %v4442, %v4442
      %v4483 = vmax.f32 %v4480, 0.0
      %v4484 = vmax.f32 %v4442, 0.0
      %vm4504 = vcmask 1043456
      %v4505 = vrot.slane %v4463, 4
      %v4506 = vrot.slane %v4464, 4
      %v4507 = vsel %vm4504, %v4505, %v4506
      %v4508 = vrot.slane %v4465, 4
      %v4509 = vsel %vm4504, %v4506, %v4508
      %v4510 = vrot.slane %v4466, 4
      %v4511 = vsel %vm4504, %v4508, %v4510
      %v4512 = vrot.slane %v4467, 4
      %v4513 = vsel %vm4504, %v4510, %v4512
      %v4514 = vrot.slane %v4468, 4
      %v4515 = vsel %vm4504, %v4512, %v4514
      %v4516 = vrot.slane %v4469, 4
      %v4517 = vsel %vm4504, %v4514, %v4516
      %v4518 = vrot.slane %v4470, 4
      %v4519 = vsel %vm4504, %v4516, %v4518
      %v4520 = vrot.slane %v4471, 4
      %v4521 = vsel %vm4504, %v4518, %v4520
      %v4522 = vrot.slane %v4472, 4
      %v4523 = vsel %vm4504, %v4520, %v4522
      %v4524 = vrot.slane %v4473, 4
      %v4525 = vsel %vm4504, %v4522, %v4524
      %v4526 = vrot.slane %v4474, 4
      %v4527 = vsel %vm4504, %v4524, %v4526
      %v4528 = vrot.slane %v4475, 4
      %v4529 = vsel %vm4504, %v4526, %v4528
      %v4530 = vrot.slane %v4476, 4
      %v4531 = vsel %vm4504, %v4528, %v4530
      %v4532 = vrot.slane %v4477, 4
      %v4533 = vsel %vm4504, %v4530, %v4532
      %v4534 = vrot.slane %v4478, 4
      %v4535 = vsel %vm4504, %v4532, %v4534
      %v4536 = vrot.slane %v4479, 4
      %v4537 = vsel %vm4504, %v4534, %v4536
      %v4538 = vrot.slane %v4483, 4
      %v4539 = vsel %vm4504, %v4536, %v4538
      %v4540 = vrot.slane %v4484, 4
      %v4541 = vsel %vm4504, %v4538, %v4540
      %v4560 = vmax.f32 %v4462, %v4507
      %v4561 = vmax.f32 %v4463, %v4509
      %v4562 = vmax.f32 %v4464, %v4511
      %v4563 = vmax.f32 %v4465, %v4513
      %v4564 = vmax.f32 %v4466, %v4515
      %v4565 = vmax.f32 %v4467, %v4517
      %v4566 = vmax.f32 %v4468, %v4519
      %v4567 = vmax.f32 %v4469, %v4521
      %v4568 = vmax.f32 %v4470, %v4523
      %v4569 = vmax.f32 %v4471, %v4525
      %v4570 = vmax.f32 %v4472, %v4527
      %v4571 = vmax.f32 %v4473, %v4529
      %v4572 = vmax.f32 %v4474, %v4531
      %v4573 = vmax.f32 %v4475, %v4533
      %v4574 = vmax.f32 %v4476, %v4535
      %v4575 = vmax.f32 %v4477, %v4537
      %v4576 = vmax.f32 %v4478, %v4539
      %v4577 = vmax.f32 %v4479, %v4541
      %v4578 = vpack.c.bf16 %v4561, %v4560
      %v4579 = vpack.c.bf16 %v4563, %v4562
      %v4580 = vpack.c.bf16 %v4565, %v4564
      %v4581 = vpack.c.bf16 %v4567, %v4566
      %v4582 = vpack.c.bf16 %v4569, %v4568
      %v4583 = vpack.c.bf16 %v4571, %v4570
      %v4584 = vpack.c.bf16 %v4573, %v4572
      %v4585 = vpack.c.bf16 %v4575, %v4574
      %v4586 = vpack.c.bf16 %v4577, %v4576
      %vm4596 = vcmask 1040384
      %v4597 = vrot.slane %v4578, 7
      %v4598 = vrot.slane %v4579, 7
      %v4599 = vsel %vm4596, %v4597, %v4598
      %v4600 = vrot.slane %v4580, 7
      %v4601 = vsel %vm4596, %v4598, %v4600
      %v4602 = vrot.slane %v4581, 7
      %v4603 = vsel %vm4596, %v4600, %v4602
      %v4604 = vrot.slane %v4582, 7
      %v4605 = vsel %vm4596, %v4602, %v4604
      %v4606 = vrot.slane %v4583, 7
      %v4607 = vsel %vm4596, %v4604, %v4606
      %v4608 = vrot.slane %v4584, 7
      %v4609 = vsel %vm4596, %v4606, %v4608
      %v4610 = vrot.slane %v4585, 7
      %v4611 = vsel %vm4596, %v4608, %v4610
      %v4612 = vrot.slane %v4586, 7
      %v4613 = vsel %vm4596, %v4610, %v4612
      %vm4624 = vcmask 523265
      %4625 = vst.msk [vmem:[#allocation2 + $0x20] sm:$0xfe] %vm4624, %v4597
      %4626 = vst.msk [vmem:[#allocation2 + $0x30] sm:$0xff] %vm349, %v4599
      %4627 = vst.msk [vmem:[#allocation2 + $0x40] sm:$0xff] %vm349, %v4601
      %4628 = vst.msk [vmem:[#allocation2 + $0x50] sm:$0xff] %vm349, %v4603
      %4629 = vst.msk [vmem:[#allocation2 + $0x60] sm:$0xff] %vm349, %v4605
      %4630 = vst.msk [vmem:[#allocation2 + $0x70] sm:$0xff] %vm349, %v4607
      %4631 = vst.msk [vmem:[#allocation2 + $0x80] sm:$0xff] %vm349, %v4609
      %4632 = vst.msk [vmem:[#allocation2 + $0x90] sm:$0xff] %vm349, %v4611
      %4633 = vst.msk [vmem:[#allocation2 + $0xa0] sm:$0xff] %vm349, %v4613
      %vm4634 = vcmask 516096
      %4635 = vst.msk [vmem:[#allocation2 + $0xb0] sm:$0x1] %vm4634, %v4612
      %4636 = vrot.lane.b32.xlu0 %v4578, 64
      %v4637 = vpop.permute.xlu0 %4636
      %4638 = vrot.lane.b32.xlu0 %v4579, 64
      %v4639 = vpop.permute.xlu0 %4638
      %4640 = vrot.lane.b32.xlu0 %v4580, 64
      %v4641 = vpop.permute.xlu0 %4640
      %4642 = vrot.lane.b32.xlu0 %v4581, 64
      %v4643 = vpop.permute.xlu0 %4642
      %4644 = vrot.lane.b32.xlu0 %v4582, 64
      %v4645 = vpop.permute.xlu0 %4644
      %4646 = vrot.lane.b32.xlu0 %v4583, 64
      %v4647 = vpop.permute.xlu0 %4646
      %4648 = vrot.lane.b32.xlu0 %v4584, 64
      %v4649 = vpop.permute.xlu0 %4648
      %4650 = vrot.lane.b32.xlu0 %v4585, 64
      %v4651 = vpop.permute.xlu0 %4650
      %4652 = vrot.lane.b32.xlu0 %v4586, 64
      %v4653 = vpop.permute.xlu0 %4652
      %4663 = vst.msk [vmem:[#allocation2 + $0x20] sm:$0xff] %vm914, %v4637
      %4664 = vst.msk [vmem:[#allocation2 + $0x30] sm:$0xff] %vm914, %v4639
      %4665 = vst.msk [vmem:[#allocation2 + $0x40] sm:$0xff] %vm914, %v4641
      %4666 = vst.msk [vmem:[#allocation2 + $0x50] sm:$0xff] %vm914, %v4643
      %4667 = vst.msk [vmem:[#allocation2 + $0x60] sm:$0xff] %vm914, %v4645
      %4668 = vst.msk [vmem:[#allocation2 + $0x70] sm:$0xff] %vm914, %v4647
      %4669 = vst.msk [vmem:[#allocation2 + $0x80] sm:$0xff] %vm914, %v4649
      %4670 = vst.msk [vmem:[#allocation2 + $0x90] sm:$0xff] %vm914, %v4651
      %4671 = vst.msk [vmem:[#allocation2 + $0xa0] sm:$0xff] %vm914, %v4653
      %vm4672 = vcmask 1046528
      %v4673 = vrot.slane %v4578, 1
      %v4674 = vrot.slane %v4579, 1
      %v4675 = vsel %vm4672, %v4673, %v4674
      %v4676 = vrot.slane %v4580, 1
      %v4677 = vsel %vm4672, %v4674, %v4676
      %v4678 = vrot.slane %v4581, 1
      %v4679 = vsel %vm4672, %v4676, %v4678
      %v4680 = vrot.slane %v4582, 1
      %v4681 = vsel %vm4672, %v4678, %v4680
      %v4682 = vrot.slane %v4583, 1
      %v4683 = vsel %vm4672, %v4680, %v4682
      %v4684 = vrot.slane %v4584, 1
      %v4685 = vsel %vm4672, %v4682, %v4684
      %v4686 = vrot.slane %v4585, 1
      %v4687 = vsel %vm4672, %v4684, %v4686
      %v4688 = vrot.slane %v4586, 1
      %v4689 = vsel %vm4672, %v4686, %v4688
      %vm4700 = vcmask 523271
      %4701 = vst.msk [vmem:[#allocation2 + $0x18] sm:$0x80] %vm4700, %v4673
      %4702 = vst.msk [vmem:[#allocation2 + $0x28] sm:$0xff] %vm349, %v4675
      %4703 = vst.msk [vmem:[#allocation2 + $0x38] sm:$0xff] %vm349, %v4677
      %4704 = vst.msk [vmem:[#allocation2 + $0x48] sm:$0xff] %vm349, %v4679
      %4705 = vst.msk [vmem:[#allocation2 + $0x58] sm:$0xff] %vm349, %v4681
      %4706 = vst.msk [vmem:[#allocation2 + $0x68] sm:$0xff] %vm349, %v4683
      %4707 = vst.msk [vmem:[#allocation2 + $0x78] sm:$0xff] %vm349, %v4685
      %4708 = vst.msk [vmem:[#allocation2 + $0x88] sm:$0xff] %vm349, %v4687
      %4709 = vst.msk [vmem:[#allocation2 + $0x98] sm:$0xff] %vm349, %v4689
      %vm4710 = vcmask 522240
      %4711 = vst.msk [vmem:[#allocation2 + $0xa8] sm:$0x7f] %vm4710, %v4688
      %v4712 = vld [vmem:[#allocation2] sm:$0xf0]
      %v4713 = vld [vmem:[#allocation2 + $0x8] sm:$0xf0]
      %v4714 = vld [vmem:[#allocation2 + $0x10] sm:$0xff]
      %v4715 = vld [vmem:[#allocation2 + $0x18] sm:$0xff]
      %v4716 = vld [vmem:[#allocation2 + $0x20] sm:$0xff]
      %v4717 = vld [vmem:[#allocation2 + $0x28] sm:$0xff]
      %v4718 = vld [vmem:[#allocation2 + $0x30] sm:$0xff]
      %v4719 = vld [vmem:[#allocation2 + $0x38] sm:$0xff]
      %v4720 = vld [vmem:[#allocation2 + $0x40] sm:$0xff]
      %v4721 = vld [vmem:[#allocation2 + $0x48] sm:$0xff]
      %v4722 = vld [vmem:[#allocation2 + $0x50] sm:$0xff]
      %v4723 = vld [vmem:[#allocation2 + $0x58] sm:$0xff]
      %v4724 = vld [vmem:[#allocation2 + $0x60] sm:$0xff]
      %v4725 = vld [vmem:[#allocation2 + $0x68] sm:$0xff]
      %v4726 = vld [vmem:[#allocation2 + $0x70] sm:$0xff]
      %v4727 = vld [vmem:[#allocation2 + $0x78] sm:$0xff]
      %v4728 = vld [vmem:[#allocation2 + $0x80] sm:$0xff]
      %v4729 = vld [vmem:[#allocation2 + $0x88] sm:$0xff]
      %v4730 = vld [vmem:[#allocation2 + $0x90] sm:$0xf]
      %v4731 = vld [vmem:[#allocation2 + $0x98] sm:$0xf]
      %v4732 = vld [vmem:[%s3 + $0x360] sm:$0xf]
      %v4733 = vld [vmem:[%s3 + $0x364] sm:$0xf]
      %v4734 = vld [vmem:[%s3 + $0x368] sm:$0xf]
      %v4735 = vld [vmem:[%s3 + $0x36c] sm:$0xf]
      %v4736 = vld [vmem:[%s3 + $0x370] sm:$0xf]
      %v4737 = vld [vmem:[%s3 + $0x374] sm:$0xf]
      %v4738 = vld [vmem:[%s3 + $0x378] sm:$0xf]
      %v4739 = vld [vmem:[%s3 + $0x37c] sm:$0xf]
      %v4740 = vld [vmem:[%s3 + $0x380] sm:$0xf]
      %v4741 = vld [vmem:[%s3 + $0x384] sm:$0xf]
      %v4742 = vld [vmem:[%s3 + $0x388] sm:$0xf]
      %v4743 = vld [vmem:[%s3 + $0x38c] sm:$0xf]
      %v4744 = vld [vmem:[%s3 + $0x390] sm:$0xf]
      %v4745 = vld [vmem:[%s3 + $0x394] sm:$0xf]
      %v4746 = vld [vmem:[%s3 + $0x398] sm:$0xf]
      %v4747 = vld [vmem:[%s3 + $0x39c] sm:$0xf]
      %v4748 = vld [vmem:[%s3 + $0x3a0] sm:$0xf]
      %v4749 = vld [vmem:[%s3 + $0x3a4] sm:$0xf]
      %v4750 = vld [vmem:[%s3 + $0x3a8] sm:$0xf]
      %v4751 = vld [vmem:[%s3 + $0x3ac] sm:$0xf]
      %v4752 = vld [vmem:[%s3 + $0x3b0] sm:$0xf]
      %v4753 = vld [vmem:[%s3 + $0x3b4] sm:$0xf]
      %v4754 = vld [vmem:[%s3 + $0x3b8] sm:$0xf]
      %v4755 = vld [vmem:[%s3 + $0x3bc] sm:$0xf]
      %v4756 = vld [vmem:[#allocation2 + $0x90] sm:$0xff]
      %v4757 = vld [vmem:[#allocation2 + $0x98] sm:$0xff]
      %v4758 = vld [vmem:[#allocation2 + $0xa0] sm:$0xff]
      %v4759 = vld [vmem:[#allocation2 + $0xa8] sm:$0xff]
      %v4760 = vld [vmem:[%s3 + $0x3c0] sm:$0xf]
      %v4761 = vld [vmem:[%s3 + $0x3c4] sm:$0xf]
      %v4762 = vld [vmem:[%s3 + $0x3c8] sm:$0xf]
      %v4763 = vld [vmem:[%s3 + $0x3cc] sm:$0xf]
      %v4764 = vld [vmem:[%s3 + $0x3d0] sm:$0xf]
      %v4765 = vld [vmem:[%s3 + $0x3d4] sm:$0xf]
      %v4766 = vld [vmem:[%s3 + $0x3d8] sm:$0xf]
      %v4767 = vld [vmem:[%s3 + $0x3dc] sm:$0xf]
      %v4768 = vld [vmem:[%s3 + $0x3e0] sm:$0xf]
      %v4769 = vld [vmem:[%s3 + $0x3e4] sm:$0xf]
      %v4770 = vld [vmem:[%s3 + $0x3e8] sm:$0xf]
      %v4771 = vld [vmem:[%s3 + $0x3ec] sm:$0xf]
      %v4772 = vld [vmem:[%s3 + $0x3f0] sm:$0xf]
      %v4773 = vld [vmem:[%s3 + $0x3f4] sm:$0xf]
      %v4774 = vld [vmem:[%s3 + $0x3f8] sm:$0xf]
      %v4775 = vld [vmem:[%s3 + $0x3fc] sm:$0xf]
      %v4776 = vld [vmem:[%s3 + $0x400] sm:$0xf]
      %v4777 = vld [vmem:[%s3 + $0x404] sm:$0xf]
      %v4778 = vld [vmem:[%s3 + $0x408] sm:$0xf]
      %v4779 = vld [vmem:[%s3 + $0x40c] sm:$0xf]
      %v4780 = vld [vmem:[%s3 + $0x410] sm:$0xf]
      %v4781 = vld [vmem:[%s3 + $0x414] sm:$0xf]
      %v4782 = vld [vmem:[%s3 + $0x418] sm:$0xf]
      %v4783 = vld [vmem:[%s3 + $0x41c] sm:$0xf]
      %v4808 = vunpack.c.l.b16 %v4760
      %v4809 = vunpack.c.l.b16 %v4761
      %v4810 = vunpack.c.l.b16 %v4762
      %v4811 = vunpack.c.l.b16 %v4763
      %v4812 = vunpack.c.l.b16 %v4764
      %v4813 = vunpack.c.l.b16 %v4765
      %v4814 = vunpack.c.l.b16 %v4766
      %v4815 = vunpack.c.l.b16 %v4767
      %v4816 = vunpack.c.l.b16 %v4768
      %v4817 = vunpack.c.l.b16 %v4769
      %v4818 = vunpack.c.l.b16 %v4770
      %v4819 = vunpack.c.l.b16 %v4771
      %v4820 = vunpack.c.l.b16 %v4772
      %v4821 = vunpack.c.l.b16 %v4773
      %v4822 = vunpack.c.l.b16 %v4774
      %v4823 = vunpack.c.l.b16 %v4775
      %v4824 = vunpack.c.l.b16 %v4776
      %v4825 = vunpack.c.l.b16 %v4777
      %v4826 = vunpack.c.l.b16 %v4778
      %v4827 = vunpack.c.l.b16 %v4779
      %v4828 = vunpack.c.l.b16 %v4780
      %v4829 = vunpack.c.l.b16 %v4781
      %v4830 = vunpack.c.l.b16 %v4782
      %v4831 = vunpack.c.l.b16 %v4783
      %v4832 = vpack.c.b16 %v4809, %v4808
      %v4833 = vpack.c.b16 %v4811, %v4810
      %v4834 = vpack.c.b16 %v4813, %v4812
      %v4835 = vpack.c.b16 %v4815, %v4814
      %v4836 = vpack.c.b16 %v4817, %v4816
      %v4837 = vpack.c.b16 %v4819, %v4818
      %v4838 = vpack.c.b16 %v4821, %v4820
      %v4839 = vpack.c.b16 %v4823, %v4822
      %v4840 = vpack.c.b16 %v4825, %v4824
      %v4841 = vpack.c.b16 %v4827, %v4826
      %v4842 = vpack.c.b16 %v4829, %v4828
      %v4843 = vpack.c.b16 %v4831, %v4830
      %v4857 = vsel %vm349, %v4717, 0
      %v4860 = vsel %vm349, %v4719, 0
      %v4863 = vsel %vm349, %v4721, 0
      %v4866 = vsel %vm349, %v4723, 0
      %v4869 = vsel %vm349, %v4725, 0
      %v4872 = vsel %vm349, %v4727, 0
      %v4875 = vsel %vm349, %v4729, 0
      %v4878 = vsel %vm349, %v4757, 0
      %v4881 = vsel %vm349, %v4759, 0
      %4883 = vmatprep.subr.bf16.mxu0 0
      %4884 = vmatpush1.bf16.msra.mxu0 %v4832
      %4885 = vmatprep.subr.bf16.mxu0 0
      %4886 = vmatpush1.bf16.msra.mxu0 %v4833
      %4887 = vmatprep.subr.bf16.mxu0 0
      %4888 = vmatpush1.bf16.msra.mxu0 %v4834
      %4889 = vmatprep.subr.bf16.mxu0 0
      %4890 = vmatpush1.bf16.msra.mxu0 %v4835
      %4891 = vmatprep.subr.bf16.mxu0 0
      %4892 = vmatpush1.bf16.msra.mxu0 %v4836
      %4893 = vmatprep.subr.bf16.mxu0 0
      %4894 = vmatpush1.bf16.msra.mxu0 %v4837
      %4895 = vmatprep.subr.bf16.mxu0 0
      %4896 = vmatpush1.bf16.msra.mxu0 %v4838
      %4897 = vmatprep.subr.bf16.mxu0 0
      %4898 = vmatpush1.bf16.msra.mxu0 %v4839
      %4899 = vmatprep.subr.bf16.mxu0 0
      %4900 = vmatpush1.bf16.msra.mxu0 %v4840
      %4901 = vmatprep.subr.bf16.mxu0 0
      %4902 = vmatpush1.bf16.msra.mxu0 %v4841
      %4903 = vmatprep.subr.bf16.mxu0 0
      %4904 = vmatpush1.bf16.msra.mxu0 %v4842
      %4905 = vmatprep.subr.bf16.mxu0 0
      %4906 = vmatpush1.bf16.msra.mxu0 %v4843
      %4907 = vmatprep.subr.bf16.mxu0 0
      %4908 = vmatpush1.bf16.msra.mxu0 0
      %4909 = vmatprep.subr.bf16.mxu0 0
      %4910 = vmatpush1.bf16.msra.mxu0 0
      %4911 = vmatprep.subr.bf16.mxu0 0
      %4912 = vmatpush1.bf16.msra.mxu0 0
      %4913 = vmatprep.subr.bf16.mxu0 0
      %4914 = vmatpush1.bf16.msra.mxu0 0
      %4915 = vmatprep.mubr.bf16.mxu0 %v4857
      %4916 = vmatmul.mubr.bf16.gmra.mrb[0].mxu0 %v4716
      %v4917 = vpop.f32.mrb[0].mxu0
      %v4918 = vpop.f32.mrb[0].mxu0
      %v4919 = vpop.f32.mrb[0].mxu0
      %v4920 = vpop.f32.mrb[0].mxu0
      %4921 = vmatprep.mubr.bf16.mxu0 %v4860
      %4922 = vmatmul.mubr.bf16.gmra.mrb[0].mxu0 %v4718
      %v4923 = vpop.f32.mrb[0].mxu0
      %v4924 = vpop.f32.mrb[0].mxu0
      %v4925 = vpop.f32.mrb[0].mxu0
      %v4926 = vpop.f32.mrb[0].mxu0
      %4927 = vmatprep.mubr.bf16.mxu0 %v4863
      %4928 = vmatmul.mubr.bf16.gmra.mrb[0].mxu0 %v4720
      %v4929 = vpop.f32.mrb[0].mxu0
      %v4930 = vpop.f32.mrb[0].mxu0
      %v4931 = vpop.f32.mrb[0].mxu0
      %v4932 = vpop.f32.mrb[0].mxu0
      %4933 = vmatprep.mubr.bf16.mxu0 %v4866
      %4934 = vmatmul.mubr.bf16.gmra.mrb[0].mxu0 %v4722
      %v4935 = vpop.f32.mrb[0].mxu0
      %v4936 = vadd.f32 0.0, %v4935
      %v4937 = vpop.f32.mrb[0].mxu0
      %v4938 = vpop.f32.mrb[0].mxu0
      %v4939 = vadd.f32 0.0, %v4938
      %v4940 = vpop.f32.mrb[0].mxu0
      %4941 = vmatprep.mubr.bf16.mxu0 %v4869
      %4942 = vmatmul.mubr.bf16.gmra.mrb[0].mxu0 %v4724
      %v4943 = vpop.f32.mrb[0].mxu0
      %v4944 = vpop.f32.mrb[0].mxu0
      %v4945 = vpop.f32.mrb[0].mxu0
      %v4946 = vadd.f32 0.0, %v4945
      %v4947 = vpop.f32.mrb[0].mxu0
      %4948 = vmatprep.mubr.bf16.mxu0 %v4872
      %4949 = vmatmul.mubr.bf16.gmra.mrb[0].mxu0 %v4726
      %v4950 = vpop.f32.mrb[0].mxu0
      %v4951 = vadd.f32 0.0, %v4950
      %v4952 = vpop.f32.mrb[0].mxu0
      %v4953 = vpop.f32.mrb[0].mxu0
      %v4954 = vpop.f32.mrb[0].mxu0
      %4955 = vmatprep.mubr.bf16.mxu0 %v4875
      %4956 = vmatmul.mubr.bf16.gmra.mrb[0].mxu0 %v4728
      %v4957 = vpop.f32.mrb[0].mxu0
      %v4958 = vpop.f32.mrb[0].mxu0
      %v4959 = vpop.f32.mrb[0].mxu0
      %v4960 = vpop.f32.mrb[0].mxu0
      %4961 = vmatprep.mubr.bf16.mxu0 %v4878
      %4962 = vmatmul.mubr.bf16.gmra.mrb[0].mxu0 %v4756
      %v4963 = vpop.f32.mrb[0].mxu0
      %v4964 = vpop.f32.mrb[0].mxu0
      %v4965 = vpop.f32.mrb[0].mxu0
      %v4966 = vpop.f32.mrb[0].mxu0
      %4967 = vmatprep.mubr.bf16.mxu0 %v4881
      %4968 = vmatmul.mubr.bf16.gmra.mrb[0].mxu0 %v4758
      %v4969 = vpop.f32.mrb[0].mxu0
      %v4970 = vpop.f32.mrb[0].mxu0
      %v4971 = vpop.f32.mrb[0].mxu0
      %v4972 = vpop.f32.mrb[0].mxu0
      %4973 = vdwg.mxu0
      %vm4994 = vcmask 1043456
      %v4995 = vrot.slane %v4712, 4
      %v4996 = vrot.slane %v4714, 4
      %v4997 = vsel %vm4994, %v4995, %v4996
      %v4998 = vrot.slane %v4713, 4
      %v4999 = vrot.slane %v4715, 4
      %v5000 = vsel %vm4994, %v4998, %v4999
      %v5001 = vrot.slane %v4716, 4
      %v5002 = vsel %vm4994, %v4996, %v5001
      %v5003 = vrot.slane %v4717, 4
      %v5004 = vsel %vm4994, %v4999, %v5003
      %v5005 = vrot.slane %v4718, 4
      %v5006 = vsel %vm4994, %v5001, %v5005
      %v5007 = vrot.slane %v4719, 4
      %v5008 = vsel %vm4994, %v5003, %v5007
      %v5009 = vrot.slane %v4720, 4
      %v5010 = vsel %vm4994, %v5005, %v5009
      %v5011 = vrot.slane %v4721, 4
      %v5012 = vsel %vm4994, %v5007, %v5011
      %v5013 = vrot.slane %v4722, 4
      %v5014 = vsel %vm4994, %v5009, %v5013
      %v5015 = vrot.slane %v4723, 4
      %v5016 = vsel %vm4994, %v5011, %v5015
      %v5017 = vrot.slane %v4724, 4
      %v5018 = vsel %vm4994, %v5013, %v5017
      %v5019 = vrot.slane %v4725, 4
      %v5020 = vsel %vm4994, %v5015, %v5019
      %v5021 = vrot.slane %v4726, 4
      %v5022 = vsel %vm4994, %v5017, %v5021
      %v5023 = vrot.slane %v4727, 4
      %v5024 = vsel %vm4994, %v5019, %v5023
      %v5025 = vrot.slane %v4728, 4
      %v5026 = vsel %vm4994, %v5021, %v5025
      %v5027 = vrot.slane %v4729, 4
      %v5028 = vsel %vm4994, %v5023, %v5027
      %v5029 = vrot.slane %v4730, 4
      %v5030 = vsel %vm4994, %v5025, %v5029
      %v5031 = vrot.slane %v4731, 4
      %v5032 = vsel %vm4994, %v5027, %v5031
      %v5066 = vunpack.c.l.b16 %v4732
      %v5067 = vunpack.c.l.b16 %v4733
      %v5068 = vunpack.c.l.b16 %v4734
      %v5069 = vunpack.c.l.b16 %v4735
      %v5070 = vunpack.c.l.b16 %v4736
      %v5071 = vunpack.c.l.b16 %v4737
      %v5072 = vunpack.c.l.b16 %v4738
      %v5073 = vunpack.c.l.b16 %v4739
      %v5074 = vunpack.c.l.b16 %v4740
      %v5075 = vunpack.c.l.b16 %v4741
      %v5076 = vunpack.c.l.b16 %v4742
      %v5077 = vunpack.c.l.b16 %v4743
      %v5078 = vunpack.c.l.b16 %v4744
      %v5079 = vunpack.c.l.b16 %v4745
      %v5080 = vunpack.c.l.b16 %v4746
      %v5081 = vunpack.c.l.b16 %v4747
      %v5082 = vunpack.c.l.b16 %v4748
      %v5083 = vunpack.c.l.b16 %v4749
      %v5084 = vunpack.c.l.b16 %v4750
      %v5085 = vunpack.c.l.b16 %v4751
      %v5086 = vunpack.c.l.b16 %v4752
      %v5087 = vunpack.c.l.b16 %v4753
      %v5088 = vunpack.c.l.b16 %v4754
      %v5089 = vunpack.c.l.b16 %v4755
      %v5090 = vpack.c.b16 %v5067, %v5066
      %v5091 = vpack.c.b16 %v5069, %v5068
      %v5092 = vpack.c.b16 %v5071, %v5070
      %v5093 = vpack.c.b16 %v5073, %v5072
      %v5094 = vpack.c.b16 %v5075, %v5074
      %v5095 = vpack.c.b16 %v5077, %v5076
      %v5096 = vpack.c.b16 %v5079, %v5078
      %v5097 = vpack.c.b16 %v5081, %v5080
      %v5098 = vpack.c.b16 %v5083, %v5082
      %v5099 = vpack.c.b16 %v5085, %v5084
      %v5100 = vpack.c.b16 %v5087, %v5086
      %v5101 = vpack.c.b16 %v5089, %v5088
      %v5115 = vsel %vm349, %v5000, 0
      %v5118 = vsel %vm349, %v5004, 0
      %v5121 = vsel %vm349, %v5008, 0
      %v5124 = vsel %vm349, %v5012, 0
      %v5127 = vsel %vm349, %v5016, 0
      %v5130 = vsel %vm349, %v5020, 0
      %v5133 = vsel %vm349, %v5024, 0
      %v5136 = vsel %vm349, %v5028, 0
      %v5139 = vsel %vm349, %v5032, 0
      %5141 = vmatprep.subr.bf16.mxu0 0
      %5142 = vmatpush1.bf16.msra.mxu0 %v5090
      %5143 = vmatprep.subr.bf16.mxu0 0
      %5144 = vmatpush1.bf16.msra.mxu0 %v5091
      %5145 = vmatprep.subr.bf16.mxu0 0
      %5146 = vmatpush1.bf16.msra.mxu0 %v5092
      %5147 = vmatprep.subr.bf16.mxu0 0
      %5148 = vmatpush1.bf16.msra.mxu0 %v5093
      %5149 = vmatprep.subr.bf16.mxu0 0
      %5150 = vmatpush1.bf16.msra.mxu0 %v5094
      %5151 = vmatprep.subr.bf16.mxu0 0
      %5152 = vmatpush1.bf16.msra.mxu0 %v5095
      %5153 = vmatprep.subr.bf16.mxu0 0
      %5154 = vmatpush1.bf16.msra.mxu0 %v5096
      %5155 = vmatprep.subr.bf16.mxu0 0
      %5156 = vmatpush1.bf16.msra.mxu0 %v5097
      %5157 = vmatprep.subr.bf16.mxu0 0
      %5158 = vmatpush1.bf16.msra.mxu0 %v5098
      %5159 = vmatprep.subr.bf16.mxu0 0
      %5160 = vmatpush1.bf16.msra.mxu0 %v5099
      %5161 = vmatprep.subr.bf16.mxu0 0
      %5162 = vmatpush1.bf16.msra.mxu0 %v5100
      %5163 = vmatprep.subr.bf16.mxu0 0
      %5164 = vmatpush1.bf16.msra.mxu0 %v5101
      %5165 = vmatprep.subr.bf16.mxu0 0
      %5166 = vmatpush1.bf16.msra.mxu0 0
      %5167 = vmatprep.subr.bf16.mxu0 0
      %5168 = vmatpush1.bf16.msra.mxu0 0
      %5169 = vmatprep.subr.bf16.mxu0 0
      %5170 = vmatpush1.bf16.msra.mxu0 0
      %5171 = vmatprep.subr.bf16.mxu0 0
      %5172 = vmatpush1.bf16.msra.mxu0 0
      %5173 = vmatprep.mubr.bf16.mxu0 %v5115
      %5174 = vmatmul.mubr.bf16.gmra.mrb[0].mxu0 %v4997
      %v5175 = vpop.f32.mrb[0].mxu0
      %v5176 = vpop.f32.mrb[0].mxu0
      %v5177 = vpop.f32.mrb[0].mxu0
      %v5178 = vpop.f32.mrb[0].mxu0
      %5179 = vmatprep.mubr.bf16.mxu0 %v5118
      %5180 = vmatmul.mubr.bf16.gmra.mrb[0].mxu0 %v5002
      %v5181 = vpop.f32.mrb[0].mxu0
      %v5182 = vpop.f32.mrb[0].mxu0
      %v5183 = vpop.f32.mrb[0].mxu0
      %v5184 = vpop.f32.mrb[0].mxu0
      %5185 = vmatprep.mubr.bf16.mxu0 %v5121
      %5186 = vmatmul.mubr.bf16.gmra.mrb[0].mxu0 %v5006
      %v5187 = vpop.f32.mrb[0].mxu0
      %v5188 = vpop.f32.mrb[0].mxu0
      %v5189 = vpop.f32.mrb[0].mxu0
      %v5190 = vpop.f32.mrb[0].mxu0
      %5191 = vmatprep.mubr.bf16.mxu0 %v5124
      %5192 = vmatmul.mubr.bf16.gmra.mrb[0].mxu0 %v5010
      %v5193 = vpop.f32.mrb[0].mxu0
      %v5194 = vadd.f32 %v4936, %v5193
      %v5195 = vpop.f32.mrb[0].mxu0
      %v5196 = vpop.f32.mrb[0].mxu0
      %v5197 = vadd.f32 %v4939, %v5196
      %v5198 = vpop.f32.mrb[0].mxu0
      %5199 = vmatprep.mubr.bf16.mxu0 %v5127
      %5200 = vmatmul.mubr.bf16.gmra.mrb[0].mxu0 %v5014
      %v5201 = vpop.f32.mrb[0].mxu0
      %v5202 = vpop.f32.mrb[0].mxu0
      %v5203 = vpop.f32.mrb[0].mxu0
      %v5204 = vadd.f32 %v4946, %v5203
      %v5205 = vpop.f32.mrb[0].mxu0
      %5206 = vmatprep.mubr.bf16.mxu0 %v5130
      %5207 = vmatmul.mubr.bf16.gmra.mrb[0].mxu0 %v5018
      %v5208 = vpop.f32.mrb[0].mxu0
      %v5209 = vadd.f32 %v4951, %v5208
      %v5210 = vpop.f32.mrb[0].mxu0
      %v5211 = vpop.f32.mrb[0].mxu0
      %v5212 = vpop.f32.mrb[0].mxu0
      %5213 = vmatprep.mubr.bf16.mxu0 %v5133
      %5214 = vmatmul.mubr.bf16.gmra.mrb[0].mxu0 %v5022
      %v5215 = vpop.f32.mrb[0].mxu0
      %v5216 = vpop.f32.mrb[0].mxu0
      %v5217 = vpop.f32.mrb[0].mxu0
      %v5218 = vpop.f32.mrb[0].mxu0
      %5219 = vmatprep.mubr.bf16.mxu0 %v5136
      %5220 = vmatmul.mubr.bf16.gmra.mrb[0].mxu0 %v5026
      %v5221 = vpop.f32.mrb[0].mxu0
      %v5222 = vpop.f32.mrb[0].mxu0
      %v5223 = vpop.f32.mrb[0].mxu0
      %v5224 = vpop.f32.mrb[0].mxu0
      %5225 = vmatprep.mubr.bf16.mxu0 %v5139
      %5226 = vmatmul.mubr.bf16.gmra.mrb[0].mxu0 %v5030
      %v5227 = vpop.f32.mrb[0].mxu0
      %v5228 = vpop.f32.mrb[0].mxu0
      %v5229 = vpop.f32.mrb[0].mxu0
      %v5230 = vpop.f32.mrb[0].mxu0
      %5231 = vdwg.mxu0
      %v5232 = vld [vmem:[#allocation2 + $0x30] sm:$0xf0]
      %v5233 = vld [vmem:[#allocation2 + $0x38] sm:$0xf0]
      %v5234 = vld [vmem:[#allocation2 + $0x40] sm:$0xff]
      %v5235 = vld [vmem:[#allocation2 + $0x48] sm:$0xff]
      %v5236 = vld [vmem:[#allocation2 + $0x50] sm:$0xff]
      %v5237 = vld [vmem:[#allocation2 + $0x58] sm:$0xff]
      %v5238 = vld [vmem:[#allocation2 + $0x60] sm:$0xff]
      %v5239 = vld [vmem:[#allocation2 + $0x68] sm:$0xff]
      %v5240 = vld [vmem:[#allocation2 + $0x70] sm:$0xff]
      %v5241 = vld [vmem:[#allocation2 + $0x78] sm:$0xff]
      %v5242 = vld [vmem:[#allocation2 + $0x80] sm:$0xff]
      %v5243 = vld [vmem:[#allocation2 + $0x88] sm:$0xff]
      %v5244 = vld [vmem:[#allocation2 + $0x90] sm:$0xff]
      %v5245 = vld [vmem:[#allocation2 + $0x98] sm:$0xff]
      %v5246 = vld [vmem:[#allocation2 + $0xa0] sm:$0xff]
      %v5247 = vld [vmem:[#allocation2 + $0xa8] sm:$0xff]
      %v5248 = vld [vmem:[#allocation2 + $0xb0] sm:$0xff]
      %v5249 = vld [vmem:[#allocation2 + $0xb8] sm:$0xff]
      %v5250 = vld [vmem:[#allocation2 + $0xc0] sm:$0xf]
      %v5251 = vld [vmem:[#allocation2 + $0xc8] sm:$0xf]
      %v5252 = vld [vmem:[%s3 + $0x420] sm:$0xf]
      %v5253 = vld [vmem:[%s3 + $0x424] sm:$0xf]
      %v5254 = vld [vmem:[%s3 + $0x428] sm:$0xf]
      %v5255 = vld [vmem:[%s3 + $0x42c] sm:$0xf]
      %v5256 = vld [vmem:[%s3 + $0x430] sm:$0xf]
      %v5257 = vld [vmem:[%s3 + $0x434] sm:$0xf]
      %v5258 = vld [vmem:[%s3 + $0x438] sm:$0xf]
      %v5259 = vld [vmem:[%s3 + $0x43c] sm:$0xf]
      %v5260 = vld [vmem:[%s3 + $0x440] sm:$0xf]
      %v5261 = vld [vmem:[%s3 + $0x444] sm:$0xf]
      %v5262 = vld [vmem:[%s3 + $0x448] sm:$0xf]
      %v5263 = vld [vmem:[%s3 + $0x44c] sm:$0xf]
      %v5264 = vld [vmem:[%s3 + $0x450] sm:$0xf]
      %v5265 = vld [vmem:[%s3 + $0x454] sm:$0xf]
      %v5266 = vld [vmem:[%s3 + $0x458] sm:$0xf]
      %v5267 = vld [vmem:[%s3 + $0x45c] sm:$0xf]
      %v5268 = vld [vmem:[%s3 + $0x460] sm:$0xf]
      %v5269 = vld [vmem:[%s3 + $0x464] sm:$0xf]
      %v5270 = vld [vmem:[%s3 + $0x468] sm:$0xf]
      %v5271 = vld [vmem:[%s3 + $0x46c] sm:$0xf]
      %v5272 = vld [vmem:[%s3 + $0x470] sm:$0xf]
      %v5273 = vld [vmem:[%s3 + $0x474] sm:$0xf]
      %v5274 = vld [vmem:[%s3 + $0x478] sm:$0xf]
      %v5275 = vld [vmem:[%s3 + $0x47c] sm:$0xf]
      %v5296 = vrot.slane %v5232, 4
      %v5297 = vrot.slane %v5234, 4
      %v5298 = vsel %vm4994, %v5296, %v5297
      %v5299 = vrot.slane %v5233, 4
      %v5300 = vrot.slane %v5235, 4
      %v5301 = vsel %vm4994, %v5299, %v5300
      %v5302 = vrot.slane %v5236, 4
      %v5303 = vsel %vm4994, %v5297, %v5302
      %v5304 = vrot.slane %v5237, 4
      %v5305 = vsel %vm4994, %v5300, %v5304
      %v5306 = vrot.slane %v5238, 4
      %v5307 = vsel %vm4994, %v5302, %v5306
      %v5308 = vrot.slane %v5239, 4
      %v5309 = vsel %vm4994, %v5304, %v5308
      %v5310 = vrot.slane %v5240, 4
      %v5311 = vsel %vm4994, %v5306, %v5310
      %v5312 = vrot.slane %v5241, 4
      %v5313 = vsel %vm4994, %v5308, %v5312
      %v5314 = vrot.slane %v5242, 4
      %v5315 = vsel %vm4994, %v5310, %v5314
      %v5316 = vrot.slane %v5243, 4
      %v5317 = vsel %vm4994, %v5312, %v5316
      %v5318 = vrot.slane %v5244, 4
      %v5319 = vsel %vm4994, %v5314, %v5318
      %v5320 = vrot.slane %v5245, 4
      %v5321 = vsel %vm4994, %v5316, %v5320
      %v5322 = vrot.slane %v5246, 4
      %v5323 = vsel %vm4994, %v5318, %v5322
      %v5324 = vrot.slane %v5247, 4
      %v5325 = vsel %vm4994, %v5320, %v5324
      %v5326 = vrot.slane %v5248, 4
      %v5327 = vsel %vm4994, %v5322, %v5326
      %v5328 = vrot.slane %v5249, 4
      %v5329 = vsel %vm4994, %v5324, %v5328
      %v5330 = vrot.slane %v5250, 4
      %v5331 = vsel %vm4994, %v5326, %v5330
      %v5332 = vrot.slane %v5251, 4
      %v5333 = vsel %vm4994, %v5328, %v5332
      %v5367 = vunpack.c.l.b16 %v5252
      %v5368 = vunpack.c.l.b16 %v5253
      %v5369 = vunpack.c.l.b16 %v5254
      %v5370 = vunpack.c.l.b16 %v5255
      %v5371 = vunpack.c.l.b16 %v5256
      %v5372 = vunpack.c.l.b16 %v5257
      %v5373 = vunpack.c.l.b16 %v5258
      %v5374 = vunpack.c.l.b16 %v5259
      %v5375 = vunpack.c.l.b16 %v5260
      %v5376 = vunpack.c.l.b16 %v5261
      %v5377 = vunpack.c.l.b16 %v5262
      %v5378 = vunpack.c.l.b16 %v5263
      %v5379 = vunpack.c.l.b16 %v5264
      %v5380 = vunpack.c.l.b16 %v5265
      %v5381 = vunpack.c.l.b16 %v5266
      %v5382 = vunpack.c.l.b16 %v5267
      %v5383 = vunpack.c.l.b16 %v5268
      %v5384 = vunpack.c.l.b16 %v5269
      %v5385 = vunpack.c.l.b16 %v5270
      %v5386 = vunpack.c.l.b16 %v5271
      %v5387 = vunpack.c.l.b16 %v5272
      %v5388 = vunpack.c.l.b16 %v5273
      %v5389 = vunpack.c.l.b16 %v5274
      %v5390 = vunpack.c.l.b16 %v5275
      %v5391 = vpack.c.b16 %v5368, %v5367
      %v5392 = vpack.c.b16 %v5370, %v5369
      %v5393 = vpack.c.b16 %v5372, %v5371
      %v5394 = vpack.c.b16 %v5374, %v5373
      %v5395 = vpack.c.b16 %v5376, %v5375
      %v5396 = vpack.c.b16 %v5378, %v5377
      %v5397 = vpack.c.b16 %v5380, %v5379
      %v5398 = vpack.c.b16 %v5382, %v5381
      %v5399 = vpack.c.b16 %v5384, %v5383
      %v5400 = vpack.c.b16 %v5386, %v5385
      %v5401 = vpack.c.b16 %v5388, %v5387
      %v5402 = vpack.c.b16 %v5390, %v5389
      %v5416 = vsel %vm349, %v5301, 0
      %v5419 = vsel %vm349, %v5305, 0
      %v5422 = vsel %vm349, %v5309, 0
      %v5425 = vsel %vm349, %v5313, 0
      %v5428 = vsel %vm349, %v5317, 0
      %v5431 = vsel %vm349, %v5321, 0
      %v5434 = vsel %vm349, %v5325, 0
      %v5437 = vsel %vm349, %v5329, 0
      %v5440 = vsel %vm349, %v5333, 0
      %5442 = vmatprep.subr.bf16.mxu0 0
      %5443 = vmatpush1.bf16.msra.mxu0 %v5391
      %5444 = vmatprep.subr.bf16.mxu0 0
      %5445 = vmatpush1.bf16.msra.mxu0 %v5392
      %5446 = vmatprep.subr.bf16.mxu0 0
      %5447 = vmatpush1.bf16.msra.mxu0 %v5393
      %5448 = vmatprep.subr.bf16.mxu0 0
      %5449 = vmatpush1.bf16.msra.mxu0 %v5394
      %5450 = vmatprep.subr.bf16.mxu0 0
      %5451 = vmatpush1.bf16.msra.mxu0 %v5395
      %5452 = vmatprep.subr.bf16.mxu0 0
      %5453 = vmatpush1.bf16.msra.mxu0 %v5396
      %5454 = vmatprep.subr.bf16.mxu0 0
      %5455 = vmatpush1.bf16.msra.mxu0 %v5397
      %5456 = vmatprep.subr.bf16.mxu0 0
      %5457 = vmatpush1.bf16.msra.mxu0 %v5398
      %5458 = vmatprep.subr.bf16.mxu0 0
      %5459 = vmatpush1.bf16.msra.mxu0 %v5399
      %5460 = vmatprep.subr.bf16.mxu0 0
      %5461 = vmatpush1.bf16.msra.mxu0 %v5400
      %5462 = vmatprep.subr.bf16.mxu0 0
      %5463 = vmatpush1.bf16.msra.mxu0 %v5401
      %5464 = vmatprep.subr.bf16.mxu0 0
      %5465 = vmatpush1.bf16.msra.mxu0 %v5402
      %5466 = vmatprep.subr.bf16.mxu0 0
      %5467 = vmatpush1.bf16.msra.mxu0 0
      %5468 = vmatprep.subr.bf16.mxu0 0
      %5469 = vmatpush1.bf16.msra.mxu0 0
      %5470 = vmatprep.subr.bf16.mxu0 0
      %5471 = vmatpush1.bf16.msra.mxu0 0
      %5472 = vmatprep.subr.bf16.mxu0 0
      %5473 = vmatpush1.bf16.msra.mxu0 0
      %5474 = vmatprep.mubr.bf16.mxu0 %v5416
      %5475 = vmatmul.mubr.bf16.gmra.mrb[0].mxu0 %v5298
      %v5476 = vpop.f32.mrb[0].mxu0
      %v5477 = vpop.f32.mrb[0].mxu0
      %v5478 = vpop.f32.mrb[0].mxu0
      %v5479 = vpop.f32.mrb[0].mxu0
      %5480 = vmatprep.mubr.bf16.mxu0 %v5419
      %5481 = vmatmul.mubr.bf16.gmra.mrb[0].mxu0 %v5303
      %v5482 = vpop.f32.mrb[0].mxu0
      %v5483 = vpop.f32.mrb[0].mxu0
      %v5484 = vpop.f32.mrb[0].mxu0
      %v5485 = vpop.f32.mrb[0].mxu0
      %5486 = vmatprep.mubr.bf16.mxu0 %v5422
      %5487 = vmatmul.mubr.bf16.gmra.mrb[0].mxu0 %v5307
      %v5488 = vpop.f32.mrb[0].mxu0
      %v5489 = vpop.f32.mrb[0].mxu0
      %v5490 = vpop.f32.mrb[0].mxu0
      %v5491 = vpop.f32.mrb[0].mxu0
      %5492 = vmatprep.mubr.bf16.mxu0 %v5425
      %5493 = vmatmul.mubr.bf16.gmra.mrb[0].mxu0 %v5311
      %v5494 = vpop.f32.mrb[0].mxu0
      %v5495 = vadd.f32 0.0, %v5494
      %v5496 = vpop.f32.mrb[0].mxu0
      %v5497 = vpop.f32.mrb[0].mxu0
      %v5498 = vadd.f32 0.0, %v5497
      %v5499 = vpop.f32.mrb[0].mxu0
      %5500 = vmatprep.mubr.bf16.mxu0 %v5428
      %5501 = vmatmul.mubr.bf16.gmra.mrb[0].mxu0 %v5315
      %v5502 = vpop.f32.mrb[0].mxu0
      %v5503 = vpop.f32.mrb[0].mxu0
      %v5504 = vpop.f32.mrb[0].mxu0
      %v5505 = vadd.f32 0.0, %v5504
      %v5506 = vpop.f32.mrb[0].mxu0
      %5507 = vmatprep.mubr.bf16.mxu0 %v5431
      %5508 = vmatmul.mubr.bf16.gmra.mrb[0].mxu0 %v5319
      %v5509 = vpop.f32.mrb[0].mxu0
      %v5510 = vadd.f32 0.0, %v5509
      %v5511 = vpop.f32.mrb[0].mxu0
      %v5512 = vpop.f32.mrb[0].mxu0
      %v5513 = vpop.f32.mrb[0].mxu0
      %5514 = vmatprep.mubr.bf16.mxu0 %v5434
      %5515 = vmatmul.mubr.bf16.gmra.mrb[0].mxu0 %v5323
      %v5516 = vpop.f32.mrb[0].mxu0
      %v5517 = vpop.f32.mrb[0].mxu0
      %v5518 = vpop.f32.mrb[0].mxu0
      %v5519 = vpop.f32.mrb[0].mxu0
      %5520 = vmatprep.mubr.bf16.mxu0 %v5437
      %5521 = vmatmul.mubr.bf16.gmra.mrb[0].mxu0 %v5327
      %v5522 = vpop.f32.mrb[0].mxu0
      %v5523 = vpop.f32.mrb[0].mxu0
      %v5524 = vpop.f32.mrb[0].mxu0
      %v5525 = vpop.f32.mrb[0].mxu0
      %5526 = vmatprep.mubr.bf16.mxu0 %v5440
      %5527 = vmatmul.mubr.bf16.gmra.mrb[0].mxu0 %v5331
      %v5528 = vpop.f32.mrb[0].mxu0
      %v5529 = vpop.f32.mrb[0].mxu0
      %v5530 = vpop.f32.mrb[0].mxu0
      %v5531 = vpop.f32.mrb[0].mxu0
      %5532 = vdwg.mxu0
      %v5533 = vadd.f32 %v5194, %v5495
      %v5534 = vadd.f32 %v5197, %v5498
      %v5535 = vadd.f32 %v5204, %v5505
      %v5536 = vadd.f32 %v5209, %v5510
      %v5537 = vld [vmem:[%s5 + $0x4] sm:$0x1]
      %v5538 = vlaneseq
      %v5539 = vshrl.u32 %v5538, 7
      %v5540 = vsub.s32 0, %v5539
      %v5541 = vrot.slane %v5537, %v5540
      %v5542 = vadd.f32 %v5533, %v5541
      %v5543 = vadd.f32 %v5534, %v5541
      %v5544 = vadd.f32 %v5535, %v5541
      %v5545 = vadd.f32 %v5536, %v5541
      %v5546 = vmax.f32 %v5542, 0.0
      %v5547 = vmax.f32 %v5543, 0.0
      %v5548 = vmax.f32 %v5544, 0.0
      %v5549 = vmax.f32 %v5545, 0.0
      %vm5552 = vcmask 1045504
      %v5553 = vrot.slane %v5546, 2
      %v5554 = vrot.slane %v5547, 2
      %v5555 = vsel %vm5552, %v5553, %v5554
      %v5557 = vmax.f32 %v5546, %v5555
      %v5560 = vrot.slane %v5548, 2
      %v5561 = vrot.slane %v5549, 2
      %v5562 = vsel %vm5552, %v5560, %v5561
      %v5564 = vmax.f32 %v5548, %v5562
      %v5565 = vmax.f32 %v5557, %v5564
      %v5566 = vpack.c.bf16 %v5565, %v5565
      %v5567 = vld [vmem:[%s7] sm:$0xf]
      %v5568 = vld [vmem:[%s7 + $0x4] sm:$0xf]
      %v5569 = vld [vmem:[%s7 + $0x8] sm:$0xf]
      %v5570 = vld [vmem:[%s7 + $0xc] sm:$0xf]
      %v5571 = vld [vmem:[%s7 + $0x10] sm:$0xf]
      %v5572 = vld [vmem:[%s7 + $0x14] sm:$0xf]
      %v5573 = vld [vmem:[%s7 + $0x18] sm:$0xf]
      %v5574 = vld [vmem:[%s7 + $0x1c] sm:$0xf]
      %v5575 = vld [vmem:[%s6] sm:$0x1]
      %v5577 = vrot.slane %v5566, 2
      %v5586 = vunpack.c.l.b16 %v5567
      %v5587 = vunpack.c.l.b16 %v5568
      %v5588 = vunpack.c.l.b16 %v5569
      %v5589 = vunpack.c.l.b16 %v5570
      %v5590 = vunpack.c.l.b16 %v5571
      %v5591 = vunpack.c.l.b16 %v5572
      %v5592 = vunpack.c.l.b16 %v5573
      %v5593 = vunpack.c.l.b16 %v5574
      %v5594 = vpack.c.b16 %v5587, %v5586
      %v5595 = vpack.c.b16 %v5589, %v5588
      %v5596 = vpack.c.b16 %v5591, %v5590
      %v5597 = vpack.c.b16 %v5593, %v5592
      %v5603 = vsel %vm349, %v5577, 0
      %5605 = vmatprep.subr.bf16.mxu0 0
      %5606 = vmatpush1.bf16.msra.mxu0 %v5594
      %5607 = vmatprep.subr.bf16.mxu0 0
      %5608 = vmatpush1.bf16.msra.mxu0 %v5595
      %5609 = vmatprep.subr.bf16.mxu0 0
      %5610 = vmatpush1.bf16.msra.mxu0 %v5596
      %5611 = vmatprep.subr.bf16.mxu0 0
      %5612 = vmatpush1.bf16.msra.mxu0 %v5597
      %5613 = vmatprep.subr.bf16.mxu0 0
      %5614 = vmatpush1.bf16.msra.mxu0 0
      %5615 = vmatprep.subr.bf16.mxu0 0
      %5616 = vmatpush1.bf16.msra.mxu0 0
      %5617 = vmatprep.subr.bf16.mxu0 0
      %5618 = vmatpush1.bf16.msra.mxu0 0
      %5619 = vmatprep.subr.bf16.mxu0 0
      %5620 = vmatpush1.bf16.msra.mxu0 0
      %5621 = vmatprep.subr.bf16.mxu0 0
      %5622 = vmatpush1.bf16.msra.mxu0 0
      %5623 = vmatprep.subr.bf16.mxu0 0
      %5624 = vmatpush1.bf16.msra.mxu0 0
      %5625 = vmatprep.subr.bf16.mxu0 0
      %5626 = vmatpush1.bf16.msra.mxu0 0
      %5627 = vmatprep.subr.bf16.mxu0 0
      %5628 = vmatpush1.bf16.msra.mxu0 0
      %5629 = vmatprep.subr.bf16.mxu0 0
      %5630 = vmatpush1.bf16.msra.mxu0 0
      %5631 = vmatprep.subr.bf16.mxu0 0
      %5632 = vmatpush1.bf16.msra.mxu0 0
      %5633 = vmatprep.subr.bf16.mxu0 0
      %5634 = vmatpush1.bf16.msra.mxu0 0
      %5635 = vmatprep.subr.bf16.mxu0 0
      %5636 = vmatpush1.bf16.msra.mxu0 0
      %5637 = vmatprep.mubr.bf16.mxu0 0
      %5638 = vmatmul.mubr.bf16.gmra.mrb[0].mxu0 %v5603
      %v5639 = vpop.f32.mrb[0].mxu0
      %v5640 = vadd.f32 %v5575, %v5639
      %v5641 = vpop.f32.mrb[0].mxu0
      %v5642 = vpop.f32.mrb[0].mxu0
      %v5643 = vpop.f32.mrb[0].mxu0
      %5644 = vdwg.mxu0
      %v5645 = vmax.f32 %v5640, 0.0
      %v5646 = vld [vmem:[%s6 + $0x1] sm:$0x1]
      %v5647 = vmul.f32 %v5645, %v5646
      %vm5648 = vcmask 1040384
      %v5649 = vsel %vm5648, %v5647, 0.0
      %5650 = vadd.xlane.f32.xlu0 %v5649
      %v5651 = vpop.xlane.xlu0 %5650
      %v5652 = vld [vmem:[%s6 + $0x2] sm:$0x1]
      %v5653 = vadd.f32 %v5651, %v5652
      %5655 = vset.pattern.permute.xlu0 0
      %5656 = vperm.xlu0 %5655, %v5653
      %v5657 = vpop.permute.xlu0 %5656
      %v5659 = vsel %vm5648, %v5657, 0.0
      %5660 = vst [vmem:[%s346] sm:$0xff] %v5659
      %s5661 = smul.u32 18, %s21
      %p5662 = scmp.lt.s32.totalorder %s5661, 35
      %s5663 = scalar_select %p5662, %s5661, 35
      %s5664 = smul.addr %s5663, 8
      %s5665 = scalar_lea.vmem %s8, %s5664
      %p5666 = scmp.lt.s32.totalorder %s21, 1
      %s5667 = scalar_select %p5666, %s21, 1
      %s5668 = smul.addr %s5667, 8
      %s5669 = scalar_lea.vmem %s9, %s5668
      // Predicated region
      $region53: #{environment_model_forward.1} parent=51 // pred_check
        %p5670 = pneg %p212
      $region54: #{environment_model_forward.1} parent=51 // pred_check_branch
        %5672 = sbr.rel (%p5670) target = $region56
      $region55: #{environment_model_forward.1} parent=51 // pred_region
        %s5673 = smul.u32 18, %s21
      $region56: #{environment_model_forward.1} parent=51 // pred_fallthru
        _
      // Predicated region
      $region57: #{environment_model_forward.1} parent=51 // pred_check
        %p5674 = pneg %p238
      $region58: #{environment_model_forward.1} parent=51 // pred_check_branch
        %5676 = sbr.rel (%p5674) target = $region60
      $region59: #{environment_model_forward.1} parent=51 // pred_region
        _
      $region60: #{environment_model_forward.1} parent=51 // pred_fallthru
        _
    $region52: #{environment_model_forward.1} parent=5 // pred_fallthru
      _
    %p5677 = scmp.le.s32.totalorder 2, %s16
    // Predicated region
    $region61: #{environment_model_forward.1} parent=5 // pred_check
      %p5678 = pneg %p5677
    $region62: #{environment_model_forward.1} parent=5 // pred_check_branch
      %5680 = sbr.rel (%p5678) target = $region64
    $region63: #{environment_model_forward.1} parent=5 // pred_region
      %s5681 = ssub.s32 %s16, 2
      // Predicated region
      $region65: #{environment_model_forward.1} parent=63 // pred_check
        %p5682 = pneg %p218
      $region66: #{environment_model_forward.1} parent=63 // pred_check_branch
        %5684 = sbr.rel (%p5682) target = $region68
      $region67: #{environment_model_forward.1} parent=63 // pred_region
        %s5685 = smul.u32 18, %s22
        %p5686 = scmp.lt.s32.totalorder %s5685, 35
        %s5687 = scalar_select %p5686, %s5685, 35
        %s5688 = smul.addr %s5687, 8
        %s5689 = scalar_lea.vmem %s8, %s5688
      $region68: #{environment_model_forward.1} parent=63 // pred_fallthru
        _
      // Predicated region
      $region69: #{environment_model_forward.1} parent=63 // pred_check
        %p5690 = pneg %p244
      $region70: #{environment_model_forward.1} parent=63 // pred_check_branch
        %5692 = sbr.rel (%p5690) target = $region72
      $region71: #{environment_model_forward.1} parent=63 // pred_region
        %p5693 = scmp.lt.s32.totalorder %s22, 1
        %s5694 = scalar_select %p5693, %s22, 1
        %s5695 = smul.addr %s5694, 8
        %s5696 = scalar_lea.vmem %s9, %s5695
      $region72: #{environment_model_forward.1} parent=63 // pred_fallthru
        _
    $region64: #{environment_model_forward.1} parent=5 // pred_fallthru
      _
  $region6: #{environment_model_forward.1} parent=0 // loop_footer
    %s20 = sadd.s32 1, %s16
  $region7: #{environment_model_forward.1} parent=0 // loop_footer_branch
    %15 = sbr.rel target = $region3
  $region8: #{environment_model_forward.1} parent=0 // loop_exit
    _

</llo_original>
